<compile_context>
chip_gen: v5e
topology: v5e:2x2
jax: 0.10.0
libtpu: 0.0.40
codegen_flags: <defaults>
</compile_context>

<pallas_src>
import functools
import math

import jax
import jax.numpy as jnp
from jax.experimental import pallas as pl
from jax.experimental.pallas import tpu as pltpu

GAMMA, ZETA = -0.1, 1.1


# ----------------------------------------------------------------------------
# Gate / weight preparation (pure JAX, tiny, runs once per forward under jit)
# ----------------------------------------------------------------------------
def hard_concrete_gate(qz_loga):
    return jnp.clip(jax.nn.sigmoid(qz_loga) * (ZETA - GAMMA) + GAMMA, 0.0, 1.0)


def _conv_pool_weights(w, w_in, parity):
    """(Cout, Cin, kh, kw) conv weight -> (kh, Cin*w_in, Cout*wp) banded matrices
    with the MaxPool2d(2) column subsample (columns 2c+parity) folded in:

      M[i][ci*w_in + l, co*wp + c] = w[co, ci, i, l - (2c+parity)]
                                     if 0 <= l - (2c+parity) < kw else 0

    so for an activation row slab `act` (rows = batch, lanes = ci*w_in + l):
      sum_i act[h+i] @ M[i]  ==  VALID cross-correlation (F.conv2d) output row h,
    restricted to even/odd output columns.  Only the tiny weights are inflated;
    activations are never im2col'd.
    """
    cout, cin, kh, kw = w.shape
    wo = w_in - kw + 1
    wp = wo // 2
    l = jnp.arange(w_in)[:, None]                      # (w_in, 1)
    x = 2 * jnp.arange(wp)[None, :] + parity           # (1, wp) -- always <= wo-1
    j = l - x
    valid = (j >= 0) & (j < kw)
    jc = jnp.clip(j, 0, kw - 1)
    g = w[:, :, :, jc]                                 # (Cout, Cin, kh, w_in, wp)
    g = jnp.where(valid[None, None, None], g, 0.0)
    g = jnp.transpose(g, (2, 1, 3, 0, 4))              # (kh, Cin, w_in, Cout, wp)
    return g.reshape(kh, cin * w_in, cout * wp).astype(jnp.float32)


# ----------------------------------------------------------------------------
# The single fused kernel (one grid step == Bt images, batch on the MXU M dim)
# ----------------------------------------------------------------------------
def _lenet5_kernel(x_ref, m1e_ref, m1o_ref, b1_ref, m2e_ref, m2o_ref, b2_ref,
                   wfc1_ref, bfc1_ref, wfc2_ref, bfc2_ref, o_ref, *, dims):
    H, W, Cin, kh, Bt = dims
    Ho1 = H - kh + 1
    H1 = Ho1 // 2
    Ho2 = H1 - kh + 1
    H2 = Ho2 // 2
    f32 = jnp.float32

    def conv_pool_relu(act2d, ho, me_ref, mo_ref, b_ref):
        # act2d: (h_in*Bt, K) with row index = spatial_row*Bt + batch.
        # kh row shifts accumulate on the MXU with M = ho*Bt; even/odd pooled
        # output columns are two independent accumulation chains.
        acc_e = acc_o = None
        for i in range(kh):
            lhs = act2d[i * Bt:(i + ho) * Bt, :]
            te = jnp.dot(lhs, me_ref[i], preferred_element_type=f32)
            to = jnp.dot(lhs, mo_ref[i], preferred_element_type=f32)
            acc_e = te if acc_e is None else acc_e + te
            acc_o = to if acc_o is None else acc_o + to
        col = jnp.maximum(acc_e, acc_o)                # (ho*Bt, Cout*Wp) col-pooled
        lanes = col.shape[-1]
        pairs = col.reshape(ho // 2, 2 * Bt, lanes)    # adjacent row pairs grouped
        row = jnp.maximum(pairs[:, :Bt, :], pairs[:, Bt:, :])
        # Bias + ReLU AFTER the pool: relu(max(conv)+b) == max(relu(conv+b))
        # because bias is per-channel constant over the window and ReLU/max are
        # monotone -> 4x fewer VPU elements touched.
        return jnp.maximum(row.reshape((ho // 2) * Bt, lanes) + b_ref[...], 0.0)

    # x layout: (H, Bt, Cin*W) -> flat (H*Bt, Cin*W), row = spatial_row*Bt + batch.
    x2d = x_ref[...].reshape(H * Bt, Cin * W)

    # ---- L0Conv2d #1 (gate folded) + fused MaxPool2d(2) + bias + ReLU ----
    p1 = conv_pool_relu(x2d, Ho1, m1e_ref, m1o_ref, b1_ref)   # (H1*Bt, C1*W1)

    # ---- L0Conv2d #2 + fused MaxPool2d(2) + bias + ReLU ----
    p2 = conv_pool_relu(p1, Ho2, m2e_ref, m2o_ref, b2_ref)    # (H2*Bt, C2*W2)

    # ---- L0Dense fc1 (input gate + NCHW flatten permutation folded), batch = M ----
    acc = None
    for h in range(H2):
        t = jnp.dot(p2[h * Bt:(h + 1) * Bt, :], wfc1_ref[h],
                    preferred_element_type=f32)
        acc = t if acc is None else acc + t
    h1 = jnp.maximum(acc + bfc1_ref[...], 0.0)                 # (Bt, fc_dims)

    # ---- L0Dense fc2 (input gate folded), no activation ----
    o_ref[...] = (jnp.dot(h1, wfc2_ref[...], preferred_element_type=f32)
                  + bfc2_ref[...]).astype(o_ref.dtype)


def _const_spec(arr):
    """Whole (tiny) array VMEM-resident; constant block index -> fetched once."""
    if arr.ndim == 3:
        return pl.BlockSpec(arr.shape, lambda b: (0, 0, 0))
    return pl.BlockSpec(arr.shape, lambda b: (0, 0))


# ----------------------------------------------------------------------------
# Forward pass (single pallas_call)
# ----------------------------------------------------------------------------
def l0_lenet5_forward(x_nchw, p, *, kernel_size=5, batch_tile=None):
    kh = kernel_size
    N, Cin, H, W = x_nchw.shape
    C1 = p["conv1_w"].shape[0]
    C2 = p["conv2_w"].shape[0]
    fc_dims = p["fc1_w"].shape[1]
    num_classes = p["fc2_w"].shape[1]

    Ho1, Wo1 = H - kh + 1, W - kh + 1
    H1, W1 = Ho1 // 2, Wo1 // 2
    Ho2, Wo2 = H1 - kh + 1, W1 - kh + 1
    H2, W2 = Ho2 // 2, Wo2 // 2
    # Guard the geometry the fused pool relies on (even conv outputs, no pool
    # remainder) so a different configuration can't silently produce
    # cross-channel / out-of-window maxes.
    assert Ho1 % 2 == 0 and Wo1 % 2 == 0 and Ho2 % 2 == 0 and Wo2 % 2 == 0, \
        "fused MaxPool2d(2) requires even conv output sizes"
    assert p["fc1_w"].shape[0] == C2 * H2 * W2

    # Batch tile: batch is the MXU M dimension, so make it big, but keep >=2 grid
    # steps when possible so v7x's two TensorCores both get work; Bt<=128 stays
    # comfortably inside v5e's scoped VMEM.
    if batch_tile is None:
        if N >= 256:
            Bt = 128
        else:
            Bt = min(128, max(8, ((((N + 1) // 2) + 7) // 8) * 8))
    else:
        Bt = batch_tile
    assert Bt % 8 == 0
    n_steps = -(-N // Bt)
    n_pad = n_steps * Bt

    # Activation layout: (spatial_row, batch, channel*width) -> batch on sublanes,
    # channel-blocked width on lanes.  x2[h, n, ci*W + w] = x[n, ci, h, w].
    x2 = jnp.transpose(x_nchw, (2, 0, 1, 3)).reshape(H, N, Cin * W).astype(jnp.float32)
    if n_pad != N:
        x2 = jnp.pad(x2, ((0, 0), (0, n_pad - N), (0, 0)))

    # Deterministic gates, folded into the weights (eval mode).
    z1 = hard_concrete_gate(p["conv1_qz"])
    z2 = hard_concrete_gate(p["conv2_qz"])
    g1 = hard_concrete_gate(p["fc1_qz"])
    g2 = hard_concrete_gate(p["fc2_qz"])

    w1 = p["conv1_w"] * z1[:, None, None, None]
    w2 = p["conv2_w"] * z2[:, None, None, None]
    m1e, m1o = _conv_pool_weights(w1, W, 0), _conv_pool_weights(w1, W, 1)
    m2e, m2o = _conv_pool_weights(w2, W1, 0), _conv_pool_weights(w2, W1, 1)
    # Biases are applied after the pool -> per pooled width.
    b1 = jnp.repeat(p["conv1_b"], W1)[None, :].astype(jnp.float32)
    b2 = jnp.repeat(p["conv2_b"], W2)[None, :].astype(jnp.float32)

    # fc1: fold input gate + the NCHW flatten (o.view(N,-1)) row permutation.
    wfc1 = (p["fc1_w"] * g1[:, None]).reshape(C2, H2, W2, fc_dims)
    wfc1 = jnp.transpose(wfc1, (1, 0, 2, 3)).reshape(H2, C2 * W2, fc_dims)
    wfc1 = wfc1.astype(jnp.float32)
    bfc1 = p["fc1_b"][None, :].astype(jnp.float32)
    wfc2 = (p["fc2_w"] * g2[:, None]).astype(jnp.float32)
    bfc2 = p["fc2_b"][None, :].astype(jnp.float32)

    out = pl.pallas_call(
        functools.partial(_lenet5_kernel, dims=(H, W, Cin, kh, Bt)),
        out_shape=jax.ShapeDtypeStruct((n_pad, num_classes), jnp.float32),
        grid=(n_steps,),
        in_specs=[pl.BlockSpec((H, Bt, Cin * W), lambda b: (0, b, 0)),
                  _const_spec(m1e), _const_spec(m1o), _const_spec(b1),
                  _const_spec(m2e), _const_spec(m2o), _const_spec(b2),
                  _const_spec(wfc1), _const_spec(bfc1),
                  _const_spec(wfc2), _const_spec(bfc2)],
        out_specs=pl.BlockSpec((Bt, num_classes), lambda b: (b, 0)),
        compiler_params=pltpu.CompilerParams(
            dimension_semantics=("parallel",),
            vmem_limit_bytes=32 * 1024 * 1024),
    )(x2, m1e, m1o, b1, m2e, m2o, b2, wfc1, bfc1, wfc2, bfc2)
    return out[:N]


# ----------------------------------------------------------------------------
# Parameter init (matches the module's Kaiming init / droprate_init=0.5)
# ----------------------------------------------------------------------------
def init_params(key, in_ch, conv_dims, fc_dims, num_classes, flat_fts, kh=5, kw=5):
    keys = jax.random.split(key, 8)

    def kaiming(k, shape, fan_in):
        return jax.random.normal(k, shape, jnp.float32) * math.sqrt(2.0 / fan_in)

    return {
        "conv1_w": kaiming(keys[0], (conv_dims[0], in_ch, kh, kw), in_ch * kh * kw),
        "conv1_b": jnp.zeros((conv_dims[0],), jnp.float32),
        "conv1_qz": 1e-2 * jax.random.normal(keys[1], (conv_dims[0],), jnp.float32),
        "conv2_w": kaiming(keys[2], (conv_dims[1], conv_dims[0], kh, kw),
                           conv_dims[0] * kh * kw),
        "conv2_b": jnp.zeros((conv_dims[1],), jnp.float32),
        "conv2_qz": 1e-2 * jax.random.normal(keys[3], (conv_dims[1],), jnp.float32),
        "fc1_w": kaiming(keys[4], (flat_fts, fc_dims), flat_fts),
        "fc1_b": jnp.zeros((fc_dims,), jnp.float32),
        "fc1_qz": 1e-2 * jax.random.normal(keys[5], (flat_fts,), jnp.float32),
        "fc2_w": kaiming(keys[6], (fc_dims, num_classes), fc_dims),
        "fc2_b": jnp.zeros((num_classes,), jnp.float32),
        "fc2_qz": 1e-2 * jax.random.normal(keys[7], (fc_dims,), jnp.float32),
    }


# ----------------------------------------------------------------------------
# Pure-JAX reference (same eval-mode semantics) for a correctness check
# ----------------------------------------------------------------------------
def _reference_forward(x_nchw, p, kh=5):
    hi = jax.lax.Precision.HIGHEST
    z1 = hard_concrete_gate(p["conv1_qz"])
    z2 = hard_concrete_gate(p["conv2_qz"])
    g1 = hard_concrete_gate(p["fc1_qz"])
    g2 = hard_concrete_gate(p["fc2_qz"])

    def conv(x, w, b):
        y = jax.lax.conv_general_dilated(
            x, w, (1, 1), "VALID",
            dimension_numbers=("NCHW", "OIHW", "NCHW"), precision=hi)
        return jax.nn.relu(y + b[None, :, None, None])

    def pool(x):
        return jax.lax.reduce_window(x, -jnp.inf, jax.lax.max,
                                     (1, 1, 2, 2), (1, 1, 2, 2), "VALID")

    o = pool(conv(x_nchw, p["conv1_w"] * z1[:, None, None, None], p["conv1_b"]))
    o = pool(conv(o, p["conv2_w"] * z2[:, None, None, None], p["conv2_b"]))
    o = o.reshape(o.shape[0], -1)
    o = jax.nn.relu(jnp.dot(o, p["fc1_w"] * g1[:, None], precision=hi) + p["fc1_b"])
    return jnp.dot(o, p["fc2_w"] * g2[:, None], precision=hi) + p["fc2_b"]


if __name__ == "__main__":
    # Small shapes consistent with the module: (1, 28, 28) input, 5x5 convs,
    # two 2x2 maxpools -> 28->24->12->8->4 spatial.  batch=16 gives a 2-step
    # batch-tiled grid (Bt=8) so the v7x megacore path is exercised.
    batch = 16
    num_classes = 10
    input_size = (1, 28, 28)
    conv_dims = (4, 8)
    fc_dims = 32
    flat_fts = conv_dims[1] * 4 * 4                      # get_flat_fts equivalent

    key = jax.random.PRNGKey(0)
    kx, kp = jax.random.split(key)
    x = jax.random.normal(kx, (batch, *input_size), jnp.float32)
    params = init_params(kp, input_size[0], conv_dims, fc_dims, num_classes, flat_fts)

    # TODO(synk): training-mode stochastic hard-concrete sampling and the
    # regularization()/FLOP-count/EMA utilities are not part of forward() and
    # are not implemented as kernels.
    out = jax.jit(l0_lenet5_forward)(x, params)
    jax.block_until_ready(out)
    assert out.shape == (batch, num_classes), out.shape

    ref = _reference_forward(x, params)
    err = float(jnp.max(jnp.abs(out - ref)))
    assert err < 5e-2, f"mismatch vs reference: max abs err {err}"
    print("KERNEL_OK")
</pallas_src>

<mosaic_0001>
module attributes {stable_mosaic.version = 11 : i64} {
  func.func @_lenet5_kernel(%arg0: i32, %arg1: memref<28x8x28xf32, #tpu.memory_space<vmem>>, %arg2: memref<5x28x48xf32, #tpu.memory_space<vmem>>, %arg3: memref<5x28x48xf32, #tpu.memory_space<vmem>>, %arg4: memref<1x48xf32, #tpu.memory_space<vmem>>, %arg5: memref<5x48x32xf32, #tpu.memory_space<vmem>>, %arg6: memref<5x48x32xf32, #tpu.memory_space<vmem>>, %arg7: memref<1x32xf32, #tpu.memory_space<vmem>>, %arg8: memref<4x32x32xf32, #tpu.memory_space<vmem>>, %arg9: memref<1x32xf32, #tpu.memory_space<vmem>>, %arg10: memref<32x10xf32, #tpu.memory_space<vmem>>, %arg11: memref<1x10xf32, #tpu.memory_space<vmem>>, %arg12: memref<8x10xf32, #tpu.memory_space<vmem>>) attributes {dimension_semantics = [#tpu.dimension_semantics<parallel>], iteration_bounds = array<i64: 2>, scalar_prefetch = 0 : i64, scratch_operands = 0 : i64, tpu.core_type = #tpu.core_type<tc>, window_params = [{transform_indices = @transform_0, window_bounds = array<i64: 28, 8, 28>}, {pipeline_mode = #tpu.pipeline_mode<synchronous>, transform_indices = @transform_1, window_bounds = array<i64: 5, 28, 48>}, {pipeline_mode = #tpu.pipeline_mode<synchronous>, transform_indices = @transform_2, window_bounds = array<i64: 5, 28, 48>}, {pipeline_mode = #tpu.pipeline_mode<synchronous>, transform_indices = @transform_3, window_bounds = array<i64: 1, 48>}, {pipeline_mode = #tpu.pipeline_mode<synchronous>, transform_indices = @transform_4, window_bounds = array<i64: 5, 48, 32>}, {pipeline_mode = #tpu.pipeline_mode<synchronous>, transform_indices = @transform_5, window_bounds = array<i64: 5, 48, 32>}, {pipeline_mode = #tpu.pipeline_mode<synchronous>, transform_indices = @transform_6, window_bounds = array<i64: 1, 32>}, {pipeline_mode = #tpu.pipeline_mode<synchronous>, transform_indices = @transform_7, window_bounds = array<i64: 4, 32, 32>}, {pipeline_mode = #tpu.pipeline_mode<synchronous>, transform_indices = @transform_8, window_bounds = array<i64: 1, 32>}, {pipeline_mode = #tpu.pipeline_mode<synchronous>, transform_indices = @transform_9, window_bounds = array<i64: 32, 10>}, {pipeline_mode = #tpu.pipeline_mode<synchronous>, transform_indices = @transform_10, window_bounds = array<i64: 1, 10>}, {transform_indices = @transform_11, window_bounds = array<i64: 8, 10>}]} {
    %c0 = arith.constant 0 : index
    %c0_0 = arith.constant 0 : index
    %c0_1 = arith.constant 0 : index
    %0 = vector.load %arg1[%c0, %c0_0, %c0_1] : memref<28x8x28xf32, #tpu.memory_space<vmem>>, vector<28x8x28xf32>
    %1 = vector.shape_cast %0 : vector<28x8x28xf32> to vector<224x28xf32>
    %2 = vector.extract_strided_slice %1 {offsets = [0, 0], sizes = [192, 28], strides = [1, 1]} : vector<224x28xf32> to vector<192x28xf32>
    %c0_2 = arith.constant 0 : index
    %c0_3 = arith.constant 0 : index
    %c0_4 = arith.constant 0 : index
    %3 = vector.load %arg2[%c0_2, %c0_3, %c0_4] : memref<5x28x48xf32, #tpu.memory_space<vmem>>, vector<1x28x48xf32>
    %4 = vector.shape_cast %3 : vector<1x28x48xf32> to vector<28x48xf32>
    %cst = arith.constant dense<0.000000e+00> : vector<192x48xf32>
    %5 = tpu.matmul %2, %4, %cst {dimension_numbers = #tpu.dot_dimension_numbers<[1], [0], [0], [1], [0, 0, 1, 1], [], []>} : vector<192x28xf32>, vector<28x48xf32>, vector<192x48xf32> -> vector<192x48xf32>
    %c0_5 = arith.constant 0 : index
    %c0_6 = arith.constant 0 : index
    %c0_7 = arith.constant 0 : index
    %6 = vector.load %arg3[%c0_5, %c0_6, %c0_7] : memref<5x28x48xf32, #tpu.memory_space<vmem>>, vector<1x28x48xf32>
    %7 = vector.shape_cast %6 : vector<1x28x48xf32> to vector<28x48xf32>
    %cst_8 = arith.constant dense<0.000000e+00> : vector<192x48xf32>
    %8 = tpu.matmul %2, %7, %cst_8 {dimension_numbers = #tpu.dot_dimension_numbers<[1], [0], [0], [1], [0, 0, 1, 1], [], []>} : vector<192x28xf32>, vector<28x48xf32>, vector<192x48xf32> -> vector<192x48xf32>
    %9 = vector.extract_strided_slice %1 {offsets = [8, 0], sizes = [192, 28], strides = [1, 1]} : vector<224x28xf32> to vector<192x28xf32>
    %c1 = arith.constant 1 : index
    %c0_9 = arith.constant 0 : index
    %c0_10 = arith.constant 0 : index
    %10 = vector.load %arg2[%c1, %c0_9, %c0_10] : memref<5x28x48xf32, #tpu.memory_space<vmem>>, vector<1x28x48xf32>
    %11 = vector.shape_cast %10 : vector<1x28x48xf32> to vector<28x48xf32>
    %cst_11 = arith.constant dense<0.000000e+00> : vector<192x48xf32>
    %12 = tpu.matmul %9, %11, %cst_11 {dimension_numbers = #tpu.dot_dimension_numbers<[1], [0], [0], [1], [0, 0, 1, 1], [], []>} : vector<192x28xf32>, vector<28x48xf32>, vector<192x48xf32> -> vector<192x48xf32>
    %c1_12 = arith.constant 1 : index
    %c0_13 = arith.constant 0 : index
    %c0_14 = arith.constant 0 : index
    %13 = vector.load %arg3[%c1_12, %c0_13, %c0_14] : memref<5x28x48xf32, #tpu.memory_space<vmem>>, vector<1x28x48xf32>
    %14 = vector.shape_cast %13 : vector<1x28x48xf32> to vector<28x48xf32>
    %cst_15 = arith.constant dense<0.000000e+00> : vector<192x48xf32>
    %15 = tpu.matmul %9, %14, %cst_15 {dimension_numbers = #tpu.dot_dimension_numbers<[1], [0], [0], [1], [0, 0, 1, 1], [], []>} : vector<192x28xf32>, vector<28x48xf32>, vector<192x48xf32> -> vector<192x48xf32>
    %16 = arith.addf %5, %12 : vector<192x48xf32>
    %17 = arith.addf %8, %15 : vector<192x48xf32>
    %18 = vector.extract_strided_slice %1 {offsets = [16, 0], sizes = [192, 28], strides = [1, 1]} : vector<224x28xf32> to vector<192x28xf32>
    %c2 = arith.constant 2 : index
    %c0_16 = arith.constant 0 : index
    %c0_17 = arith.constant 0 : index
    %19 = vector.load %arg2[%c2, %c0_16, %c0_17] : memref<5x28x48xf32, #tpu.memory_space<vmem>>, vector<1x28x48xf32>
    %20 = vector.shape_cast %19 : vector<1x28x48xf32> to vector<28x48xf32>
    %cst_18 = arith.constant dense<0.000000e+00> : vector<192x48xf32>
    %21 = tpu.matmul %18, %20, %cst_18 {dimension_numbers = #tpu.dot_dimension_numbers<[1], [0], [0], [1], [0, 0, 1, 1], [], []>} : vector<192x28xf32>, vector<28x48xf32>, vector<192x48xf32> -> vector<192x48xf32>
    %c2_19 = arith.constant 2 : index
    %c0_20 = arith.constant 0 : index
    %c0_21 = arith.constant 0 : index
    %22 = vector.load %arg3[%c2_19, %c0_20, %c0_21] : memref<5x28x48xf32, #tpu.memory_space<vmem>>, vector<1x28x48xf32>
    %23 = vector.shape_cast %22 : vector<1x28x48xf32> to vector<28x48xf32>
    %cst_22 = arith.constant dense<0.000000e+00> : vector<192x48xf32>
    %24 = tpu.matmul %18, %23, %cst_22 {dimension_numbers = #tpu.dot_dimension_numbers<[1], [0], [0], [1], [0, 0, 1, 1], [], []>} : vector<192x28xf32>, vector<28x48xf32>, vector<192x48xf32> -> vector<192x48xf32>
    %25 = arith.addf %16, %21 : vector<192x48xf32>
    %26 = arith.addf %17, %24 : vector<192x48xf32>
    %27 = vector.extract_strided_slice %1 {offsets = [24, 0], sizes = [192, 28], strides = [1, 1]} : vector<224x28xf32> to vector<192x28xf32>
    %c3 = arith.constant 3 : index
    %c0_23 = arith.constant 0 : index
    %c0_24 = arith.constant 0 : index
    %28 = vector.load %arg2[%c3, %c0_23, %c0_24] : memref<5x28x48xf32, #tpu.memory_space<vmem>>, vector<1x28x48xf32>
    %29 = vector.shape_cast %28 : vector<1x28x48xf32> to vector<28x48xf32>
    %cst_25 = arith.constant dense<0.000000e+00> : vector<192x48xf32>
    %30 = tpu.matmul %27, %29, %cst_25 {dimension_numbers = #tpu.dot_dimension_numbers<[1], [0], [0], [1], [0, 0, 1, 1], [], []>} : vector<192x28xf32>, vector<28x48xf32>, vector<192x48xf32> -> vector<192x48xf32>
    %c3_26 = arith.constant 3 : index
    %c0_27 = arith.constant 0 : index
    %c0_28 = arith.constant 0 : index
    %31 = vector.load %arg3[%c3_26, %c0_27, %c0_28] : memref<5x28x48xf32, #tpu.memory_space<vmem>>, vector<1x28x48xf32>
    %32 = vector.shape_cast %31 : vector<1x28x48xf32> to vector<28x48xf32>
    %cst_29 = arith.constant dense<0.000000e+00> : vector<192x48xf32>
    %33 = tpu.matmul %27, %32, %cst_29 {dimension_numbers = #tpu.dot_dimension_numbers<[1], [0], [0], [1], [0, 0, 1, 1], [], []>} : vector<192x28xf32>, vector<28x48xf32>, vector<192x48xf32> -> vector<192x48xf32>
    %34 = arith.addf %25, %30 : vector<192x48xf32>
    %35 = arith.addf %26, %33 : vector<192x48xf32>
    %36 = vector.extract_strided_slice %1 {offsets = [32, 0], sizes = [192, 28], strides = [1, 1]} : vector<224x28xf32> to vector<192x28xf32>
    %c4 = arith.constant 4 : index
    %c0_30 = arith.constant 0 : index
    %c0_31 = arith.constant 0 : index
    %37 = vector.load %arg2[%c4, %c0_30, %c0_31] : memref<5x28x48xf32, #tpu.memory_space<vmem>>, vector<1x28x48xf32>
    %38 = vector.shape_cast %37 : vector<1x28x48xf32> to vector<28x48xf32>
    %cst_32 = arith.constant dense<0.000000e+00> : vector<192x48xf32>
    %39 = tpu.matmul %36, %38, %cst_32 {dimension_numbers = #tpu.dot_dimension_numbers<[1], [0], [0], [1], [0, 0, 1, 1], [], []>} : vector<192x28xf32>, vector<28x48xf32>, vector<192x48xf32> -> vector<192x48xf32>
    %c4_33 = arith.constant 4 : index
    %c0_34 = arith.constant 0 : index
    %c0_35 = arith.constant 0 : index
    %40 = vector.load %arg3[%c4_33, %c0_34, %c0_35] : memref<5x28x48xf32, #tpu.memory_space<vmem>>, vector<1x28x48xf32>
    %41 = vector.shape_cast %40 : vector<1x28x48xf32> to vector<28x48xf32>
    %cst_36 = arith.constant dense<0.000000e+00> : vector<192x48xf32>
    %42 = tpu.matmul %36, %41, %cst_36 {dimension_numbers = #tpu.dot_dimension_numbers<[1], [0], [0], [1], [0, 0, 1, 1], [], []>} : vector<192x28xf32>, vector<28x48xf32>, vector<192x48xf32> -> vector<192x48xf32>
    %43 = arith.addf %34, %39 : vector<192x48xf32>
    %44 = arith.addf %35, %42 : vector<192x48xf32>
    %45 = arith.maximumf %43, %44 : vector<192x48xf32>
    %46 = vector.shape_cast %45 : vector<192x48xf32> to vector<12x16x48xf32>
    %47 = vector.extract_strided_slice %46 {offsets = [0, 0, 0], sizes = [12, 8, 48], strides = [1, 1, 1]} : vector<12x16x48xf32> to vector<12x8x48xf32>
    %48 = vector.extract_strided_slice %46 {offsets = [0, 8, 0], sizes = [12, 8, 48], strides = [1, 1, 1]} : vector<12x16x48xf32> to vector<12x8x48xf32>
    %49 = arith.maximumf %47, %48 : vector<12x8x48xf32>
    %50 = vector.shape_cast %49 : vector<12x8x48xf32> to vector<96x48xf32>
    %c0_37 = arith.constant 0 : index
    %c0_38 = arith.constant 0 : index
    %51 = vector.load %arg4[%c0_37, %c0_38] : memref<1x48xf32, #tpu.memory_space<vmem>>, vector<1x48xf32>
    %52 = vector.broadcast %51 : vector<1x48xf32> to vector<96x48xf32>
    %53 = arith.addf %50, %52 : vector<96x48xf32>
    %cst_39 = arith.constant 0.000000e+00 : f32
    %54 = vector.broadcast %cst_39 : f32 to vector<96x48xf32>
    %55 = arith.maximumf %53, %54 : vector<96x48xf32>
    %56 = vector.extract_strided_slice %55 {offsets = [0, 0], sizes = [64, 48], strides = [1, 1]} : vector<96x48xf32> to vector<64x48xf32>
    %c0_40 = arith.constant 0 : index
    %c0_41 = arith.constant 0 : index
    %c0_42 = arith.constant 0 : index
    %57 = vector.load %arg5[%c0_40, %c0_41, %c0_42] : memref<5x48x32xf32, #tpu.memory_space<vmem>>, vector<1x48x32xf32>
    %58 = vector.shape_cast %57 : vector<1x48x32xf32> to vector<48x32xf32>
    %cst_43 = arith.constant dense<0.000000e+00> : vector<64x32xf32>
    %59 = tpu.matmul %56, %58, %cst_43 {dimension_numbers = #tpu.dot_dimension_numbers<[1], [0], [0], [1], [0, 0, 1, 1], [], []>} : vector<64x48xf32>, vector<48x32xf32>, vector<64x32xf32> -> vector<64x32xf32>
    %c0_44 = arith.constant 0 : index
    %c0_45 = arith.constant 0 : index
    %c0_46 = arith.constant 0 : index
    %60 = vector.load %arg6[%c0_44, %c0_45, %c0_46] : memref<5x48x32xf32, #tpu.memory_space<vmem>>, vector<1x48x32xf32>
    %61 = vector.shape_cast %60 : vector<1x48x32xf32> to vector<48x32xf32>
    %cst_47 = arith.constant dense<0.000000e+00> : vector<64x32xf32>
    %62 = tpu.matmul %56, %61, %cst_47 {dimension_numbers = #tpu.dot_dimension_numbers<[1], [0], [0], [1], [0, 0, 1, 1], [], []>} : vector<64x48xf32>, vector<48x32xf32>, vector<64x32xf32> -> vector<64x32xf32>
    %63 = vector.extract_strided_slice %55 {offsets = [8, 0], sizes = [64, 48], strides = [1, 1]} : vector<96x48xf32> to vector<64x48xf32>
    %c1_48 = arith.constant 1 : index
    %c0_49 = arith.constant 0 : index
    %c0_50 = arith.constant 0 : index
    %64 = vector.load %arg5[%c1_48, %c0_49, %c0_50] : memref<5x48x32xf32, #tpu.memory_space<vmem>>, vector<1x48x32xf32>
    %65 = vector.shape_cast %64 : vector<1x48x32xf32> to vector<48x32xf32>
    %cst_51 = arith.constant dense<0.000000e+00> : vector<64x32xf32>
    %66 = tpu.matmul %63, %65, %cst_51 {dimension_numbers = #tpu.dot_dimension_numbers<[1], [0], [0], [1], [0, 0, 1, 1], [], []>} : vector<64x48xf32>, vector<48x32xf32>, vector<64x32xf32> -> vector<64x32xf32>
    %c1_52 = arith.constant 1 : index
    %c0_53 = arith.constant 0 : index
    %c0_54 = arith.constant 0 : index
    %67 = vector.load %arg6[%c1_52, %c0_53, %c0_54] : memref<5x48x32xf32, #tpu.memory_space<vmem>>, vector<1x48x32xf32>
    %68 = vector.shape_cast %67 : vector<1x48x32xf32> to vector<48x32xf32>
    %cst_55 = arith.constant dense<0.000000e+00> : vector<64x32xf32>
    %69 = tpu.matmul %63, %68, %cst_55 {dimension_numbers = #tpu.dot_dimension_numbers<[1], [0], [0], [1], [0, 0, 1, 1], [], []>} : vector<64x48xf32>, vector<48x32xf32>, vector<64x32xf32> -> vector<64x32xf32>
    %70 = arith.addf %59, %66 : vector<64x32xf32>
    %71 = arith.addf %62, %69 : vector<64x32xf32>
    %72 = vector.extract_strided_slice %55 {offsets = [16, 0], sizes = [64, 48], strides = [1, 1]} : vector<96x48xf32> to vector<64x48xf32>
    %c2_56 = arith.constant 2 : index
    %c0_57 = arith.constant 0 : index
    %c0_58 = arith.constant 0 : index
    %73 = vector.load %arg5[%c2_56, %c0_57, %c0_58] : memref<5x48x32xf32, #tpu.memory_space<vmem>>, vector<1x48x32xf32>
    %74 = vector.shape_cast %73 : vector<1x48x32xf32> to vector<48x32xf32>
    %cst_59 = arith.constant dense<0.000000e+00> : vector<64x32xf32>
    %75 = tpu.matmul %72, %74, %cst_59 {dimension_numbers = #tpu.dot_dimension_numbers<[1], [0], [0], [1], [0, 0, 1, 1], [], []>} : vector<64x48xf32>, vector<48x32xf32>, vector<64x32xf32> -> vector<64x32xf32>
    %c2_60 = arith.constant 2 : index
    %c0_61 = arith.constant 0 : index
    %c0_62 = arith.constant 0 : index
    %76 = vector.load %arg6[%c2_60, %c0_61, %c0_62] : memref<5x48x32xf32, #tpu.memory_space<vmem>>, vector<1x48x32xf32>
    %77 = vector.shape_cast %76 : vector<1x48x32xf32> to vector<48x32xf32>
    %cst_63 = arith.constant dense<0.000000e+00> : vector<64x32xf32>
    %78 = tpu.matmul %72, %77, %cst_63 {dimension_numbers = #tpu.dot_dimension_numbers<[1], [0], [0], [1], [0, 0, 1, 1], [], []>} : vector<64x48xf32>, vector<48x32xf32>, vector<64x32xf32> -> vector<64x32xf32>
    %79 = arith.addf %70, %75 : vector<64x32xf32>
    %80 = arith.addf %71, %78 : vector<64x32xf32>
    %81 = vector.extract_strided_slice %55 {offsets = [24, 0], sizes = [64, 48], strides = [1, 1]} : vector<96x48xf32> to vector<64x48xf32>
    %c3_64 = arith.constant 3 : index
    %c0_65 = arith.constant 0 : index
    %c0_66 = arith.constant 0 : index
    %82 = vector.load %arg5[%c3_64, %c0_65, %c0_66] : memref<5x48x32xf32, #tpu.memory_space<vmem>>, vector<1x48x32xf32>
    %83 = vector.shape_cast %82 : vector<1x48x32xf32> to vector<48x32xf32>
    %cst_67 = arith.constant dense<0.000000e+00> : vector<64x32xf32>
    %84 = tpu.matmul %81, %83, %cst_67 {dimension_numbers = #tpu.dot_dimension_numbers<[1], [0], [0], [1], [0, 0, 1, 1], [], []>} : vector<64x48xf32>, vector<48x32xf32>, vector<64x32xf32> -> vector<64x32xf32>
    %c3_68 = arith.constant 3 : index
    %c0_69 = arith.constant 0 : index
    %c0_70 = arith.constant 0 : index
    %85 = vector.load %arg6[%c3_68, %c0_69, %c0_70] : memref<5x48x32xf32, #tpu.memory_space<vmem>>, vector<1x48x32xf32>
    %86 = vector.shape_cast %85 : vector<1x48x32xf32> to vector<48x32xf32>
    %cst_71 = arith.constant dense<0.000000e+00> : vector<64x32xf32>
    %87 = tpu.matmul %81, %86, %cst_71 {dimension_numbers = #tpu.dot_dimension_numbers<[1], [0], [0], [1], [0, 0, 1, 1], [], []>} : vector<64x48xf32>, vector<48x32xf32>, vector<64x32xf32> -> vector<64x32xf32>
    %88 = arith.addf %79, %84 : vector<64x32xf32>
    %89 = arith.addf %80, %87 : vector<64x32xf32>
    %90 = vector.extract_strided_slice %55 {offsets = [32, 0], sizes = [64, 48], strides = [1, 1]} : vector<96x48xf32> to vector<64x48xf32>
    %c4_72 = arith.constant 4 : index
    %c0_73 = arith.constant 0 : index
    %c0_74 = arith.constant 0 : index
    %91 = vector.load %arg5[%c4_72, %c0_73, %c0_74] : memref<5x48x32xf32, #tpu.memory_space<vmem>>, vector<1x48x32xf32>
    %92 = vector.shape_cast %91 : vector<1x48x32xf32> to vector<48x32xf32>
    %cst_75 = arith.constant dense<0.000000e+00> : vector<64x32xf32>
    %93 = tpu.matmul %90, %92, %cst_75 {dimension_numbers = #tpu.dot_dimension_numbers<[1], [0], [0], [1], [0, 0, 1, 1], [], []>} : vector<64x48xf32>, vector<48x32xf32>, vector<64x32xf32> -> vector<64x32xf32>
    %c4_76 = arith.constant 4 : index
    %c0_77 = arith.constant 0 : index
    %c0_78 = arith.constant 0 : index
    %94 = vector.load %arg6[%c4_76, %c0_77, %c0_78] : memref<5x48x32xf32, #tpu.memory_space<vmem>>, vector<1x48x32xf32>
    %95 = vector.shape_cast %94 : vector<1x48x32xf32> to vector<48x32xf32>
    %cst_79 = arith.constant dense<0.000000e+00> : vector<64x32xf32>
    %96 = tpu.matmul %90, %95, %cst_79 {dimension_numbers = #tpu.dot_dimension_numbers<[1], [0], [0], [1], [0, 0, 1, 1], [], []>} : vector<64x48xf32>, vector<48x32xf32>, vector<64x32xf32> -> vector<64x32xf32>
    %97 = arith.addf %88, %93 : vector<64x32xf32>
    %98 = arith.addf %89, %96 : vector<64x32xf32>
    %99 = arith.maximumf %97, %98 : vector<64x32xf32>
    %100 = vector.shape_cast %99 : vector<64x32xf32> to vector<4x16x32xf32>
    %101 = vector.extract_strided_slice %100 {offsets = [0, 0, 0], sizes = [4, 8, 32], strides = [1, 1, 1]} : vector<4x16x32xf32> to vector<4x8x32xf32>
    %102 = vector.extract_strided_slice %100 {offsets = [0, 8, 0], sizes = [4, 8, 32], strides = [1, 1, 1]} : vector<4x16x32xf32> to vector<4x8x32xf32>
    %103 = arith.maximumf %101, %102 : vector<4x8x32xf32>
    %104 = vector.shape_cast %103 : vector<4x8x32xf32> to vector<32x32xf32>
    %c0_80 = arith.constant 0 : index
    %c0_81 = arith.constant 0 : index
    %105 = vector.load %arg7[%c0_80, %c0_81] : memref<1x32xf32, #tpu.memory_space<vmem>>, vector<1x32xf32>
    %106 = vector.broadcast %105 : vector<1x32xf32> to vector<32x32xf32>
    %107 = arith.addf %104, %106 : vector<32x32xf32>
    %cst_82 = arith.constant 0.000000e+00 : f32
    %108 = vector.broadcast %cst_82 : f32 to vector<32x32xf32>
    %109 = arith.maximumf %107, %108 : vector<32x32xf32>
    %110 = vector.extract_strided_slice %109 {offsets = [0, 0], sizes = [8, 32], strides = [1, 1]} : vector<32x32xf32> to vector<8x32xf32>
    %c0_83 = arith.constant 0 : index
    %c0_84 = arith.constant 0 : index
    %c0_85 = arith.constant 0 : index
    %111 = vector.load %arg8[%c0_83, %c0_84, %c0_85] : memref<4x32x32xf32, #tpu.memory_space<vmem>>, vector<1x32x32xf32>
    %112 = vector.shape_cast %111 : vector<1x32x32xf32> to vector<32x32xf32>
    %cst_86 = arith.constant dense<0.000000e+00> : vector<8x32xf32>
    %113 = tpu.matmul %110, %112, %cst_86 {dimension_numbers = #tpu.dot_dimension_numbers<[1], [0], [0], [1], [0, 0, 1, 1], [], []>} : vector<8x32xf32>, vector<32x32xf32>, vector<8x32xf32> -> vector<8x32xf32>
    %114 = vector.extract_strided_slice %109 {offsets = [8, 0], sizes = [8, 32], strides = [1, 1]} : vector<32x32xf32> to vector<8x32xf32>
    %c1_87 = arith.constant 1 : index
    %c0_88 = arith.constant 0 : index
    %c0_89 = arith.constant 0 : index
    %115 = vector.load %arg8[%c1_87, %c0_88, %c0_89] : memref<4x32x32xf32, #tpu.memory_space<vmem>>, vector<1x32x32xf32>
    %116 = vector.shape_cast %115 : vector<1x32x32xf32> to vector<32x32xf32>
    %cst_90 = arith.constant dense<0.000000e+00> : vector<8x32xf32>
    %117 = tpu.matmul %114, %116, %cst_90 {dimension_numbers = #tpu.dot_dimension_numbers<[1], [0], [0], [1], [0, 0, 1, 1], [], []>} : vector<8x32xf32>, vector<32x32xf32>, vector<8x32xf32> -> vector<8x32xf32>
    %118 = arith.addf %113, %117 : vector<8x32xf32>
    %119 = vector.extract_strided_slice %109 {offsets = [16, 0], sizes = [8, 32], strides = [1, 1]} : vector<32x32xf32> to vector<8x32xf32>
    %c2_91 = arith.constant 2 : index
    %c0_92 = arith.constant 0 : index
    %c0_93 = arith.constant 0 : index
    %120 = vector.load %arg8[%c2_91, %c0_92, %c0_93] : memref<4x32x32xf32, #tpu.memory_space<vmem>>, vector<1x32x32xf32>
    %121 = vector.shape_cast %120 : vector<1x32x32xf32> to vector<32x32xf32>
    %cst_94 = arith.constant dense<0.000000e+00> : vector<8x32xf32>
    %122 = tpu.matmul %119, %121, %cst_94 {dimension_numbers = #tpu.dot_dimension_numbers<[1], [0], [0], [1], [0, 0, 1, 1], [], []>} : vector<8x32xf32>, vector<32x32xf32>, vector<8x32xf32> -> vector<8x32xf32>
    %123 = arith.addf %118, %122 : vector<8x32xf32>
    %124 = vector.extract_strided_slice %109 {offsets = [24, 0], sizes = [8, 32], strides = [1, 1]} : vector<32x32xf32> to vector<8x32xf32>
    %c3_95 = arith.constant 3 : index
    %c0_96 = arith.constant 0 : index
    %c0_97 = arith.constant 0 : index
    %125 = vector.load %arg8[%c3_95, %c0_96, %c0_97] : memref<4x32x32xf32, #tpu.memory_space<vmem>>, vector<1x32x32xf32>
    %126 = vector.shape_cast %125 : vector<1x32x32xf32> to vector<32x32xf32>
    %cst_98 = arith.constant dense<0.000000e+00> : vector<8x32xf32>
    %127 = tpu.matmul %124, %126, %cst_98 {dimension_numbers = #tpu.dot_dimension_numbers<[1], [0], [0], [1], [0, 0, 1, 1], [], []>} : vector<8x32xf32>, vector<32x32xf32>, vector<8x32xf32> -> vector<8x32xf32>
    %128 = arith.addf %123, %127 : vector<8x32xf32>
    %c0_99 = arith.constant 0 : index
    %c0_100 = arith.constant 0 : index
    %129 = vector.load %arg9[%c0_99, %c0_100] : memref<1x32xf32, #tpu.memory_space<vmem>>, vector<1x32xf32>
    %130 = vector.broadcast %129 : vector<1x32xf32> to vector<8x32xf32>
    %131 = arith.addf %128, %130 : vector<8x32xf32>
    %cst_101 = arith.constant 0.000000e+00 : f32
    %132 = vector.broadcast %cst_101 : f32 to vector<8x32xf32>
    %133 = arith.maximumf %131, %132 : vector<8x32xf32>
    %c0_102 = arith.constant 0 : index
    %c0_103 = arith.constant 0 : index
    %134 = vector.load %arg10[%c0_102, %c0_103] : memref<32x10xf32, #tpu.memory_space<vmem>>, vector<32x10xf32>
    %cst_104 = arith.constant dense<0.000000e+00> : vector<8x10xf32>
    %135 = tpu.matmul %133, %134, %cst_104 {dimension_numbers = #tpu.dot_dimension_numbers<[1], [0], [0], [1], [0, 0, 1, 1], [], []>} : vector<8x32xf32>, vector<32x10xf32>, vector<8x10xf32> -> vector<8x10xf32>
    %c0_105 = arith.constant 0 : index
    %c0_106 = arith.constant 0 : index
    %136 = vector.load %arg11[%c0_105, %c0_106] : memref<1x10xf32, #tpu.memory_space<vmem>>, vector<1x10xf32>
    %137 = vector.broadcast %136 : vector<1x10xf32> to vector<8x10xf32>
    %138 = arith.addf %135, %137 : vector<8x10xf32>
    %c0_107 = arith.constant 0 : index
    %c0_108 = arith.constant 0 : index
    %139 = vector.load %arg12[%c0_107, %c0_108] : memref<8x10xf32, #tpu.memory_space<vmem>>, vector<8x10xf32>
    tpu.vector_store %arg12[%c0_107, %c0_108], %138 {strides = array<i32>} : memref<8x10xf32, #tpu.memory_space<vmem>>, vector<8x10xf32>,
    return
  }
  func.func @transform_0(%arg0: i32) -> (i32, i32, i32) {
    %c0_i32 = arith.constant 0 : i32
    %c0_i32_0 = arith.constant 0 : i32
    %c0_i32_1 = arith.constant 0 : i32
    return %c0_i32, %arg0, %c0_i32_0 : i32, i32, i32
  }
  func.func @transform_1(%arg0: i32) -> (i32, i32, i32) {
    %c0_i32 = arith.constant 0 : i32
    %c0_i32_0 = arith.constant 0 : i32
    %c0_i32_1 = arith.constant 0 : i32
    %c0_i32_2 = arith.constant 0 : i32
    return %c0_i32, %c0_i32_0, %c0_i32_1 : i32, i32, i32
  }
  func.func @transform_2(%arg0: i32) -> (i32, i32, i32) {
    %c0_i32 = arith.constant 0 : i32
    %c0_i32_0 = arith.constant 0 : i32
    %c0_i32_1 = arith.constant 0 : i32
    %c0_i32_2 = arith.constant 0 : i32
    return %c0_i32, %c0_i32_0, %c0_i32_1 : i32, i32, i32
  }
  func.func @transform_3(%arg0: i32) -> (i32, i32) {
    %c0_i32 = arith.constant 0 : i32
    %c0_i32_0 = arith.constant 0 : i32
    %c0_i32_1 = arith.constant 0 : i32
    return %c0_i32, %c0_i32_0 : i32, i32
  }
  func.func @transform_4(%arg0: i32) -> (i32, i32, i32) {
    %c0_i32 = arith.constant 0 : i32
    %c0_i32_0 = arith.constant 0 : i32
    %c0_i32_1 = arith.constant 0 : i32
    %c0_i32_2 = arith.constant 0 : i32
    return %c0_i32, %c0_i32_0, %c0_i32_1 : i32, i32, i32
  }
  func.func @transform_5(%arg0: i32) -> (i32, i32, i32) {
    %c0_i32 = arith.constant 0 : i32
    %c0_i32_0 = arith.constant 0 : i32
    %c0_i32_1 = arith.constant 0 : i32
    %c0_i32_2 = arith.constant 0 : i32
    return %c0_i32, %c0_i32_0, %c0_i32_1 : i32, i32, i32
  }
  func.func @transform_6(%arg0: i32) -> (i32, i32) {
    %c0_i32 = arith.constant 0 : i32
    %c0_i32_0 = arith.constant 0 : i32
    %c0_i32_1 = arith.constant 0 : i32
    return %c0_i32, %c0_i32_0 : i32, i32
  }
  func.func @transform_7(%arg0: i32) -> (i32, i32, i32) {
    %c0_i32 = arith.constant 0 : i32
    %c0_i32_0 = arith.constant 0 : i32
    %c0_i32_1 = arith.constant 0 : i32
    %c0_i32_2 = arith.constant 0 : i32
    return %c0_i32, %c0_i32_0, %c0_i32_1 : i32, i32, i32
  }
  func.func @transform_8(%arg0: i32) -> (i32, i32) {
    %c0_i32 = arith.constant 0 : i32
    %c0_i32_0 = arith.constant 0 : i32
    %c0_i32_1 = arith.constant 0 : i32
    return %c0_i32, %c0_i32_0 : i32, i32
  }
  func.func @transform_9(%arg0: i32) -> (i32, i32) {
    %c0_i32 = arith.constant 0 : i32
    %c0_i32_0 = arith.constant 0 : i32
    %c0_i32_1 = arith.constant 0 : i32
    return %c0_i32, %c0_i32_0 : i32, i32
  }
  func.func @transform_10(%arg0: i32) -> (i32, i32) {
    %c0_i32 = arith.constant 0 : i32
    %c0_i32_0 = arith.constant 0 : i32
    %c0_i32_1 = arith.constant 0 : i32
    return %c0_i32, %c0_i32_0 : i32, i32
  }
  func.func @transform_11(%arg0: i32) -> (i32, i32) {
    %c0_i32 = arith.constant 0 : i32
    %c0_i32_0 = arith.constant 0 : i32
    return %arg0, %c0_i32 : i32, i32
  }
}

</mosaic_0001>

<llo_original>
// kernel: l0_lenet5_forward.1
$region0: #{l0_lenet5_forward.1}
  #allocation0 [shape = 'u32[]', space=smem, size = 0x4, offset = 0x4, fixed_abs, tag = 'smem constant byte address 0x4 - core index']
  #allocation1 [shape = 'u32[72,128]{1,0:T(1,128)}', space=vmem, size = 0x9000, scoped, tag = 'internal scratch']
  %s0 = inlined_call_operand.vmem [shape: f32[28,16,28], index: 0, kind: input, shape index: {}]
  %s1 = inlined_call_operand.vmem [shape: f32[5,28,48], index: 1, kind: input, shape index: {}]
  %s2 = inlined_call_operand.vmem [shape: f32[5,28,48], index: 2, kind: input, shape index: {}]
  %s3 = inlined_call_operand.vmem [shape: f32[1,48], index: 3, kind: input, shape index: {}]
  %s4 = inlined_call_operand.vmem [shape: f32[5,48,32], index: 4, kind: input, shape index: {}]
  %s5 = inlined_call_operand.vmem [shape: f32[5,48,32], index: 5, kind: input, shape index: {}]
  %s6 = inlined_call_operand.vmem [shape: f32[1,32], index: 6, kind: input, shape index: {}]
  %s7 = inlined_call_operand.vmem [shape: f32[4,32,32], index: 7, kind: input, shape index: {}]
  %s8 = inlined_call_operand.vmem [shape: f32[1,32], index: 8, kind: input, shape index: {}]
  %s9 = inlined_call_operand.vmem [shape: f32[32,10], index: 9, kind: input, shape index: {}]
  %s10 = inlined_call_operand.vmem [shape: f32[1,10], index: 10, kind: input, shape index: {}]
  %s11 = inlined_call_operand.hbm [shape: f32[16,10], index: 11, kind: output, shape index: {}]
  %s12 = sld [smem:[#allocation0]]
  $region115: #{l0_lenet5_forward.1} parent=0
    _
  %s14 = ssub.s32 1, %s12
  %s15 = scalar_select 0, %s14, %s12
  $region1: #{l0_lenet5_forward.1} parent=0
    #allocation2 [shape = 'u8[229376]{0}', space=vmem, size = 0x38000, scoped, tag = 'input window, operand 0']
    #allocation3 [shape = 'u8[8192]{0}', space=vmem, size = 0x2000, scoped, tag = 'output window, operand 0']
    #allocation4 [shape = 's32[2]{0}', space=sflag, size = 0x8, scoped, tag = 'scoped memory for l0_lenet5_forward.1']
    %16 = vsyncpa [#allocation4], 0
    %s17 = scalar_lea.sflag [#allocation4], 1
    %18 = vsyncpa %s17, 0
    loop: start=0, step=1, limit=4
    $region2: #{l0_lenet5_forward.1} parent=1 // loop_pre_header
      _
    $region3: #{l0_lenet5_forward.1} parent=1 // loop_header
      %s20 = sphi 0, %s24
      %p21 = scmp.ge.s32.totalorder %s20, 4
      %s30 = sphi 0, %s32
      %s33 = sphi 0, %s30
      %s34 = sphi 0, %s33
      %s50 = sphi 0, %s34
      %s54 = sphi 0, %s54
      %s56 = sphi 0, %s54
      %s57 = sphi 0, %s56
      %s71 = sphi 0, %s57
      %s75 = sphi 0, %s75
      %s77 = sphi 0, %s75
      %s78 = sphi 0, %s77
      %s92 = sphi 0, %s78
      %s96 = sphi 0, %s96
      %s98 = sphi 0, %s96
      %s99 = sphi 0, %s98
      %s113 = sphi 0, %s99
      %s117 = sphi 0, %s117
      %s119 = sphi 0, %s117
      %s120 = sphi 0, %s119
      %s134 = sphi 0, %s120
      %s138 = sphi 0, %s138
      %s140 = sphi 0, %s138
      %s141 = sphi 0, %s140
      %s155 = sphi 0, %s141
      %s159 = sphi 0, %s159
      %s161 = sphi 0, %s159
      %s162 = sphi 0, %s161
      %s176 = sphi 0, %s162
      %s180 = sphi 0, %s180
      %s182 = sphi 0, %s180
      %s183 = sphi 0, %s182
      %s197 = sphi 0, %s183
      %s201 = sphi 0, %s201
      %s203 = sphi 0, %s201
      %s204 = sphi 0, %s203
      %s218 = sphi 0, %s204
      %s222 = sphi 0, %s222
      %s224 = sphi 0, %s222
      %s225 = sphi 0, %s224
      %s239 = sphi 0, %s225
      %s243 = sphi 0, %s243
      %s245 = sphi 0, %s243
      %s246 = sphi 0, %s245
      %s260 = sphi 0, %s246
      %s266 = sphi 0, %s268
      %s269 = sphi 0, %s266
      %s270 = sphi 0, %s269
      %s286 = sphi 0, %s270
    $region4: #{l0_lenet5_forward.1} parent=1 // loop_header_branch
      %23 = sbr.rel (%p21) target = $region8
    $region5: #{l0_lenet5_forward.1} parent=1 // loop_body
      %s25 = ssub.s32 %s20, 1
      %s26 = ssub.s32 %s20, 2
      %s27 = sadd.s32 %s20, 1
      %s28 = ssub.s32 %s20, %s27
      %p29 = scmp.eq.s32.totalorder %s28, 0
      %s31 = sadd.s32 %s30, 1
      %s32 = scalar_select %p29, %s30, %s31
      %p35 = pneg %p29
      %p36 = scmp.eq.s32.totalorder %s20, 1
      %p37 = por %p35, %p36
      %p38 = scmp.ne.s32.totalorder %s30, %s33
      %p39 = scmp.eq.s32.totalorder %s20, 0
      %p40 = por %p38, %p39
      %p41 = scmp.ne.s32.totalorder %s30, %s33
      %p42 = scmp.eq.s32.totalorder %s25, 1
      %p43 = por %p41, %p42
      %p44 = scmp.ne.s32.totalorder %s33, %s34
      %p45 = scmp.eq.s32.totalorder %s25, 0
      %p46 = por %p44, %p45
      %p47 = scmp.ne.s32.totalorder %s33, %s34
      %p48 = scmp.eq.s32.totalorder %s26, 1
      %p49 = por %p47, %p48
      %p51 = scmp.ne.s32.totalorder %s34, %s50
      %p52 = scmp.eq.s32.totalorder %s26, 0
      %p53 = por %p51, %p52
      %s55 = sadd.s32 %s54, 1
      %p58 = scmp.eq.s32.totalorder %s20, 1
      %p59 = scmp.ne.s32.totalorder %s54, %s56
      %p60 = scmp.eq.s32.totalorder %s20, 0
      %p61 = por %p59, %p60
      %p62 = scmp.ne.s32.totalorder %s54, %s56
      %p63 = scmp.eq.s32.totalorder %s25, 1
      %p64 = por %p62, %p63
      %p65 = scmp.ne.s32.totalorder %s56, %s57
      %p66 = scmp.eq.s32.totalorder %s25, 0
      %p67 = por %p65, %p66
      %p68 = scmp.ne.s32.totalorder %s56, %s57
      %p69 = scmp.eq.s32.totalorder %s26, 1
      %p70 = por %p68, %p69
      %p72 = scmp.ne.s32.totalorder %s57, %s71
      %p73 = scmp.eq.s32.totalorder %s26, 0
      %p74 = por %p72, %p73
      %s76 = sadd.s32 %s75, 1
      %p79 = scmp.eq.s32.totalorder %s20, 1
      %p80 = scmp.ne.s32.totalorder %s75, %s77
      %p81 = scmp.eq.s32.totalorder %s20, 0
      %p82 = por %p80, %p81
      %p83 = scmp.ne.s32.totalorder %s75, %s77
      %p84 = scmp.eq.s32.totalorder %s25, 1
      %p85 = por %p83, %p84
      %p86 = scmp.ne.s32.totalorder %s77, %s78
      %p87 = scmp.eq.s32.totalorder %s25, 0
      %p88 = por %p86, %p87
      %p89 = scmp.ne.s32.totalorder %s77, %s78
      %p90 = scmp.eq.s32.totalorder %s26, 1
      %p91 = por %p89, %p90
      %p93 = scmp.ne.s32.totalorder %s78, %s92
      %p94 = scmp.eq.s32.totalorder %s26, 0
      %p95 = por %p93, %p94
      %s97 = sadd.s32 %s96, 1
      %p100 = scmp.eq.s32.totalorder %s20, 1
      %p101 = scmp.ne.s32.totalorder %s96, %s98
      %p102 = scmp.eq.s32.totalorder %s20, 0
      %p103 = por %p101, %p102
      %p104 = scmp.ne.s32.totalorder %s96, %s98
      %p105 = scmp.eq.s32.totalorder %s25, 1
      %p106 = por %p104, %p105
      %p107 = scmp.ne.s32.totalorder %s98, %s99
      %p108 = scmp.eq.s32.totalorder %s25, 0
      %p109 = por %p107, %p108
      %p110 = scmp.ne.s32.totalorder %s98, %s99
      %p111 = scmp.eq.s32.totalorder %s26, 1
      %p112 = por %p110, %p111
      %p114 = scmp.ne.s32.totalorder %s99, %s113
      %p115 = scmp.eq.s32.totalorder %s26, 0
      %p116 = por %p114, %p115
      %s118 = sadd.s32 %s117, 1
      %p121 = scmp.eq.s32.totalorder %s20, 1
      %p122 = scmp.ne.s32.totalorder %s117, %s119
      %p123 = scmp.eq.s32.totalorder %s20, 0
      %p124 = por %p122, %p123
      %p125 = scmp.ne.s32.totalorder %s117, %s119
      %p126 = scmp.eq.s32.totalorder %s25, 1
      %p127 = por %p125, %p126
      %p128 = scmp.ne.s32.totalorder %s119, %s120
      %p129 = scmp.eq.s32.totalorder %s25, 0
      %p130 = por %p128, %p129
      %p131 = scmp.ne.s32.totalorder %s119, %s120
      %p132 = scmp.eq.s32.totalorder %s26, 1
      %p133 = por %p131, %p132
      %p135 = scmp.ne.s32.totalorder %s120, %s134
      %p136 = scmp.eq.s32.totalorder %s26, 0
      %p137 = por %p135, %p136
      %s139 = sadd.s32 %s138, 1
      %p142 = scmp.eq.s32.totalorder %s20, 1
      %p143 = scmp.ne.s32.totalorder %s138, %s140
      %p144 = scmp.eq.s32.totalorder %s20, 0
      %p145 = por %p143, %p144
      %p146 = scmp.ne.s32.totalorder %s138, %s140
      %p147 = scmp.eq.s32.totalorder %s25, 1
      %p148 = por %p146, %p147
      %p149 = scmp.ne.s32.totalorder %s140, %s141
      %p150 = scmp.eq.s32.totalorder %s25, 0
      %p151 = por %p149, %p150
      %p152 = scmp.ne.s32.totalorder %s140, %s141
      %p153 = scmp.eq.s32.totalorder %s26, 1
      %p154 = por %p152, %p153
      %p156 = scmp.ne.s32.totalorder %s141, %s155
      %p157 = scmp.eq.s32.totalorder %s26, 0
      %p158 = por %p156, %p157
      %s160 = sadd.s32 %s159, 1
      %p163 = scmp.eq.s32.totalorder %s20, 1
      %p164 = scmp.ne.s32.totalorder %s159, %s161
      %p165 = scmp.eq.s32.totalorder %s20, 0
      %p166 = por %p164, %p165
      %p167 = scmp.ne.s32.totalorder %s159, %s161
      %p168 = scmp.eq.s32.totalorder %s25, 1
      %p169 = por %p167, %p168
      %p170 = scmp.ne.s32.totalorder %s161, %s162
      %p171 = scmp.eq.s32.totalorder %s25, 0
      %p172 = por %p170, %p171
      %p173 = scmp.ne.s32.totalorder %s161, %s162
      %p174 = scmp.eq.s32.totalorder %s26, 1
      %p175 = por %p173, %p174
      %p177 = scmp.ne.s32.totalorder %s162, %s176
      %p178 = scmp.eq.s32.totalorder %s26, 0
      %p179 = por %p177, %p178
      %s181 = sadd.s32 %s180, 1
      %p184 = scmp.eq.s32.totalorder %s20, 1
      %p185 = scmp.ne.s32.totalorder %s180, %s182
      %p186 = scmp.eq.s32.totalorder %s20, 0
      %p187 = por %p185, %p186
      %p188 = scmp.ne.s32.totalorder %s180, %s182
      %p189 = scmp.eq.s32.totalorder %s25, 1
      %p190 = por %p188, %p189
      %p191 = scmp.ne.s32.totalorder %s182, %s183
      %p192 = scmp.eq.s32.totalorder %s25, 0
      %p193 = por %p191, %p192
      %p194 = scmp.ne.s32.totalorder %s182, %s183
      %p195 = scmp.eq.s32.totalorder %s26, 1
      %p196 = por %p194, %p195
      %p198 = scmp.ne.s32.totalorder %s183, %s197
      %p199 = scmp.eq.s32.totalorder %s26, 0
      %p200 = por %p198, %p199
      %s202 = sadd.s32 %s201, 1
      %p205 = scmp.eq.s32.totalorder %s20, 1
      %p206 = scmp.ne.s32.totalorder %s201, %s203
      %p207 = scmp.eq.s32.totalorder %s20, 0
      %p208 = por %p206, %p207
      %p209 = scmp.ne.s32.totalorder %s201, %s203
      %p210 = scmp.eq.s32.totalorder %s25, 1
      %p211 = por %p209, %p210
      %p212 = scmp.ne.s32.totalorder %s203, %s204
      %p213 = scmp.eq.s32.totalorder %s25, 0
      %p214 = por %p212, %p213
      %p215 = scmp.ne.s32.totalorder %s203, %s204
      %p216 = scmp.eq.s32.totalorder %s26, 1
      %p217 = por %p215, %p216
      %p219 = scmp.ne.s32.totalorder %s204, %s218
      %p220 = scmp.eq.s32.totalorder %s26, 0
      %p221 = por %p219, %p220
      %s223 = sadd.s32 %s222, 1
      %p226 = scmp.eq.s32.totalorder %s20, 1
      %p227 = scmp.ne.s32.totalorder %s222, %s224
      %p228 = scmp.eq.s32.totalorder %s20, 0
      %p229 = por %p227, %p228
      %p230 = scmp.ne.s32.totalorder %s222, %s224
      %p231 = scmp.eq.s32.totalorder %s25, 1
      %p232 = por %p230, %p231
      %p233 = scmp.ne.s32.totalorder %s224, %s225
      %p234 = scmp.eq.s32.totalorder %s25, 0
      %p235 = por %p233, %p234
      %p236 = scmp.ne.s32.totalorder %s224, %s225
      %p237 = scmp.eq.s32.totalorder %s26, 1
      %p238 = por %p236, %p237
      %p240 = scmp.ne.s32.totalorder %s225, %s239
      %p241 = scmp.eq.s32.totalorder %s26, 0
      %p242 = por %p240, %p241
      %s244 = sadd.s32 %s243, 1
      %p247 = scmp.eq.s32.totalorder %s20, 1
      %p248 = scmp.ne.s32.totalorder %s243, %s245
      %p249 = scmp.eq.s32.totalorder %s20, 0
      %p250 = por %p248, %p249
      %p251 = scmp.ne.s32.totalorder %s243, %s245
      %p252 = scmp.eq.s32.totalorder %s25, 1
      %p253 = por %p251, %p252
      %p254 = scmp.ne.s32.totalorder %s245, %s246
      %p255 = scmp.eq.s32.totalorder %s25, 0
      %p256 = por %p254, %p255
      %p257 = scmp.ne.s32.totalorder %s245, %s246
      %p258 = scmp.eq.s32.totalorder %s26, 1
      %p259 = por %p257, %p258
      %p261 = scmp.ne.s32.totalorder %s246, %s260
      %p262 = scmp.eq.s32.totalorder %s26, 0
      %p263 = por %p261, %p262
      %s264 = ssub.s32 %s20, %s27
      %p265 = scmp.eq.s32.totalorder %s264, 0
      %s267 = sadd.s32 %s266, 1
      %s268 = scalar_select %p265, %s266, %s267
      %p271 = pneg %p265
      %p272 = scmp.eq.s32.totalorder %s20, 1
      %p273 = por %p271, %p272
      %p274 = scmp.ne.s32.totalorder %s266, %s269
      %p275 = scmp.eq.s32.totalorder %s20, 0
      %p276 = por %p274, %p275
      %p277 = scmp.ne.s32.totalorder %s266, %s269
      %p278 = scmp.eq.s32.totalorder %s25, 1
      %p279 = por %p277, %p278
      %p280 = scmp.ne.s32.totalorder %s269, %s270
      %p281 = scmp.eq.s32.totalorder %s25, 0
      %p282 = por %p280, %p281
      %p283 = scmp.ne.s32.totalorder %s269, %s270
      %p284 = scmp.eq.s32.totalorder %s26, 1
      %p285 = por %p283, %p284
      %p287 = scmp.ne.s32.totalorder %s270, %s286
      %p288 = scmp.eq.s32.totalorder %s26, 0
      %p289 = por %p287, %p288
      %p290 = scmp.le.s32.totalorder 1, %s20
      %p291 = scmp.lt.s32.totalorder %s20, 3
      %p292 = pnand %p290, %p291
      %p293 = pneg %p292
      // Predicated region
      $region9: #{l0_lenet5_forward.1} parent=5 // pred_check
        _
      $region10: #{l0_lenet5_forward.1} parent=5 // pred_check_branch
        %295 = sbr.rel (%p292) target = $region12
      $region11: #{l0_lenet5_forward.1} parent=5 // pred_region
        %s296 = ssub.s32 %s20, 1
        // Predicated region
        $region13: #{l0_lenet5_forward.1} parent=11 // pred_check
          %p297 = pneg %p67
        $region14: #{l0_lenet5_forward.1} parent=11 // pred_check_branch
          %299 = sbr.rel (%p297) target = $region16
        $region15: #{l0_lenet5_forward.1} parent=11 // pred_region
          _
        $region16: #{l0_lenet5_forward.1} parent=11 // pred_fallthru
          _
        // Predicated region
        $region17: #{l0_lenet5_forward.1} parent=11 // pred_check
          %p300 = pneg %p88
        $region18: #{l0_lenet5_forward.1} parent=11 // pred_check_branch
          %302 = sbr.rel (%p300) target = $region20
        $region19: #{l0_lenet5_forward.1} parent=11 // pred_region
          _
        $region20: #{l0_lenet5_forward.1} parent=11 // pred_fallthru
          _
        // Predicated region
        $region21: #{l0_lenet5_forward.1} parent=11 // pred_check
          %p303 = pneg %p109
        $region22: #{l0_lenet5_forward.1} parent=11 // pred_check_branch
          %305 = sbr.rel (%p303) target = $region24
        $region23: #{l0_lenet5_forward.1} parent=11 // pred_region
          _
        $region24: #{l0_lenet5_forward.1} parent=11 // pred_fallthru
          _
        // Predicated region
        $region25: #{l0_lenet5_forward.1} parent=11 // pred_check
          %p306 = pneg %p130
        $region26: #{l0_lenet5_forward.1} parent=11 // pred_check_branch
          %308 = sbr.rel (%p306) target = $region28
        $region27: #{l0_lenet5_forward.1} parent=11 // pred_region
          _
        $region28: #{l0_lenet5_forward.1} parent=11 // pred_fallthru
          _
        // Predicated region
        $region29: #{l0_lenet5_forward.1} parent=11 // pred_check
          %p309 = pneg %p151
        $region30: #{l0_lenet5_forward.1} parent=11 // pred_check_branch
          %311 = sbr.rel (%p309) target = $region32
        $region31: #{l0_lenet5_forward.1} parent=11 // pred_region
          _
        $region32: #{l0_lenet5_forward.1} parent=11 // pred_fallthru
          _
        // Predicated region
        $region33: #{l0_lenet5_forward.1} parent=11 // pred_check
          %p312 = pneg %p172
        $region34: #{l0_lenet5_forward.1} parent=11 // pred_check_branch
          %314 = sbr.rel (%p312) target = $region36
        $region35: #{l0_lenet5_forward.1} parent=11 // pred_region
          _
        $region36: #{l0_lenet5_forward.1} parent=11 // pred_fallthru
          _
        // Predicated region
        $region37: #{l0_lenet5_forward.1} parent=11 // pred_check
          %p315 = pneg %p193
        $region38: #{l0_lenet5_forward.1} parent=11 // pred_check_branch
          %317 = sbr.rel (%p315) target = $region40
        $region39: #{l0_lenet5_forward.1} parent=11 // pred_region
          _
        $region40: #{l0_lenet5_forward.1} parent=11 // pred_fallthru
          _
        // Predicated region
        $region41: #{l0_lenet5_forward.1} parent=11 // pred_check
          %p318 = pneg %p214
        $region42: #{l0_lenet5_forward.1} parent=11 // pred_check_branch
          %320 = sbr.rel (%p318) target = $region44
        $region43: #{l0_lenet5_forward.1} parent=11 // pred_region
          _
        $region44: #{l0_lenet5_forward.1} parent=11 // pred_fallthru
          _
        // Predicated region
        $region45: #{l0_lenet5_forward.1} parent=11 // pred_check
          %p321 = pneg %p235
        $region46: #{l0_lenet5_forward.1} parent=11 // pred_check_branch
          %323 = sbr.rel (%p321) target = $region48
        $region47: #{l0_lenet5_forward.1} parent=11 // pred_region
          _
        $region48: #{l0_lenet5_forward.1} parent=11 // pred_fallthru
          _
        // Predicated region
        $region49: #{l0_lenet5_forward.1} parent=11 // pred_check
          %p324 = pneg %p256
        $region50: #{l0_lenet5_forward.1} parent=11 // pred_check_branch
          %326 = sbr.rel (%p324) target = $region52
        $region51: #{l0_lenet5_forward.1} parent=11 // pred_region
          _
        $region52: #{l0_lenet5_forward.1} parent=11 // pred_fallthru
          _
      $region12: #{l0_lenet5_forward.1} parent=5 // pred_fallthru
        _
      %p327 = scmp.lt.s32.totalorder %s20, 2
      // Predicated region
      $region53: #{l0_lenet5_forward.1} parent=5 // pred_check
        %p328 = pneg %p327
      $region54: #{l0_lenet5_forward.1} parent=5 // pred_check_branch
        %330 = sbr.rel (%p328) target = $region56
      $region55: #{l0_lenet5_forward.1} parent=5 // pred_region
        // Predicated region
        $region57: #{l0_lenet5_forward.1} parent=55 // pred_check
          %p331 = pneg %p40
        $region58: #{l0_lenet5_forward.1} parent=55 // pred_check_branch
          %333 = sbr.rel (%p331) target = $region60
        $region59: #{l0_lenet5_forward.1} parent=55 // pred_region
          %s334 = sand.u32 %s30, 1
          %s335 = sand.u32 %s30, 1
          %s336 = smul.addr %s335, 224
          %s337 = scalar_lea.vmem [#allocation2], %s336
          %s338 = smul.addr %s20, 8
          %s339 = scalar_lea.vmem %s0, %s338
          // Predicated region
          $region61: #{l0_lenet5_forward.1} parent=59 // pred_check
            _
          $region62: #{l0_lenet5_forward.1} parent=59 // pred_check_branch
            %341 = sbr.rel (0) target = $region64
          $region63: #{l0_lenet5_forward.1} parent=59 // pred_region
            // Predicated region
            $region65: #{l0_lenet5_forward.1} parent=63 // pred_check
              _
            $region66: #{l0_lenet5_forward.1} parent=63 // pred_check_branch
              %343 = sbr.rel (0) target = $region68
            $region67: #{l0_lenet5_forward.1} parent=63 // pred_region
              // Predicated region
              $region80: #{l0_lenet5_forward.1} parent=67 // pred_check
                _
              $region81: #{l0_lenet5_forward.1} parent=67 // pred_check_branch
                %413 = sbr.rel (0) target = $region83
              $region82: #{l0_lenet5_forward.1} parent=67 // pred_region
                loop: start=0, step=1, limit=1
                $region84: #{l0_lenet5_forward.1} parent=82 // loop_pre_header
                  _
                $region85: #{l0_lenet5_forward.1} parent=82 // loop_header
                  %s415 = sphi 0, %s419
                  %p416 = scmp.ge.s32.totalorder %s415, 1
                  %s420 = sphi %s339, %s339
                  %s421 = sphi %s337, %s337
                $region86: #{l0_lenet5_forward.1} parent=82 // loop_header_branch
                  %418 = sbr.rel (%p416) target = $region90
                $region87: #{l0_lenet5_forward.1} parent=82 // loop_body
                  %v422 = vld [vmem:[%s420] sm:$0xff]
                  %423 = vst [vmem:[%s421] sm:$0xff] %v422
                  %v424 = vld [vmem:[%s420 + $0x10] sm:$0xff]
                  %425 = vst [vmem:[%s421 + $0x8] sm:$0xff] %v424
                  %v426 = vld [vmem:[%s420 + $0x20] sm:$0xff]
                  %427 = vst [vmem:[%s421 + $0x10] sm:$0xff] %v426
                  %v428 = vld [vmem:[%s420 + $0x30] sm:$0xff]
                  %429 = vst [vmem:[%s421 + $0x18] sm:$0xff] %v428
                  %v430 = vld [vmem:[%s420 + $0x40] sm:$0xff]
                  %431 = vst [vmem:[%s421 + $0x20] sm:$0xff] %v430
                  %v432 = vld [vmem:[%s420 + $0x50] sm:$0xff]
                  %433 = vst [vmem:[%s421 + $0x28] sm:$0xff] %v432
                  %v434 = vld [vmem:[%s420 + $0x60] sm:$0xff]
                  %435 = vst [vmem:[%s421 + $0x30] sm:$0xff] %v434
                  %v436 = vld [vmem:[%s420 + $0x70] sm:$0xff]
                  %437 = vst [vmem:[%s421 + $0x38] sm:$0xff] %v436
                  %v438 = vld [vmem:[%s420 + $0x80] sm:$0xff]
                  %439 = vst [vmem:[%s421 + $0x40] sm:$0xff] %v438
                  %v440 = vld [vmem:[%s420 + $0x90] sm:$0xff]
                  %441 = vst [vmem:[%s421 + $0x48] sm:$0xff] %v440
                  %v442 = vld [vmem:[%s420 + $0xa0] sm:$0xff]
                  %443 = vst [vmem:[%s421 + $0x50] sm:$0xff] %v442
                  %v444 = vld [vmem:[%s420 + $0xb0] sm:$0xff]
                  %445 = vst [vmem:[%s421 + $0x58] sm:$0xff] %v444
                  %v446 = vld [vmem:[%s420 + $0xc0] sm:$0xff]
                  %447 = vst [vmem:[%s421 + $0x60] sm:$0xff] %v446
                  %v448 = vld [vmem:[%s420 + $0xd0] sm:$0xff]
                  %449 = vst [vmem:[%s421 + $0x68] sm:$0xff] %v448
                  %v450 = vld [vmem:[%s420 + $0xe0] sm:$0xff]
                  %451 = vst [vmem:[%s421 + $0x70] sm:$0xff] %v450
                  %v452 = vld [vmem:[%s420 + $0xf0] sm:$0xff]
                  %453 = vst [vmem:[%s421 + $0x78] sm:$0xff] %v452
                  %v454 = vld [vmem:[%s420 + $0x100] sm:$0xff]
                  %455 = vst [vmem:[%s421 + $0x80] sm:$0xff] %v454
                  %v456 = vld [vmem:[%s420 + $0x110] sm:$0xff]
                  %457 = vst [vmem:[%s421 + $0x88] sm:$0xff] %v456
                  %v458 = vld [vmem:[%s420 + $0x120] sm:$0xff]
                  %459 = vst [vmem:[%s421 + $0x90] sm:$0xff] %v458
                  %v460 = vld [vmem:[%s420 + $0x130] sm:$0xff]
                  %461 = vst [vmem:[%s421 + $0x98] sm:$0xff] %v460
                  %v462 = vld [vmem:[%s420 + $0x140] sm:$0xff]
                  %463 = vst [vmem:[%s421 + $0xa0] sm:$0xff] %v462
                  %v464 = vld [vmem:[%s420 + $0x150] sm:$0xff]
                  %465 = vst [vmem:[%s421 + $0xa8] sm:$0xff] %v464
                  %v466 = vld [vmem:[%s420 + $0x160] sm:$0xff]
                  %467 = vst [vmem:[%s421 + $0xb0] sm:$0xff] %v466
                  %v468 = vld [vmem:[%s420 + $0x170] sm:$0xff]
                  %469 = vst [vmem:[%s421 + $0xb8] sm:$0xff] %v468
                  %v470 = vld [vmem:[%s420 + $0x180] sm:$0xff]
                  %471 = vst [vmem:[%s421 + $0xc0] sm:$0xff] %v470
                  %v472 = vld [vmem:[%s420 + $0x190] sm:$0xff]
                  %473 = vst [vmem:[%s421 + $0xc8] sm:$0xff] %v472
                  %v474 = vld [vmem:[%s420 + $0x1a0] sm:$0xff]
                  %475 = vst [vmem:[%s421 + $0xd0] sm:$0xff] %v474
                  %v476 = vld [vmem:[%s420 + $0x1b0] sm:$0xff]
                  %477 = vst [vmem:[%s421 + $0xd8] sm:$0xff] %v476
                $region88: #{l0_lenet5_forward.1} parent=82 // loop_footer
                  %s419 = sadd.s32 1, %s415
                $region89: #{l0_lenet5_forward.1} parent=82 // loop_footer_branch
                  %414 = sbr.rel target = $region85
                $region90: #{l0_lenet5_forward.1} parent=82 // loop_exit
                  _
              $region83: #{l0_lenet5_forward.1} parent=67 // pred_fallthru
                _
              // Predicated region
              $region91: #{l0_lenet5_forward.1} parent=67 // pred_check
                _
              $region92: #{l0_lenet5_forward.1} parent=67 // pred_check_branch
                %479 = sbr.rel target = $region94
              $region93: #{l0_lenet5_forward.1} parent=67 // pred_region
                _
              $region94: #{l0_lenet5_forward.1} parent=67 // pred_fallthru
                _
            $region68: #{l0_lenet5_forward.1} parent=63 // pred_fallthru
              _
            // Predicated region
            $region69: #{l0_lenet5_forward.1} parent=63 // pred_check
              _
            $region70: #{l0_lenet5_forward.1} parent=63 // pred_check_branch
              %345 = sbr.rel target = $region72
            $region71: #{l0_lenet5_forward.1} parent=63 // pred_region
              %s347 = ssub.s32 256, 1
              loop: start=0, step=1, limit=1
              $region73: #{l0_lenet5_forward.1} parent=71 // loop_pre_header
                _
              $region74: #{l0_lenet5_forward.1} parent=71 // loop_header
                %s349 = sphi 0, %s353
                %p350 = scmp.ge.s32.totalorder %s349, 1
                %s354 = sphi %s339, %s339
                %s355 = sphi %s337, %s337
              $region75: #{l0_lenet5_forward.1} parent=71 // loop_header_branch
                %352 = sbr.rel (%p350) target = $region79
              $region76: #{l0_lenet5_forward.1} parent=71 // loop_body
                %v356 = vld [vmem:[%s354] sm:%s347]
                %357 = vst [vmem:[%s355] sm:%s347] %v356
                %v358 = vld [vmem:[%s354 + $0x10] sm:%s347]
                %359 = vst [vmem:[%s355 + $0x8] sm:%s347] %v358
                %v360 = vld [vmem:[%s354 + $0x20] sm:%s347]
                %361 = vst [vmem:[%s355 + $0x10] sm:%s347] %v360
                %v362 = vld [vmem:[%s354 + $0x30] sm:%s347]
                %363 = vst [vmem:[%s355 + $0x18] sm:%s347] %v362
                %v364 = vld [vmem:[%s354 + $0x40] sm:%s347]
                %365 = vst [vmem:[%s355 + $0x20] sm:%s347] %v364
                %v366 = vld [vmem:[%s354 + $0x50] sm:%s347]
                %367 = vst [vmem:[%s355 + $0x28] sm:%s347] %v366
                %v368 = vld [vmem:[%s354 + $0x60] sm:%s347]
                %369 = vst [vmem:[%s355 + $0x30] sm:%s347] %v368
                %v370 = vld [vmem:[%s354 + $0x70] sm:%s347]
                %371 = vst [vmem:[%s355 + $0x38] sm:%s347] %v370
                %v372 = vld [vmem:[%s354 + $0x80] sm:%s347]
                %373 = vst [vmem:[%s355 + $0x40] sm:%s347] %v372
                %v374 = vld [vmem:[%s354 + $0x90] sm:%s347]
                %375 = vst [vmem:[%s355 + $0x48] sm:%s347] %v374
                %v376 = vld [vmem:[%s354 + $0xa0] sm:%s347]
                %377 = vst [vmem:[%s355 + $0x50] sm:%s347] %v376
                %v378 = vld [vmem:[%s354 + $0xb0] sm:%s347]
                %379 = vst [vmem:[%s355 + $0x58] sm:%s347] %v378
                %v380 = vld [vmem:[%s354 + $0xc0] sm:%s347]
                %381 = vst [vmem:[%s355 + $0x60] sm:%s347] %v380
                %v382 = vld [vmem:[%s354 + $0xd0] sm:%s347]
                %383 = vst [vmem:[%s355 + $0x68] sm:%s347] %v382
                %v384 = vld [vmem:[%s354 + $0xe0] sm:%s347]
                %385 = vst [vmem:[%s355 + $0x70] sm:%s347] %v384
                %v386 = vld [vmem:[%s354 + $0xf0] sm:%s347]
                %387 = vst [vmem:[%s355 + $0x78] sm:%s347] %v386
                %v388 = vld [vmem:[%s354 + $0x100] sm:%s347]
                %389 = vst [vmem:[%s355 + $0x80] sm:%s347] %v388
                %v390 = vld [vmem:[%s354 + $0x110] sm:%s347]
                %391 = vst [vmem:[%s355 + $0x88] sm:%s347] %v390
                %v392 = vld [vmem:[%s354 + $0x120] sm:%s347]
                %393 = vst [vmem:[%s355 + $0x90] sm:%s347] %v392
                %v394 = vld [vmem:[%s354 + $0x130] sm:%s347]
                %395 = vst [vmem:[%s355 + $0x98] sm:%s347] %v394
                %v396 = vld [vmem:[%s354 + $0x140] sm:%s347]
                %397 = vst [vmem:[%s355 + $0xa0] sm:%s347] %v396
                %v398 = vld [vmem:[%s354 + $0x150] sm:%s347]
                %399 = vst [vmem:[%s355 + $0xa8] sm:%s347] %v398
                %v400 = vld [vmem:[%s354 + $0x160] sm:%s347]
                %401 = vst [vmem:[%s355 + $0xb0] sm:%s347] %v400
                %v402 = vld [vmem:[%s354 + $0x170] sm:%s347]
                %403 = vst [vmem:[%s355 + $0xb8] sm:%s347] %v402
                %v404 = vld [vmem:[%s354 + $0x180] sm:%s347]
                %405 = vst [vmem:[%s355 + $0xc0] sm:%s347] %v404
                %v406 = vld [vmem:[%s354 + $0x190] sm:%s347]
                %407 = vst [vmem:[%s355 + $0xc8] sm:%s347] %v406
                %v408 = vld [vmem:[%s354 + $0x1a0] sm:%s347]
                %409 = vst [vmem:[%s355 + $0xd0] sm:%s347] %v408
                %v410 = vld [vmem:[%s354 + $0x1b0] sm:%s347]
                %411 = vst [vmem:[%s355 + $0xd8] sm:%s347] %v410
              $region77: #{l0_lenet5_forward.1} parent=71 // loop_footer
                %s353 = sadd.s32 1, %s349
              $region78: #{l0_lenet5_forward.1} parent=71 // loop_footer_branch
                %348 = sbr.rel target = $region74
              $region79: #{l0_lenet5_forward.1} parent=71 // loop_exit
                _
            $region72: #{l0_lenet5_forward.1} parent=63 // pred_fallthru
              _
          $region64: #{l0_lenet5_forward.1} parent=59 // pred_fallthru
            _
          %480 = vnop
        $region60: #{l0_lenet5_forward.1} parent=55 // pred_fallthru
          _
      $region56: #{l0_lenet5_forward.1} parent=5 // pred_fallthru
        _
      %p481 = scmp.le.s32.totalorder 1, %s20
      %p482 = scmp.lt.s32.totalorder %s20, 3
      %p483 = pnand %p481, %p482
      %p484 = pneg %p483
      // Predicated region
      $region95: #{l0_lenet5_forward.1} parent=5 // pred_check
        _
      $region96: #{l0_lenet5_forward.1} parent=5 // pred_check_branch
        %486 = sbr.rel (%p483) target = $region98
      $region97: #{l0_lenet5_forward.1} parent=5 // pred_region
        %s487 = ssub.s32 %s20, 1
        %s488 = sand.u32 %s33, 1
        %s489 = sand.u32 %s33, 1
        %s490 = smul.addr %s489, 224
        %s491 = scalar_lea.vmem [#allocation2], %s490
        // Predicated region
        $region99: #{l0_lenet5_forward.1} parent=97 // pred_check
          %p492 = pneg %p46
        $region100: #{l0_lenet5_forward.1} parent=97 // pred_check_branch
          %494 = sbr.rel (%p492) target = $region102
        $region101: #{l0_lenet5_forward.1} parent=97 // pred_region
          _
        $region102: #{l0_lenet5_forward.1} parent=97 // pred_fallthru
          _
        %s495 = sand.u32 %s33, 1
        %s496 = sand.u32 %s33, 1
        %s497 = smul.addr %s496, 224
        %s498 = scalar_lea.vmem [#allocation2], %s497
        %p499 = pneg %p46
        %p500 = pneg %p43
        %p501 = pneg %p67
        %p502 = pneg %p64
        %p503 = pneg %p88
        %p504 = pneg %p85
        %p505 = pneg %p109
        %p506 = pneg %p106
        %p507 = pneg %p130
        %p508 = pneg %p127
        %p509 = pneg %p151
        %p510 = pneg %p148
        %p511 = pneg %p172
        %p512 = pneg %p169
        %p513 = pneg %p193
        %p514 = pneg %p190
        %p515 = pneg %p214
        %p516 = pneg %p211
        %p517 = pneg %p235
        %p518 = pneg %p232
        %p519 = pneg %p256
        %p520 = pneg %p253
        %p521 = pneg %p282
        %p522 = pneg %p279
        %s523 = sand.u32 %s269, 1
        %s524 = scalar_lea.sflag [#allocation4], %s523
        %s525 = sand.u32 %s269, 1
        %s526 = smul.addr %s525, 8
        %s527 = scalar_lea.vmem [#allocation3], %s526
        %v528 = vld [vmem:[%s491] sm:$0xff]
        %v529 = vld [vmem:[%s491 + $0x8] sm:$0xff]
        %v530 = vld [vmem:[%s491 + $0x10] sm:$0xff]
        %v531 = vld [vmem:[%s491 + $0x18] sm:$0xff]
        %v532 = vld [vmem:[%s491 + $0x20] sm:$0xff]
        %v533 = vld [vmem:[%s491 + $0x28] sm:$0xff]
        %v534 = vld [vmem:[%s491 + $0x30] sm:$0xff]
        %v535 = vld [vmem:[%s491 + $0x38] sm:$0xff]
        %v536 = vld [vmem:[%s491 + $0x40] sm:$0xff]
        %v537 = vld [vmem:[%s491 + $0x48] sm:$0xff]
        %v538 = vld [vmem:[%s491 + $0x50] sm:$0xff]
        %v539 = vld [vmem:[%s491 + $0x58] sm:$0xff]
        %v540 = vld [vmem:[%s491 + $0x60] sm:$0xff]
        %v541 = vld [vmem:[%s491 + $0x68] sm:$0xff]
        %v542 = vld [vmem:[%s491 + $0x70] sm:$0xff]
        %v543 = vld [vmem:[%s491 + $0x78] sm:$0xff]
        %v544 = vld [vmem:[%s491 + $0x80] sm:$0xff]
        %v545 = vld [vmem:[%s491 + $0x88] sm:$0xff]
        %v546 = vld [vmem:[%s491 + $0x90] sm:$0xff]
        %v547 = vld [vmem:[%s491 + $0x98] sm:$0xff]
        %v548 = vld [vmem:[%s491 + $0xa0] sm:$0xff]
        %v549 = vld [vmem:[%s491 + $0xa8] sm:$0xff]
        %v550 = vld [vmem:[%s491 + $0xb0] sm:$0xff]
        %v551 = vld [vmem:[%s491 + $0xb8] sm:$0xff]
        %v552 = vld [vmem:[%s491 + $0xc0] sm:$0xff]
        %v553 = vld [vmem:[%s491 + $0xc8] sm:$0xff]
        %v554 = vld [vmem:[%s491 + $0xd0] sm:$0xff]
        %v555 = vld [vmem:[%s491 + $0xd8] sm:$0xff]
        %v556 = vld [vmem:[%s1] sm:$0xff]
        %v557 = vld [vmem:[%s1 + $0x8] sm:$0xff]
        %v558 = vld [vmem:[%s1 + $0x10] sm:$0xff]
        %v559 = vld [vmem:[%s1 + $0x18] sm:$0xf]
        %v560 = vld [vmem:[%s2] sm:$0xff]
        %v561 = vld [vmem:[%s2 + $0x8] sm:$0xff]
        %v562 = vld [vmem:[%s2 + $0x10] sm:$0xff]
        %v563 = vld [vmem:[%s2 + $0x18] sm:$0xf]
        %s564 = scalar_lea.vmem %s1, 32
        %v565 = vld [vmem:[%s564] sm:$0xff]
        %v566 = vld [vmem:[%s564 + $0x8] sm:$0xff]
        %v567 = vld [vmem:[%s564 + $0x10] sm:$0xff]
        %v568 = vld [vmem:[%s564 + $0x18] sm:$0xf]
        %vm569 = vcmask 228352
        %v571 = vsel %vm569, %v529, 0
        %v574 = vsel %vm569, %v530, 0
        %v577 = vsel %vm569, %v531, 0
        %v580 = vsel %vm569, %v532, 0
        %v583 = vsel %vm569, %v533, 0
        %v586 = vsel %vm569, %v534, 0
        %v589 = vsel %vm569, %v535, 0
        %v592 = vsel %vm569, %v536, 0
        %v595 = vsel %vm569, %v537, 0
        %v598 = vsel %vm569, %v538, 0
        %v601 = vsel %vm569, %v539, 0
        %v604 = vsel %vm569, %v540, 0
        %v607 = vsel %vm569, %v541, 0
        %v610 = vsel %vm569, %v542, 0
        %v613 = vsel %vm569, %v543, 0
        %v616 = vsel %vm569, %v544, 0
        %v619 = vsel %vm569, %v545, 0
        %v622 = vsel %vm569, %v546, 0
        %v625 = vsel %vm569, %v547, 0
        %v628 = vsel %vm569, %v548, 0
        %v631 = vsel %vm569, %v549, 0
        %v634 = vsel %vm569, %v550, 0
        %v637 = vsel %vm569, %v551, 0
        %v640 = vsel %vm569, %v552, 0
        %vm642 = vcmask 1043456
        %v644 = vsel %vm642, %v568, 0
        %646 = vmatpush.msra.mxu0 0.0
        %647 = vmatpush.msra.mxu0 0.0
        %648 = vmatpush.msra.mxu0 0.0
        %649 = vmatpush.msra.mxu0 0.0
        %650 = vmatpush.msra.mxu0 0.0
        %651 = vmatpush.msra.mxu0 0.0
        %652 = vmatpush.msra.mxu0 0.0
        %653 = vmatpush.msra.mxu0 0.0
        %654 = vmatpush.msra.mxu0 0.0
        %655 = vmatpush.msra.mxu0 0.0
        %656 = vmatpush.msra.mxu0 0.0
        %657 = vmatpush.msra.mxu0 0.0
        %658 = vmatpush.msra.mxu0 %v644
        %659 = vmatpush.msra.mxu0 %v567
        %660 = vmatpush.msra.mxu0 %v566
        %661 = vmatpush.msra.mxu0 %v565
        %662 = vmatmul.f32.gmra.mxu0 %v571
        %v663 = vpop.f32.mrf.mxu0
        %v664 = vadd.f32 0.0, %v663
        %665 = vmatmul.f32.gmra.mxu0 %v574
        %v666 = vpop.f32.mrf.mxu0
        %v667 = vadd.f32 0.0, %v666
        %668 = vmatmul.f32.gmra.mxu0 %v577
        %v669 = vpop.f32.mrf.mxu0
        %v670 = vadd.f32 0.0, %v669
        %671 = vmatmul.f32.gmra.mxu0 %v580
        %v672 = vpop.f32.mrf.mxu0
        %v673 = vadd.f32 0.0, %v672
        %674 = vmatmul.f32.gmra.mxu0 %v583
        %v675 = vpop.f32.mrf.mxu0
        %v676 = vadd.f32 0.0, %v675
        %677 = vmatmul.f32.gmra.mxu0 %v586
        %v678 = vpop.f32.mrf.mxu0
        %v679 = vadd.f32 0.0, %v678
        %680 = vmatmul.f32.gmra.mxu0 %v589
        %v681 = vpop.f32.mrf.mxu0
        %v682 = vadd.f32 0.0, %v681
        %683 = vmatmul.f32.gmra.mxu0 %v592
        %v684 = vpop.f32.mrf.mxu0
        %v685 = vadd.f32 0.0, %v684
        %686 = vmatmul.f32.gmra.mxu0 %v595
        %v687 = vpop.f32.mrf.mxu0
        %v688 = vadd.f32 0.0, %v687
        %689 = vmatmul.f32.gmra.mxu0 %v598
        %v690 = vpop.f32.mrf.mxu0
        %v691 = vadd.f32 0.0, %v690
        %692 = vmatmul.f32.gmra.mxu0 %v601
        %v693 = vpop.f32.mrf.mxu0
        %v694 = vadd.f32 0.0, %v693
        %695 = vmatmul.f32.gmra.mxu0 %v604
        %v696 = vpop.f32.mrf.mxu0
        %v697 = vadd.f32 0.0, %v696
        %698 = vmatmul.f32.gmra.mxu0 %v607
        %v699 = vpop.f32.mrf.mxu0
        %v700 = vadd.f32 0.0, %v699
        %701 = vmatmul.f32.gmra.mxu0 %v610
        %v702 = vpop.f32.mrf.mxu0
        %v703 = vadd.f32 0.0, %v702
        %704 = vmatmul.f32.gmra.mxu0 %v613
        %v705 = vpop.f32.mrf.mxu0
        %v706 = vadd.f32 0.0, %v705
        %707 = vmatmul.f32.gmra.mxu0 %v616
        %v708 = vpop.f32.mrf.mxu0
        %v709 = vadd.f32 0.0, %v708
        %710 = vmatmul.f32.gmra.mxu0 %v619
        %v711 = vpop.f32.mrf.mxu0
        %v712 = vadd.f32 0.0, %v711
        %713 = vmatmul.f32.gmra.mxu0 %v622
        %v714 = vpop.f32.mrf.mxu0
        %v715 = vadd.f32 0.0, %v714
        %716 = vmatmul.f32.gmra.mxu0 %v625
        %v717 = vpop.f32.mrf.mxu0
        %v718 = vadd.f32 0.0, %v717
        %719 = vmatmul.f32.gmra.mxu0 %v628
        %v720 = vpop.f32.mrf.mxu0
        %v721 = vadd.f32 0.0, %v720
        %722 = vmatmul.f32.gmra.mxu0 %v631
        %v723 = vpop.f32.mrf.mxu0
        %v724 = vadd.f32 0.0, %v723
        %725 = vmatmul.f32.gmra.mxu0 %v634
        %v726 = vpop.f32.mrf.mxu0
        %v727 = vadd.f32 0.0, %v726
        %728 = vmatmul.f32.gmra.mxu0 %v637
        %v729 = vpop.f32.mrf.mxu0
        %v730 = vadd.f32 0.0, %v729
        %731 = vmatmul.f32.gmra.mxu0 %v640
        %v732 = vpop.f32.mrf.mxu0
        %v733 = vadd.f32 0.0, %v732
        %734 = vdwg.mxu0
        %s735 = scalar_lea.vmem %s2, 32
        %v736 = vld [vmem:[%s735] sm:$0xff]
        %v737 = vld [vmem:[%s735 + $0x8] sm:$0xff]
        %v738 = vld [vmem:[%s735 + $0x10] sm:$0xff]
        %v739 = vld [vmem:[%s735 + $0x18] sm:$0xf]
        %v741 = vsel %vm642, %v739, 0
        %743 = vmatpush.msra.mxu0 0.0
        %744 = vmatpush.msra.mxu0 0.0
        %745 = vmatpush.msra.mxu0 0.0
        %746 = vmatpush.msra.mxu0 0.0
        %747 = vmatpush.msra.mxu0 0.0
        %748 = vmatpush.msra.mxu0 0.0
        %749 = vmatpush.msra.mxu0 0.0
        %750 = vmatpush.msra.mxu0 0.0
        %751 = vmatpush.msra.mxu0 0.0
        %752 = vmatpush.msra.mxu0 0.0
        %753 = vmatpush.msra.mxu0 0.0
        %754 = vmatpush.msra.mxu0 0.0
        %755 = vmatpush.msra.mxu0 %v741
        %756 = vmatpush.msra.mxu0 %v738
        %757 = vmatpush.msra.mxu0 %v737
        %758 = vmatpush.msra.mxu0 %v736
        %759 = vmatmul.f32.gmra.mxu0 %v571
        %v760 = vpop.f32.mrf.mxu0
        %v761 = vadd.f32 0.0, %v760
        %762 = vmatmul.f32.gmra.mxu0 %v574
        %v763 = vpop.f32.mrf.mxu0
        %v764 = vadd.f32 0.0, %v763
        %765 = vmatmul.f32.gmra.mxu0 %v577
        %v766 = vpop.f32.mrf.mxu0
        %v767 = vadd.f32 0.0, %v766
        %768 = vmatmul.f32.gmra.mxu0 %v580
        %v769 = vpop.f32.mrf.mxu0
        %v770 = vadd.f32 0.0, %v769
        %771 = vmatmul.f32.gmra.mxu0 %v583
        %v772 = vpop.f32.mrf.mxu0
        %v773 = vadd.f32 0.0, %v772
        %774 = vmatmul.f32.gmra.mxu0 %v586
        %v775 = vpop.f32.mrf.mxu0
        %v776 = vadd.f32 0.0, %v775
        %777 = vmatmul.f32.gmra.mxu0 %v589
        %v778 = vpop.f32.mrf.mxu0
        %v779 = vadd.f32 0.0, %v778
        %780 = vmatmul.f32.gmra.mxu0 %v592
        %v781 = vpop.f32.mrf.mxu0
        %v782 = vadd.f32 0.0, %v781
        %783 = vmatmul.f32.gmra.mxu0 %v595
        %v784 = vpop.f32.mrf.mxu0
        %v785 = vadd.f32 0.0, %v784
        %786 = vmatmul.f32.gmra.mxu0 %v598
        %v787 = vpop.f32.mrf.mxu0
        %v788 = vadd.f32 0.0, %v787
        %789 = vmatmul.f32.gmra.mxu0 %v601
        %v790 = vpop.f32.mrf.mxu0
        %v791 = vadd.f32 0.0, %v790
        %792 = vmatmul.f32.gmra.mxu0 %v604
        %v793 = vpop.f32.mrf.mxu0
        %v794 = vadd.f32 0.0, %v793
        %795 = vmatmul.f32.gmra.mxu0 %v607
        %v796 = vpop.f32.mrf.mxu0
        %v797 = vadd.f32 0.0, %v796
        %798 = vmatmul.f32.gmra.mxu0 %v610
        %v799 = vpop.f32.mrf.mxu0
        %v800 = vadd.f32 0.0, %v799
        %801 = vmatmul.f32.gmra.mxu0 %v613
        %v802 = vpop.f32.mrf.mxu0
        %v803 = vadd.f32 0.0, %v802
        %804 = vmatmul.f32.gmra.mxu0 %v616
        %v805 = vpop.f32.mrf.mxu0
        %v806 = vadd.f32 0.0, %v805
        %807 = vmatmul.f32.gmra.mxu0 %v619
        %v808 = vpop.f32.mrf.mxu0
        %v809 = vadd.f32 0.0, %v808
        %810 = vmatmul.f32.gmra.mxu0 %v622
        %v811 = vpop.f32.mrf.mxu0
        %v812 = vadd.f32 0.0, %v811
        %813 = vmatmul.f32.gmra.mxu0 %v625
        %v814 = vpop.f32.mrf.mxu0
        %v815 = vadd.f32 0.0, %v814
        %816 = vmatmul.f32.gmra.mxu0 %v628
        %v817 = vpop.f32.mrf.mxu0
        %v818 = vadd.f32 0.0, %v817
        %819 = vmatmul.f32.gmra.mxu0 %v631
        %v820 = vpop.f32.mrf.mxu0
        %v821 = vadd.f32 0.0, %v820
        %822 = vmatmul.f32.gmra.mxu0 %v634
        %v823 = vpop.f32.mrf.mxu0
        %v824 = vadd.f32 0.0, %v823
        %825 = vmatmul.f32.gmra.mxu0 %v637
        %v826 = vpop.f32.mrf.mxu0
        %v827 = vadd.f32 0.0, %v826
        %828 = vmatmul.f32.gmra.mxu0 %v640
        %v829 = vpop.f32.mrf.mxu0
        %v830 = vadd.f32 0.0, %v829
        %831 = vdwg.mxu0
        %v833 = vsel %vm569, %v528, 0
        %v836 = vsel %vm642, %v559, 0
        %838 = vmatpush.msra.mxu0 0.0
        %839 = vmatpush.msra.mxu0 0.0
        %840 = vmatpush.msra.mxu0 0.0
        %841 = vmatpush.msra.mxu0 0.0
        %842 = vmatpush.msra.mxu0 0.0
        %843 = vmatpush.msra.mxu0 0.0
        %844 = vmatpush.msra.mxu0 0.0
        %845 = vmatpush.msra.mxu0 0.0
        %846 = vmatpush.msra.mxu0 0.0
        %847 = vmatpush.msra.mxu0 0.0
        %848 = vmatpush.msra.mxu0 0.0
        %849 = vmatpush.msra.mxu0 0.0
        %850 = vmatpush.msra.mxu0 %v836
        %851 = vmatpush.msra.mxu0 %v558
        %852 = vmatpush.msra.mxu0 %v557
        %853 = vmatpush.msra.mxu0 %v556
        %854 = vmatmul.f32.gmra.mxu0 %v833
        %v855 = vpop.f32.mrf.mxu0
        %v856 = vadd.f32 %v664, %v855
        %857 = vmatmul.f32.gmra.mxu0 %v571
        %v858 = vpop.f32.mrf.mxu0
        %v859 = vadd.f32 %v667, %v858
        %860 = vmatmul.f32.gmra.mxu0 %v574
        %v861 = vpop.f32.mrf.mxu0
        %v862 = vadd.f32 %v670, %v861
        %863 = vmatmul.f32.gmra.mxu0 %v577
        %v864 = vpop.f32.mrf.mxu0
        %v865 = vadd.f32 %v673, %v864
        %866 = vmatmul.f32.gmra.mxu0 %v580
        %v867 = vpop.f32.mrf.mxu0
        %v868 = vadd.f32 %v676, %v867
        %869 = vmatmul.f32.gmra.mxu0 %v583
        %v870 = vpop.f32.mrf.mxu0
        %v871 = vadd.f32 %v679, %v870
        %872 = vmatmul.f32.gmra.mxu0 %v586
        %v873 = vpop.f32.mrf.mxu0
        %v874 = vadd.f32 %v682, %v873
        %875 = vmatmul.f32.gmra.mxu0 %v589
        %v876 = vpop.f32.mrf.mxu0
        %v877 = vadd.f32 %v685, %v876
        %878 = vmatmul.f32.gmra.mxu0 %v592
        %v879 = vpop.f32.mrf.mxu0
        %v880 = vadd.f32 %v688, %v879
        %881 = vmatmul.f32.gmra.mxu0 %v595
        %v882 = vpop.f32.mrf.mxu0
        %v883 = vadd.f32 %v691, %v882
        %884 = vmatmul.f32.gmra.mxu0 %v598
        %v885 = vpop.f32.mrf.mxu0
        %v886 = vadd.f32 %v694, %v885
        %887 = vmatmul.f32.gmra.mxu0 %v601
        %v888 = vpop.f32.mrf.mxu0
        %v889 = vadd.f32 %v697, %v888
        %890 = vmatmul.f32.gmra.mxu0 %v604
        %v891 = vpop.f32.mrf.mxu0
        %v892 = vadd.f32 %v700, %v891
        %893 = vmatmul.f32.gmra.mxu0 %v607
        %v894 = vpop.f32.mrf.mxu0
        %v895 = vadd.f32 %v703, %v894
        %896 = vmatmul.f32.gmra.mxu0 %v610
        %v897 = vpop.f32.mrf.mxu0
        %v898 = vadd.f32 %v706, %v897
        %899 = vmatmul.f32.gmra.mxu0 %v613
        %v900 = vpop.f32.mrf.mxu0
        %v901 = vadd.f32 %v709, %v900
        %902 = vmatmul.f32.gmra.mxu0 %v616
        %v903 = vpop.f32.mrf.mxu0
        %v904 = vadd.f32 %v712, %v903
        %905 = vmatmul.f32.gmra.mxu0 %v619
        %v906 = vpop.f32.mrf.mxu0
        %v907 = vadd.f32 %v715, %v906
        %908 = vmatmul.f32.gmra.mxu0 %v622
        %v909 = vpop.f32.mrf.mxu0
        %v910 = vadd.f32 %v718, %v909
        %911 = vmatmul.f32.gmra.mxu0 %v625
        %v912 = vpop.f32.mrf.mxu0
        %v913 = vadd.f32 %v721, %v912
        %914 = vmatmul.f32.gmra.mxu0 %v628
        %v915 = vpop.f32.mrf.mxu0
        %v916 = vadd.f32 %v724, %v915
        %917 = vmatmul.f32.gmra.mxu0 %v631
        %v918 = vpop.f32.mrf.mxu0
        %v919 = vadd.f32 %v727, %v918
        %920 = vmatmul.f32.gmra.mxu0 %v634
        %v921 = vpop.f32.mrf.mxu0
        %v922 = vadd.f32 %v730, %v921
        %923 = vmatmul.f32.gmra.mxu0 %v637
        %v924 = vpop.f32.mrf.mxu0
        %v925 = vadd.f32 %v733, %v924
        %926 = vdwg.mxu0
        %v928 = vsel %vm642, %v563, 0
        %930 = vmatpush.msra.mxu0 0.0
        %931 = vmatpush.msra.mxu0 0.0
        %932 = vmatpush.msra.mxu0 0.0
        %933 = vmatpush.msra.mxu0 0.0
        %934 = vmatpush.msra.mxu0 0.0
        %935 = vmatpush.msra.mxu0 0.0
        %936 = vmatpush.msra.mxu0 0.0
        %937 = vmatpush.msra.mxu0 0.0
        %938 = vmatpush.msra.mxu0 0.0
        %939 = vmatpush.msra.mxu0 0.0
        %940 = vmatpush.msra.mxu0 0.0
        %941 = vmatpush.msra.mxu0 0.0
        %942 = vmatpush.msra.mxu0 %v928
        %943 = vmatpush.msra.mxu0 %v562
        %944 = vmatpush.msra.mxu0 %v561
        %945 = vmatpush.msra.mxu0 %v560
        %946 = vmatmul.f32.gmra.mxu0 %v833
        %v947 = vpop.f32.mrf.mxu0
        %v948 = vadd.f32 %v761, %v947
        %949 = vmatmul.f32.gmra.mxu0 %v571
        %v950 = vpop.f32.mrf.mxu0
        %v951 = vadd.f32 %v764, %v950
        %952 = vmatmul.f32.gmra.mxu0 %v574
        %v953 = vpop.f32.mrf.mxu0
        %v954 = vadd.f32 %v767, %v953
        %955 = vmatmul.f32.gmra.mxu0 %v577
        %v956 = vpop.f32.mrf.mxu0
        %v957 = vadd.f32 %v770, %v956
        %958 = vmatmul.f32.gmra.mxu0 %v580
        %v959 = vpop.f32.mrf.mxu0
        %v960 = vadd.f32 %v773, %v959
        %961 = vmatmul.f32.gmra.mxu0 %v583
        %v962 = vpop.f32.mrf.mxu0
        %v963 = vadd.f32 %v776, %v962
        %964 = vmatmul.f32.gmra.mxu0 %v586
        %v965 = vpop.f32.mrf.mxu0
        %v966 = vadd.f32 %v779, %v965
        %967 = vmatmul.f32.gmra.mxu0 %v589
        %v968 = vpop.f32.mrf.mxu0
        %v969 = vadd.f32 %v782, %v968
        %970 = vmatmul.f32.gmra.mxu0 %v592
        %v971 = vpop.f32.mrf.mxu0
        %v972 = vadd.f32 %v785, %v971
        %973 = vmatmul.f32.gmra.mxu0 %v595
        %v974 = vpop.f32.mrf.mxu0
        %v975 = vadd.f32 %v788, %v974
        %976 = vmatmul.f32.gmra.mxu0 %v598
        %v977 = vpop.f32.mrf.mxu0
        %v978 = vadd.f32 %v791, %v977
        %979 = vmatmul.f32.gmra.mxu0 %v601
        %v980 = vpop.f32.mrf.mxu0
        %v981 = vadd.f32 %v794, %v980
        %982 = vmatmul.f32.gmra.mxu0 %v604
        %v983 = vpop.f32.mrf.mxu0
        %v984 = vadd.f32 %v797, %v983
        %985 = vmatmul.f32.gmra.mxu0 %v607
        %v986 = vpop.f32.mrf.mxu0
        %v987 = vadd.f32 %v800, %v986
        %988 = vmatmul.f32.gmra.mxu0 %v610
        %v989 = vpop.f32.mrf.mxu0
        %v990 = vadd.f32 %v803, %v989
        %991 = vmatmul.f32.gmra.mxu0 %v613
        %v992 = vpop.f32.mrf.mxu0
        %v993 = vadd.f32 %v806, %v992
        %994 = vmatmul.f32.gmra.mxu0 %v616
        %v995 = vpop.f32.mrf.mxu0
        %v996 = vadd.f32 %v809, %v995
        %997 = vmatmul.f32.gmra.mxu0 %v619
        %v998 = vpop.f32.mrf.mxu0
        %v999 = vadd.f32 %v812, %v998
        %1000 = vmatmul.f32.gmra.mxu0 %v622
        %v1001 = vpop.f32.mrf.mxu0
        %v1002 = vadd.f32 %v815, %v1001
        %1003 = vmatmul.f32.gmra.mxu0 %v625
        %v1004 = vpop.f32.mrf.mxu0
        %v1005 = vadd.f32 %v818, %v1004
        %1006 = vmatmul.f32.gmra.mxu0 %v628
        %v1007 = vpop.f32.mrf.mxu0
        %v1008 = vadd.f32 %v821, %v1007
        %1009 = vmatmul.f32.gmra.mxu0 %v631
        %v1010 = vpop.f32.mrf.mxu0
        %v1011 = vadd.f32 %v824, %v1010
        %1012 = vmatmul.f32.gmra.mxu0 %v634
        %v1013 = vpop.f32.mrf.mxu0
        %v1014 = vadd.f32 %v827, %v1013
        %1015 = vmatmul.f32.gmra.mxu0 %v637
        %v1016 = vpop.f32.mrf.mxu0
        %v1017 = vadd.f32 %v830, %v1016
        %1018 = vdwg.mxu0
        %s1019 = scalar_lea.vmem %s1, 64
        %v1020 = vld [vmem:[%s1019] sm:$0xff]
        %v1021 = vld [vmem:[%s1019 + $0x8] sm:$0xff]
        %v1022 = vld [vmem:[%s1019 + $0x10] sm:$0xff]
        %v1023 = vld [vmem:[%s1019 + $0x18] sm:$0xf]
        %v1025 = vsel %vm569, %v553, 0
        %v1028 = vsel %vm642, %v1023, 0
        %1030 = vmatpush.msra.mxu0 0.0
        %1031 = vmatpush.msra.mxu0 0.0
        %1032 = vmatpush.msra.mxu0 0.0
        %1033 = vmatpush.msra.mxu0 0.0
        %1034 = vmatpush.msra.mxu0 0.0
        %1035 = vmatpush.msra.mxu0 0.0
        %1036 = vmatpush.msra.mxu0 0.0
        %1037 = vmatpush.msra.mxu0 0.0
        %1038 = vmatpush.msra.mxu0 0.0
        %1039 = vmatpush.msra.mxu0 0.0
        %1040 = vmatpush.msra.mxu0 0.0
        %1041 = vmatpush.msra.mxu0 0.0
        %1042 = vmatpush.msra.mxu0 %v1028
        %1043 = vmatpush.msra.mxu0 %v1022
        %1044 = vmatpush.msra.mxu0 %v1021
        %1045 = vmatpush.msra.mxu0 %v1020
        %1046 = vmatmul.f32.gmra.mxu0 %v574
        %v1047 = vpop.f32.mrf.mxu0
        %v1048 = vadd.f32 0.0, %v1047
        %1049 = vmatmul.f32.gmra.mxu0 %v577
        %v1050 = vpop.f32.mrf.mxu0
        %v1051 = vadd.f32 0.0, %v1050
        %1052 = vmatmul.f32.gmra.mxu0 %v580
        %v1053 = vpop.f32.mrf.mxu0
        %v1054 = vadd.f32 0.0, %v1053
        %1055 = vmatmul.f32.gmra.mxu0 %v583
        %v1056 = vpop.f32.mrf.mxu0
        %v1057 = vadd.f32 0.0, %v1056
        %1058 = vmatmul.f32.gmra.mxu0 %v586
        %v1059 = vpop.f32.mrf.mxu0
        %v1060 = vadd.f32 0.0, %v1059
        %1061 = vmatmul.f32.gmra.mxu0 %v589
        %v1062 = vpop.f32.mrf.mxu0
        %v1063 = vadd.f32 0.0, %v1062
        %1064 = vmatmul.f32.gmra.mxu0 %v592
        %v1065 = vpop.f32.mrf.mxu0
        %v1066 = vadd.f32 0.0, %v1065
        %1067 = vmatmul.f32.gmra.mxu0 %v595
        %v1068 = vpop.f32.mrf.mxu0
        %v1069 = vadd.f32 0.0, %v1068
        %1070 = vmatmul.f32.gmra.mxu0 %v598
        %v1071 = vpop.f32.mrf.mxu0
        %v1072 = vadd.f32 0.0, %v1071
        %1073 = vmatmul.f32.gmra.mxu0 %v601
        %v1074 = vpop.f32.mrf.mxu0
        %v1075 = vadd.f32 0.0, %v1074
        %1076 = vmatmul.f32.gmra.mxu0 %v604
        %v1077 = vpop.f32.mrf.mxu0
        %v1078 = vadd.f32 0.0, %v1077
        %1079 = vmatmul.f32.gmra.mxu0 %v607
        %v1080 = vpop.f32.mrf.mxu0
        %v1081 = vadd.f32 0.0, %v1080
        %1082 = vmatmul.f32.gmra.mxu0 %v610
        %v1083 = vpop.f32.mrf.mxu0
        %v1084 = vadd.f32 0.0, %v1083
        %1085 = vmatmul.f32.gmra.mxu0 %v613
        %v1086 = vpop.f32.mrf.mxu0
        %v1087 = vadd.f32 0.0, %v1086
        %1088 = vmatmul.f32.gmra.mxu0 %v616
        %v1089 = vpop.f32.mrf.mxu0
        %v1090 = vadd.f32 0.0, %v1089
        %1091 = vmatmul.f32.gmra.mxu0 %v619
        %v1092 = vpop.f32.mrf.mxu0
        %v1093 = vadd.f32 0.0, %v1092
        %1094 = vmatmul.f32.gmra.mxu0 %v622
        %v1095 = vpop.f32.mrf.mxu0
        %v1096 = vadd.f32 0.0, %v1095
        %1097 = vmatmul.f32.gmra.mxu0 %v625
        %v1098 = vpop.f32.mrf.mxu0
        %v1099 = vadd.f32 0.0, %v1098
        %1100 = vmatmul.f32.gmra.mxu0 %v628
        %v1101 = vpop.f32.mrf.mxu0
        %v1102 = vadd.f32 0.0, %v1101
        %1103 = vmatmul.f32.gmra.mxu0 %v631
        %v1104 = vpop.f32.mrf.mxu0
        %v1105 = vadd.f32 0.0, %v1104
        %1106 = vmatmul.f32.gmra.mxu0 %v634
        %v1107 = vpop.f32.mrf.mxu0
        %v1108 = vadd.f32 0.0, %v1107
        %1109 = vmatmul.f32.gmra.mxu0 %v637
        %v1110 = vpop.f32.mrf.mxu0
        %v1111 = vadd.f32 0.0, %v1110
        %1112 = vmatmul.f32.gmra.mxu0 %v640
        %v1113 = vpop.f32.mrf.mxu0
        %v1114 = vadd.f32 0.0, %v1113
        %1115 = vmatmul.f32.gmra.mxu0 %v1025
        %v1116 = vpop.f32.mrf.mxu0
        %v1117 = vadd.f32 0.0, %v1116
        %1118 = vdwg.mxu0
        %s1119 = scalar_lea.vmem %s2, 64
        %v1120 = vld [vmem:[%s1119] sm:$0xff]
        %v1121 = vld [vmem:[%s1119 + $0x8] sm:$0xff]
        %v1122 = vld [vmem:[%s1119 + $0x10] sm:$0xff]
        %v1123 = vld [vmem:[%s1119 + $0x18] sm:$0xf]
        %v1125 = vsel %vm642, %v1123, 0
        %1127 = vmatpush.msra.mxu0 0.0
        %1128 = vmatpush.msra.mxu0 0.0
        %1129 = vmatpush.msra.mxu0 0.0
        %1130 = vmatpush.msra.mxu0 0.0
        %1131 = vmatpush.msra.mxu0 0.0
        %1132 = vmatpush.msra.mxu0 0.0
        %1133 = vmatpush.msra.mxu0 0.0
        %1134 = vmatpush.msra.mxu0 0.0
        %1135 = vmatpush.msra.mxu0 0.0
        %1136 = vmatpush.msra.mxu0 0.0
        %1137 = vmatpush.msra.mxu0 0.0
        %1138 = vmatpush.msra.mxu0 0.0
        %1139 = vmatpush.msra.mxu0 %v1125
        %1140 = vmatpush.msra.mxu0 %v1122
        %1141 = vmatpush.msra.mxu0 %v1121
        %1142 = vmatpush.msra.mxu0 %v1120
        %1143 = vmatmul.f32.gmra.mxu0 %v574
        %v1144 = vpop.f32.mrf.mxu0
        %v1145 = vadd.f32 0.0, %v1144
        %1146 = vmatmul.f32.gmra.mxu0 %v577
        %v1147 = vpop.f32.mrf.mxu0
        %v1148 = vadd.f32 0.0, %v1147
        %1149 = vmatmul.f32.gmra.mxu0 %v580
        %v1150 = vpop.f32.mrf.mxu0
        %v1151 = vadd.f32 0.0, %v1150
        %1152 = vmatmul.f32.gmra.mxu0 %v583
        %v1153 = vpop.f32.mrf.mxu0
        %v1154 = vadd.f32 0.0, %v1153
        %1155 = vmatmul.f32.gmra.mxu0 %v586
        %v1156 = vpop.f32.mrf.mxu0
        %v1157 = vadd.f32 0.0, %v1156
        %1158 = vmatmul.f32.gmra.mxu0 %v589
        %v1159 = vpop.f32.mrf.mxu0
        %v1160 = vadd.f32 0.0, %v1159
        %1161 = vmatmul.f32.gmra.mxu0 %v592
        %v1162 = vpop.f32.mrf.mxu0
        %v1163 = vadd.f32 0.0, %v1162
        %1164 = vmatmul.f32.gmra.mxu0 %v595
        %v1165 = vpop.f32.mrf.mxu0
        %v1166 = vadd.f32 0.0, %v1165
        %1167 = vmatmul.f32.gmra.mxu0 %v598
        %v1168 = vpop.f32.mrf.mxu0
        %v1169 = vadd.f32 0.0, %v1168
        %1170 = vmatmul.f32.gmra.mxu0 %v601
        %v1171 = vpop.f32.mrf.mxu0
        %v1172 = vadd.f32 0.0, %v1171
        %1173 = vmatmul.f32.gmra.mxu0 %v604
        %v1174 = vpop.f32.mrf.mxu0
        %v1175 = vadd.f32 0.0, %v1174
        %1176 = vmatmul.f32.gmra.mxu0 %v607
        %v1177 = vpop.f32.mrf.mxu0
        %v1178 = vadd.f32 0.0, %v1177
        %1179 = vmatmul.f32.gmra.mxu0 %v610
        %v1180 = vpop.f32.mrf.mxu0
        %v1181 = vadd.f32 0.0, %v1180
        %1182 = vmatmul.f32.gmra.mxu0 %v613
        %v1183 = vpop.f32.mrf.mxu0
        %v1184 = vadd.f32 0.0, %v1183
        %1185 = vmatmul.f32.gmra.mxu0 %v616
        %v1186 = vpop.f32.mrf.mxu0
        %v1187 = vadd.f32 0.0, %v1186
        %1188 = vmatmul.f32.gmra.mxu0 %v619
        %v1189 = vpop.f32.mrf.mxu0
        %v1190 = vadd.f32 0.0, %v1189
        %1191 = vmatmul.f32.gmra.mxu0 %v622
        %v1192 = vpop.f32.mrf.mxu0
        %v1193 = vadd.f32 0.0, %v1192
        %1194 = vmatmul.f32.gmra.mxu0 %v625
        %v1195 = vpop.f32.mrf.mxu0
        %v1196 = vadd.f32 0.0, %v1195
        %1197 = vmatmul.f32.gmra.mxu0 %v628
        %v1198 = vpop.f32.mrf.mxu0
        %v1199 = vadd.f32 0.0, %v1198
        %1200 = vmatmul.f32.gmra.mxu0 %v631
        %v1201 = vpop.f32.mrf.mxu0
        %v1202 = vadd.f32 0.0, %v1201
        %1203 = vmatmul.f32.gmra.mxu0 %v634
        %v1204 = vpop.f32.mrf.mxu0
        %v1205 = vadd.f32 0.0, %v1204
        %1206 = vmatmul.f32.gmra.mxu0 %v637
        %v1207 = vpop.f32.mrf.mxu0
        %v1208 = vadd.f32 0.0, %v1207
        %1209 = vmatmul.f32.gmra.mxu0 %v640
        %v1210 = vpop.f32.mrf.mxu0
        %v1211 = vadd.f32 0.0, %v1210
        %1212 = vmatmul.f32.gmra.mxu0 %v1025
        %v1213 = vpop.f32.mrf.mxu0
        %v1214 = vadd.f32 0.0, %v1213
        %1215 = vdwg.mxu0
        %v1216 = vadd.f32 %v856, %v1048
        %v1217 = vadd.f32 %v859, %v1051
        %v1218 = vadd.f32 %v862, %v1054
        %v1219 = vadd.f32 %v865, %v1057
        %v1220 = vadd.f32 %v868, %v1060
        %v1221 = vadd.f32 %v871, %v1063
        %v1222 = vadd.f32 %v874, %v1066
        %v1223 = vadd.f32 %v877, %v1069
        %v1224 = vadd.f32 %v880, %v1072
        %v1225 = vadd.f32 %v883, %v1075
        %v1226 = vadd.f32 %v886, %v1078
        %v1227 = vadd.f32 %v889, %v1081
        %v1228 = vadd.f32 %v892, %v1084
        %v1229 = vadd.f32 %v895, %v1087
        %v1230 = vadd.f32 %v898, %v1090
        %v1231 = vadd.f32 %v901, %v1093
        %v1232 = vadd.f32 %v904, %v1096
        %v1233 = vadd.f32 %v907, %v1099
        %v1234 = vadd.f32 %v910, %v1102
        %v1235 = vadd.f32 %v913, %v1105
        %v1236 = vadd.f32 %v916, %v1108
        %v1237 = vadd.f32 %v919, %v1111
        %v1238 = vadd.f32 %v922, %v1114
        %v1239 = vadd.f32 %v925, %v1117
        %v1240 = vadd.f32 %v948, %v1145
        %v1241 = vadd.f32 %v951, %v1148
        %v1242 = vadd.f32 %v954, %v1151
        %v1243 = vadd.f32 %v957, %v1154
        %v1244 = vadd.f32 %v960, %v1157
        %v1245 = vadd.f32 %v963, %v1160
        %v1246 = vadd.f32 %v966, %v1163
        %v1247 = vadd.f32 %v969, %v1166
        %v1248 = vadd.f32 %v972, %v1169
        %v1249 = vadd.f32 %v975, %v1172
        %v1250 = vadd.f32 %v978, %v1175
        %v1251 = vadd.f32 %v981, %v1178
        %v1252 = vadd.f32 %v984, %v1181
        %v1253 = vadd.f32 %v987, %v1184
        %v1254 = vadd.f32 %v990, %v1187
        %v1255 = vadd.f32 %v993, %v1190
        %v1256 = vadd.f32 %v996, %v1193
        %v1257 = vadd.f32 %v999, %v1196
        %v1258 = vadd.f32 %v1002, %v1199
        %v1259 = vadd.f32 %v1005, %v1202
        %v1260 = vadd.f32 %v1008, %v1205
        %v1261 = vadd.f32 %v1011, %v1208
        %v1262 = vadd.f32 %v1014, %v1211
        %v1263 = vadd.f32 %v1017, %v1214
        %s1264 = scalar_lea.vmem %s1, 96
        %v1265 = vld [vmem:[%s1264] sm:$0xff]
        %v1266 = vld [vmem:[%s1264 + $0x8] sm:$0xff]
        %v1267 = vld [vmem:[%s1264 + $0x10] sm:$0xff]
        %v1268 = vld [vmem:[%s1264 + $0x18] sm:$0xf]
        %v1270 = vsel %vm569, %v554, 0
        %v1273 = vsel %vm642, %v1268, 0
        %1275 = vmatpush.msra.mxu0 0.0
        %1276 = vmatpush.msra.mxu0 0.0
        %1277 = vmatpush.msra.mxu0 0.0
        %1278 = vmatpush.msra.mxu0 0.0
        %1279 = vmatpush.msra.mxu0 0.0
        %1280 = vmatpush.msra.mxu0 0.0
        %1281 = vmatpush.msra.mxu0 0.0
        %1282 = vmatpush.msra.mxu0 0.0
        %1283 = vmatpush.msra.mxu0 0.0
        %1284 = vmatpush.msra.mxu0 0.0
        %1285 = vmatpush.msra.mxu0 0.0
        %1286 = vmatpush.msra.mxu0 0.0
        %1287 = vmatpush.msra.mxu0 %v1273
        %1288 = vmatpush.msra.mxu0 %v1267
        %1289 = vmatpush.msra.mxu0 %v1266
        %1290 = vmatpush.msra.mxu0 %v1265
        %1291 = vmatmul.f32.gmra.mxu0 %v577
        %v1292 = vpop.f32.mrf.mxu0
        %v1293 = vadd.f32 0.0, %v1292
        %1294 = vmatmul.f32.gmra.mxu0 %v580
        %v1295 = vpop.f32.mrf.mxu0
        %v1296 = vadd.f32 0.0, %v1295
        %1297 = vmatmul.f32.gmra.mxu0 %v583
        %v1298 = vpop.f32.mrf.mxu0
        %v1299 = vadd.f32 0.0, %v1298
        %1300 = vmatmul.f32.gmra.mxu0 %v586
        %v1301 = vpop.f32.mrf.mxu0
        %v1302 = vadd.f32 0.0, %v1301
        %1303 = vmatmul.f32.gmra.mxu0 %v589
        %v1304 = vpop.f32.mrf.mxu0
        %v1305 = vadd.f32 0.0, %v1304
        %1306 = vmatmul.f32.gmra.mxu0 %v592
        %v1307 = vpop.f32.mrf.mxu0
        %v1308 = vadd.f32 0.0, %v1307
        %1309 = vmatmul.f32.gmra.mxu0 %v595
        %v1310 = vpop.f32.mrf.mxu0
        %v1311 = vadd.f32 0.0, %v1310
        %1312 = vmatmul.f32.gmra.mxu0 %v598
        %v1313 = vpop.f32.mrf.mxu0
        %v1314 = vadd.f32 0.0, %v1313
        %1315 = vmatmul.f32.gmra.mxu0 %v601
        %v1316 = vpop.f32.mrf.mxu0
        %v1317 = vadd.f32 0.0, %v1316
        %1318 = vmatmul.f32.gmra.mxu0 %v604
        %v1319 = vpop.f32.mrf.mxu0
        %v1320 = vadd.f32 0.0, %v1319
        %1321 = vmatmul.f32.gmra.mxu0 %v607
        %v1322 = vpop.f32.mrf.mxu0
        %v1323 = vadd.f32 0.0, %v1322
        %1324 = vmatmul.f32.gmra.mxu0 %v610
        %v1325 = vpop.f32.mrf.mxu0
        %v1326 = vadd.f32 0.0, %v1325
        %1327 = vmatmul.f32.gmra.mxu0 %v613
        %v1328 = vpop.f32.mrf.mxu0
        %v1329 = vadd.f32 0.0, %v1328
        %1330 = vmatmul.f32.gmra.mxu0 %v616
        %v1331 = vpop.f32.mrf.mxu0
        %v1332 = vadd.f32 0.0, %v1331
        %1333 = vmatmul.f32.gmra.mxu0 %v619
        %v1334 = vpop.f32.mrf.mxu0
        %v1335 = vadd.f32 0.0, %v1334
        %1336 = vmatmul.f32.gmra.mxu0 %v622
        %v1337 = vpop.f32.mrf.mxu0
        %v1338 = vadd.f32 0.0, %v1337
        %1339 = vmatmul.f32.gmra.mxu0 %v625
        %v1340 = vpop.f32.mrf.mxu0
        %v1341 = vadd.f32 0.0, %v1340
        %1342 = vmatmul.f32.gmra.mxu0 %v628
        %v1343 = vpop.f32.mrf.mxu0
        %v1344 = vadd.f32 0.0, %v1343
        %1345 = vmatmul.f32.gmra.mxu0 %v631
        %v1346 = vpop.f32.mrf.mxu0
        %v1347 = vadd.f32 0.0, %v1346
        %1348 = vmatmul.f32.gmra.mxu0 %v634
        %v1349 = vpop.f32.mrf.mxu0
        %v1350 = vadd.f32 0.0, %v1349
        %1351 = vmatmul.f32.gmra.mxu0 %v637
        %v1352 = vpop.f32.mrf.mxu0
        %v1353 = vadd.f32 0.0, %v1352
        %1354 = vmatmul.f32.gmra.mxu0 %v640
        %v1355 = vpop.f32.mrf.mxu0
        %v1356 = vadd.f32 0.0, %v1355
        %1357 = vmatmul.f32.gmra.mxu0 %v1025
        %v1358 = vpop.f32.mrf.mxu0
        %v1359 = vadd.f32 0.0, %v1358
        %1360 = vmatmul.f32.gmra.mxu0 %v1270
        %v1361 = vpop.f32.mrf.mxu0
        %v1362 = vadd.f32 0.0, %v1361
        %1363 = vdwg.mxu0
        %s1364 = scalar_lea.vmem %s2, 96
        %v1365 = vld [vmem:[%s1364] sm:$0xff]
        %v1366 = vld [vmem:[%s1364 + $0x8] sm:$0xff]
        %v1367 = vld [vmem:[%s1364 + $0x10] sm:$0xff]
        %v1368 = vld [vmem:[%s1364 + $0x18] sm:$0xf]
        %v1370 = vsel %vm642, %v1368, 0
        %1372 = vmatpush.msra.mxu0 0.0
        %1373 = vmatpush.msra.mxu0 0.0
        %1374 = vmatpush.msra.mxu0 0.0
        %1375 = vmatpush.msra.mxu0 0.0
        %1376 = vmatpush.msra.mxu0 0.0
        %1377 = vmatpush.msra.mxu0 0.0
        %1378 = vmatpush.msra.mxu0 0.0
        %1379 = vmatpush.msra.mxu0 0.0
        %1380 = vmatpush.msra.mxu0 0.0
        %1381 = vmatpush.msra.mxu0 0.0
        %1382 = vmatpush.msra.mxu0 0.0
        %1383 = vmatpush.msra.mxu0 0.0
        %1384 = vmatpush.msra.mxu0 %v1370
        %1385 = vmatpush.msra.mxu0 %v1367
        %1386 = vmatpush.msra.mxu0 %v1366
        %1387 = vmatpush.msra.mxu0 %v1365
        %1388 = vmatmul.f32.gmra.mxu0 %v577
        %v1389 = vpop.f32.mrf.mxu0
        %v1390 = vadd.f32 0.0, %v1389
        %1391 = vmatmul.f32.gmra.mxu0 %v580
        %v1392 = vpop.f32.mrf.mxu0
        %v1393 = vadd.f32 0.0, %v1392
        %1394 = vmatmul.f32.gmra.mxu0 %v583
        %v1395 = vpop.f32.mrf.mxu0
        %v1396 = vadd.f32 0.0, %v1395
        %1397 = vmatmul.f32.gmra.mxu0 %v586
        %v1398 = vpop.f32.mrf.mxu0
        %v1399 = vadd.f32 0.0, %v1398
        %1400 = vmatmul.f32.gmra.mxu0 %v589
        %v1401 = vpop.f32.mrf.mxu0
        %v1402 = vadd.f32 0.0, %v1401
        %1403 = vmatmul.f32.gmra.mxu0 %v592
        %v1404 = vpop.f32.mrf.mxu0
        %v1405 = vadd.f32 0.0, %v1404
        %1406 = vmatmul.f32.gmra.mxu0 %v595
        %v1407 = vpop.f32.mrf.mxu0
        %v1408 = vadd.f32 0.0, %v1407
        %1409 = vmatmul.f32.gmra.mxu0 %v598
        %v1410 = vpop.f32.mrf.mxu0
        %v1411 = vadd.f32 0.0, %v1410
        %1412 = vmatmul.f32.gmra.mxu0 %v601
        %v1413 = vpop.f32.mrf.mxu0
        %v1414 = vadd.f32 0.0, %v1413
        %1415 = vmatmul.f32.gmra.mxu0 %v604
        %v1416 = vpop.f32.mrf.mxu0
        %v1417 = vadd.f32 0.0, %v1416
        %1418 = vmatmul.f32.gmra.mxu0 %v607
        %v1419 = vpop.f32.mrf.mxu0
        %v1420 = vadd.f32 0.0, %v1419
        %1421 = vmatmul.f32.gmra.mxu0 %v610
        %v1422 = vpop.f32.mrf.mxu0
        %v1423 = vadd.f32 0.0, %v1422
        %1424 = vmatmul.f32.gmra.mxu0 %v613
        %v1425 = vpop.f32.mrf.mxu0
        %v1426 = vadd.f32 0.0, %v1425
        %1427 = vmatmul.f32.gmra.mxu0 %v616
        %v1428 = vpop.f32.mrf.mxu0
        %v1429 = vadd.f32 0.0, %v1428
        %1430 = vmatmul.f32.gmra.mxu0 %v619
        %v1431 = vpop.f32.mrf.mxu0
        %v1432 = vadd.f32 0.0, %v1431
        %1433 = vmatmul.f32.gmra.mxu0 %v622
        %v1434 = vpop.f32.mrf.mxu0
        %v1435 = vadd.f32 0.0, %v1434
        %1436 = vmatmul.f32.gmra.mxu0 %v625
        %v1437 = vpop.f32.mrf.mxu0
        %v1438 = vadd.f32 0.0, %v1437
        %1439 = vmatmul.f32.gmra.mxu0 %v628
        %v1440 = vpop.f32.mrf.mxu0
        %v1441 = vadd.f32 0.0, %v1440
        %1442 = vmatmul.f32.gmra.mxu0 %v631
        %v1443 = vpop.f32.mrf.mxu0
        %v1444 = vadd.f32 0.0, %v1443
        %1445 = vmatmul.f32.gmra.mxu0 %v634
        %v1446 = vpop.f32.mrf.mxu0
        %v1447 = vadd.f32 0.0, %v1446
        %1448 = vmatmul.f32.gmra.mxu0 %v637
        %v1449 = vpop.f32.mrf.mxu0
        %v1450 = vadd.f32 0.0, %v1449
        %1451 = vmatmul.f32.gmra.mxu0 %v640
        %v1452 = vpop.f32.mrf.mxu0
        %v1453 = vadd.f32 0.0, %v1452
        %1454 = vmatmul.f32.gmra.mxu0 %v1025
        %v1455 = vpop.f32.mrf.mxu0
        %v1456 = vadd.f32 0.0, %v1455
        %1457 = vmatmul.f32.gmra.mxu0 %v1270
        %v1458 = vpop.f32.mrf.mxu0
        %v1459 = vadd.f32 0.0, %v1458
        %1460 = vdwg.mxu0
        %v1461 = vadd.f32 %v1216, %v1293
        %v1462 = vadd.f32 %v1217, %v1296
        %v1463 = vadd.f32 %v1218, %v1299
        %v1464 = vadd.f32 %v1219, %v1302
        %v1465 = vadd.f32 %v1220, %v1305
        %v1466 = vadd.f32 %v1221, %v1308
        %v1467 = vadd.f32 %v1222, %v1311
        %v1468 = vadd.f32 %v1223, %v1314
        %v1469 = vadd.f32 %v1224, %v1317
        %v1470 = vadd.f32 %v1225, %v1320
        %v1471 = vadd.f32 %v1226, %v1323
        %v1472 = vadd.f32 %v1227, %v1326
        %v1473 = vadd.f32 %v1228, %v1329
        %v1474 = vadd.f32 %v1229, %v1332
        %v1475 = vadd.f32 %v1230, %v1335
        %v1476 = vadd.f32 %v1231, %v1338
        %v1477 = vadd.f32 %v1232, %v1341
        %v1478 = vadd.f32 %v1233, %v1344
        %v1479 = vadd.f32 %v1234, %v1347
        %v1480 = vadd.f32 %v1235, %v1350
        %v1481 = vadd.f32 %v1236, %v1353
        %v1482 = vadd.f32 %v1237, %v1356
        %v1483 = vadd.f32 %v1238, %v1359
        %v1484 = vadd.f32 %v1239, %v1362
        %v1485 = vadd.f32 %v1240, %v1390
        %v1486 = vadd.f32 %v1241, %v1393
        %v1487 = vadd.f32 %v1242, %v1396
        %v1488 = vadd.f32 %v1243, %v1399
        %v1489 = vadd.f32 %v1244, %v1402
        %v1490 = vadd.f32 %v1245, %v1405
        %v1491 = vadd.f32 %v1246, %v1408
        %v1492 = vadd.f32 %v1247, %v1411
        %v1493 = vadd.f32 %v1248, %v1414
        %v1494 = vadd.f32 %v1249, %v1417
        %v1495 = vadd.f32 %v1250, %v1420
        %v1496 = vadd.f32 %v1251, %v1423
        %v1497 = vadd.f32 %v1252, %v1426
        %v1498 = vadd.f32 %v1253, %v1429
        %v1499 = vadd.f32 %v1254, %v1432
        %v1500 = vadd.f32 %v1255, %v1435
        %v1501 = vadd.f32 %v1256, %v1438
        %v1502 = vadd.f32 %v1257, %v1441
        %v1503 = vadd.f32 %v1258, %v1444
        %v1504 = vadd.f32 %v1259, %v1447
        %v1505 = vadd.f32 %v1260, %v1450
        %v1506 = vadd.f32 %v1261, %v1453
        %v1507 = vadd.f32 %v1262, %v1456
        %v1508 = vadd.f32 %v1263, %v1459
        %s1509 = scalar_lea.vmem %s1, 128
        %v1510 = vld [vmem:[%s1509] sm:$0xff]
        %v1511 = vld [vmem:[%s1509 + $0x8] sm:$0xff]
        %v1512 = vld [vmem:[%s1509 + $0x10] sm:$0xff]
        %v1513 = vld [vmem:[%s1509 + $0x18] sm:$0xf]
        %v1515 = vsel %vm569, %v555, 0
        %v1518 = vsel %vm642, %v1513, 0
        %1520 = vmatpush.msra.mxu0 0.0
        %1521 = vmatpush.msra.mxu0 0.0
        %1522 = vmatpush.msra.mxu0 0.0
        %1523 = vmatpush.msra.mxu0 0.0
        %1524 = vmatpush.msra.mxu0 0.0
        %1525 = vmatpush.msra.mxu0 0.0
        %1526 = vmatpush.msra.mxu0 0.0
        %1527 = vmatpush.msra.mxu0 0.0
        %1528 = vmatpush.msra.mxu0 0.0
        %1529 = vmatpush.msra.mxu0 0.0
        %1530 = vmatpush.msra.mxu0 0.0
        %1531 = vmatpush.msra.mxu0 0.0
        %1532 = vmatpush.msra.mxu0 %v1518
        %1533 = vmatpush.msra.mxu0 %v1512
        %1534 = vmatpush.msra.mxu0 %v1511
        %1535 = vmatpush.msra.mxu0 %v1510
        %1536 = vmatmul.f32.gmra.mxu0 %v580
        %v1537 = vpop.f32.mrf.mxu0
        %v1538 = vadd.f32 0.0, %v1537
        %1539 = vmatmul.f32.gmra.mxu0 %v583
        %v1540 = vpop.f32.mrf.mxu0
        %v1541 = vadd.f32 0.0, %v1540
        %1542 = vmatmul.f32.gmra.mxu0 %v586
        %v1543 = vpop.f32.mrf.mxu0
        %v1544 = vadd.f32 0.0, %v1543
        %1545 = vmatmul.f32.gmra.mxu0 %v589
        %v1546 = vpop.f32.mrf.mxu0
        %v1547 = vadd.f32 0.0, %v1546
        %1548 = vmatmul.f32.gmra.mxu0 %v592
        %v1549 = vpop.f32.mrf.mxu0
        %v1550 = vadd.f32 0.0, %v1549
        %1551 = vmatmul.f32.gmra.mxu0 %v595
        %v1552 = vpop.f32.mrf.mxu0
        %v1553 = vadd.f32 0.0, %v1552
        %1554 = vmatmul.f32.gmra.mxu0 %v598
        %v1555 = vpop.f32.mrf.mxu0
        %v1556 = vadd.f32 0.0, %v1555
        %1557 = vmatmul.f32.gmra.mxu0 %v601
        %v1558 = vpop.f32.mrf.mxu0
        %v1559 = vadd.f32 0.0, %v1558
        %1560 = vmatmul.f32.gmra.mxu0 %v604
        %v1561 = vpop.f32.mrf.mxu0
        %v1562 = vadd.f32 0.0, %v1561
        %1563 = vmatmul.f32.gmra.mxu0 %v607
        %v1564 = vpop.f32.mrf.mxu0
        %v1565 = vadd.f32 0.0, %v1564
        %1566 = vmatmul.f32.gmra.mxu0 %v610
        %v1567 = vpop.f32.mrf.mxu0
        %v1568 = vadd.f32 0.0, %v1567
        %1569 = vmatmul.f32.gmra.mxu0 %v613
        %v1570 = vpop.f32.mrf.mxu0
        %v1571 = vadd.f32 0.0, %v1570
        %1572 = vmatmul.f32.gmra.mxu0 %v616
        %v1573 = vpop.f32.mrf.mxu0
        %v1574 = vadd.f32 0.0, %v1573
        %1575 = vmatmul.f32.gmra.mxu0 %v619
        %v1576 = vpop.f32.mrf.mxu0
        %v1577 = vadd.f32 0.0, %v1576
        %1578 = vmatmul.f32.gmra.mxu0 %v622
        %v1579 = vpop.f32.mrf.mxu0
        %v1580 = vadd.f32 0.0, %v1579
        %1581 = vmatmul.f32.gmra.mxu0 %v625
        %v1582 = vpop.f32.mrf.mxu0
        %v1583 = vadd.f32 0.0, %v1582
        %1584 = vmatmul.f32.gmra.mxu0 %v628
        %v1585 = vpop.f32.mrf.mxu0
        %v1586 = vadd.f32 0.0, %v1585
        %1587 = vmatmul.f32.gmra.mxu0 %v631
        %v1588 = vpop.f32.mrf.mxu0
        %v1589 = vadd.f32 0.0, %v1588
        %1590 = vmatmul.f32.gmra.mxu0 %v634
        %v1591 = vpop.f32.mrf.mxu0
        %v1592 = vadd.f32 0.0, %v1591
        %1593 = vmatmul.f32.gmra.mxu0 %v637
        %v1594 = vpop.f32.mrf.mxu0
        %v1595 = vadd.f32 0.0, %v1594
        %1596 = vmatmul.f32.gmra.mxu0 %v640
        %v1597 = vpop.f32.mrf.mxu0
        %v1598 = vadd.f32 0.0, %v1597
        %1599 = vmatmul.f32.gmra.mxu0 %v1025
        %v1600 = vpop.f32.mrf.mxu0
        %v1601 = vadd.f32 0.0, %v1600
        %1602 = vmatmul.f32.gmra.mxu0 %v1270
        %v1603 = vpop.f32.mrf.mxu0
        %v1604 = vadd.f32 0.0, %v1603
        %1605 = vmatmul.f32.gmra.mxu0 %v1515
        %v1606 = vpop.f32.mrf.mxu0
        %v1607 = vadd.f32 0.0, %v1606
        %1608 = vdwg.mxu0
        %s1609 = scalar_lea.vmem %s2, 128
        %v1610 = vld [vmem:[%s1609] sm:$0xff]
        %v1611 = vld [vmem:[%s1609 + $0x8] sm:$0xff]
        %v1612 = vld [vmem:[%s1609 + $0x10] sm:$0xff]
        %v1613 = vld [vmem:[%s1609 + $0x18] sm:$0xf]
        %v1615 = vsel %vm642, %v1613, 0
        %1617 = vmatpush.msra.mxu0 0.0
        %1618 = vmatpush.msra.mxu0 0.0
        %1619 = vmatpush.msra.mxu0 0.0
        %1620 = vmatpush.msra.mxu0 0.0
        %1621 = vmatpush.msra.mxu0 0.0
        %1622 = vmatpush.msra.mxu0 0.0
        %1623 = vmatpush.msra.mxu0 0.0
        %1624 = vmatpush.msra.mxu0 0.0
        %1625 = vmatpush.msra.mxu0 0.0
        %1626 = vmatpush.msra.mxu0 0.0
        %1627 = vmatpush.msra.mxu0 0.0
        %1628 = vmatpush.msra.mxu0 0.0
        %1629 = vmatpush.msra.mxu0 %v1615
        %1630 = vmatpush.msra.mxu0 %v1612
        %1631 = vmatpush.msra.mxu0 %v1611
        %1632 = vmatpush.msra.mxu0 %v1610
        %1633 = vmatmul.f32.gmra.mxu0 %v580
        %v1634 = vpop.f32.mrf.mxu0
        %v1635 = vadd.f32 0.0, %v1634
        %1636 = vmatmul.f32.gmra.mxu0 %v583
        %v1637 = vpop.f32.mrf.mxu0
        %v1638 = vadd.f32 0.0, %v1637
        %1639 = vmatmul.f32.gmra.mxu0 %v586
        %v1640 = vpop.f32.mrf.mxu0
        %v1641 = vadd.f32 0.0, %v1640
        %1642 = vmatmul.f32.gmra.mxu0 %v589
        %v1643 = vpop.f32.mrf.mxu0
        %v1644 = vadd.f32 0.0, %v1643
        %1645 = vmatmul.f32.gmra.mxu0 %v592
        %v1646 = vpop.f32.mrf.mxu0
        %v1647 = vadd.f32 0.0, %v1646
        %1648 = vmatmul.f32.gmra.mxu0 %v595
        %v1649 = vpop.f32.mrf.mxu0
        %v1650 = vadd.f32 0.0, %v1649
        %1651 = vmatmul.f32.gmra.mxu0 %v598
        %v1652 = vpop.f32.mrf.mxu0
        %v1653 = vadd.f32 0.0, %v1652
        %1654 = vmatmul.f32.gmra.mxu0 %v601
        %v1655 = vpop.f32.mrf.mxu0
        %v1656 = vadd.f32 0.0, %v1655
        %1657 = vmatmul.f32.gmra.mxu0 %v604
        %v1658 = vpop.f32.mrf.mxu0
        %v1659 = vadd.f32 0.0, %v1658
        %1660 = vmatmul.f32.gmra.mxu0 %v607
        %v1661 = vpop.f32.mrf.mxu0
        %v1662 = vadd.f32 0.0, %v1661
        %1663 = vmatmul.f32.gmra.mxu0 %v610
        %v1664 = vpop.f32.mrf.mxu0
        %v1665 = vadd.f32 0.0, %v1664
        %1666 = vmatmul.f32.gmra.mxu0 %v613
        %v1667 = vpop.f32.mrf.mxu0
        %v1668 = vadd.f32 0.0, %v1667
        %1669 = vmatmul.f32.gmra.mxu0 %v616
        %v1670 = vpop.f32.mrf.mxu0
        %v1671 = vadd.f32 0.0, %v1670
        %1672 = vmatmul.f32.gmra.mxu0 %v619
        %v1673 = vpop.f32.mrf.mxu0
        %v1674 = vadd.f32 0.0, %v1673
        %1675 = vmatmul.f32.gmra.mxu0 %v622
        %v1676 = vpop.f32.mrf.mxu0
        %v1677 = vadd.f32 0.0, %v1676
        %1678 = vmatmul.f32.gmra.mxu0 %v625
        %v1679 = vpop.f32.mrf.mxu0
        %v1680 = vadd.f32 0.0, %v1679
        %1681 = vmatmul.f32.gmra.mxu0 %v628
        %v1682 = vpop.f32.mrf.mxu0
        %v1683 = vadd.f32 0.0, %v1682
        %1684 = vmatmul.f32.gmra.mxu0 %v631
        %v1685 = vpop.f32.mrf.mxu0
        %v1686 = vadd.f32 0.0, %v1685
        %1687 = vmatmul.f32.gmra.mxu0 %v634
        %v1688 = vpop.f32.mrf.mxu0
        %v1689 = vadd.f32 0.0, %v1688
        %1690 = vmatmul.f32.gmra.mxu0 %v637
        %v1691 = vpop.f32.mrf.mxu0
        %v1692 = vadd.f32 0.0, %v1691
        %1693 = vmatmul.f32.gmra.mxu0 %v640
        %v1694 = vpop.f32.mrf.mxu0
        %v1695 = vadd.f32 0.0, %v1694
        %1696 = vmatmul.f32.gmra.mxu0 %v1025
        %v1697 = vpop.f32.mrf.mxu0
        %v1698 = vadd.f32 0.0, %v1697
        %1699 = vmatmul.f32.gmra.mxu0 %v1270
        %v1700 = vpop.f32.mrf.mxu0
        %v1701 = vadd.f32 0.0, %v1700
        %1702 = vmatmul.f32.gmra.mxu0 %v1515
        %v1703 = vpop.f32.mrf.mxu0
        %v1704 = vadd.f32 0.0, %v1703
        %1705 = vdwg.mxu0
        %v1706 = vadd.f32 %v1461, %v1538
        %v1707 = vadd.f32 %v1462, %v1541
        %v1708 = vadd.f32 %v1463, %v1544
        %v1709 = vadd.f32 %v1464, %v1547
        %v1710 = vadd.f32 %v1465, %v1550
        %v1711 = vadd.f32 %v1466, %v1553
        %v1712 = vadd.f32 %v1467, %v1556
        %v1713 = vadd.f32 %v1468, %v1559
        %v1714 = vadd.f32 %v1469, %v1562
        %v1715 = vadd.f32 %v1470, %v1565
        %v1716 = vadd.f32 %v1471, %v1568
        %v1717 = vadd.f32 %v1472, %v1571
        %v1718 = vadd.f32 %v1473, %v1574
        %v1719 = vadd.f32 %v1474, %v1577
        %v1720 = vadd.f32 %v1475, %v1580
        %v1721 = vadd.f32 %v1476, %v1583
        %v1722 = vadd.f32 %v1477, %v1586
        %v1723 = vadd.f32 %v1478, %v1589
        %v1724 = vadd.f32 %v1479, %v1592
        %v1725 = vadd.f32 %v1480, %v1595
        %v1726 = vadd.f32 %v1481, %v1598
        %v1727 = vadd.f32 %v1482, %v1601
        %v1728 = vadd.f32 %v1483, %v1604
        %v1729 = vadd.f32 %v1484, %v1607
        %v1730 = vadd.f32 %v1485, %v1635
        %v1731 = vadd.f32 %v1486, %v1638
        %v1732 = vadd.f32 %v1487, %v1641
        %v1733 = vadd.f32 %v1488, %v1644
        %v1734 = vadd.f32 %v1489, %v1647
        %v1735 = vadd.f32 %v1490, %v1650
        %v1736 = vadd.f32 %v1491, %v1653
        %v1737 = vadd.f32 %v1492, %v1656
        %v1738 = vadd.f32 %v1493, %v1659
        %v1739 = vadd.f32 %v1494, %v1662
        %v1740 = vadd.f32 %v1495, %v1665
        %v1741 = vadd.f32 %v1496, %v1668
        %v1742 = vadd.f32 %v1497, %v1671
        %v1743 = vadd.f32 %v1498, %v1674
        %v1744 = vadd.f32 %v1499, %v1677
        %v1745 = vadd.f32 %v1500, %v1680
        %v1746 = vadd.f32 %v1501, %v1683
        %v1747 = vadd.f32 %v1502, %v1686
        %v1748 = vadd.f32 %v1503, %v1689
        %v1749 = vadd.f32 %v1504, %v1692
        %v1750 = vadd.f32 %v1505, %v1695
        %v1751 = vadd.f32 %v1506, %v1698
        %v1752 = vadd.f32 %v1507, %v1701
        %v1753 = vadd.f32 %v1508, %v1704
        %v1754 = vmax.f32 %v1706, %v1730
        %v1755 = vmax.f32 %v1707, %v1731
        %v1756 = vmax.f32 %v1708, %v1732
        %v1757 = vmax.f32 %v1709, %v1733
        %v1758 = vmax.f32 %v1710, %v1734
        %v1759 = vmax.f32 %v1711, %v1735
        %v1760 = vmax.f32 %v1712, %v1736
        %v1761 = vmax.f32 %v1713, %v1737
        %v1762 = vmax.f32 %v1714, %v1738
        %v1763 = vmax.f32 %v1715, %v1739
        %v1764 = vmax.f32 %v1716, %v1740
        %v1765 = vmax.f32 %v1717, %v1741
        %v1766 = vmax.f32 %v1718, %v1742
        %v1767 = vmax.f32 %v1719, %v1743
        %v1768 = vmax.f32 %v1720, %v1744
        %v1769 = vmax.f32 %v1721, %v1745
        %v1770 = vmax.f32 %v1722, %v1746
        %v1771 = vmax.f32 %v1723, %v1747
        %v1772 = vmax.f32 %v1724, %v1748
        %v1773 = vmax.f32 %v1725, %v1749
        %v1774 = vmax.f32 %v1726, %v1750
        %v1775 = vmax.f32 %v1727, %v1751
        %v1776 = vmax.f32 %v1728, %v1752
        %v1777 = vmax.f32 %v1729, %v1753
        %v1778 = vmax.f32 %v1754, %v1755
        %v1779 = vmax.f32 %v1756, %v1757
        %v1780 = vmax.f32 %v1758, %v1759
        %v1781 = vmax.f32 %v1760, %v1761
        %v1782 = vmax.f32 %v1762, %v1763
        %v1783 = vmax.f32 %v1764, %v1765
        %v1784 = vmax.f32 %v1766, %v1767
        %v1785 = vmax.f32 %v1768, %v1769
        %v1786 = vmax.f32 %v1770, %v1771
        %v1787 = vmax.f32 %v1772, %v1773
        %v1788 = vmax.f32 %v1774, %v1775
        %v1789 = vmax.f32 %v1776, %v1777
        %v1790 = vld [vmem:[%s3] sm:$0x1]
        %v1792 = vperm.slane %v1790, 0
        %v1794 = vadd.f32 %v1778, %v1792
        %v1795 = vadd.f32 %v1779, %v1792
        %v1796 = vadd.f32 %v1780, %v1792
        %v1797 = vadd.f32 %v1781, %v1792
        %v1798 = vadd.f32 %v1782, %v1792
        %v1799 = vadd.f32 %v1783, %v1792
        %v1800 = vadd.f32 %v1784, %v1792
        %v1801 = vadd.f32 %v1785, %v1792
        %v1802 = vadd.f32 %v1786, %v1792
        %v1803 = vadd.f32 %v1787, %v1792
        %v1804 = vadd.f32 %v1788, %v1792
        %v1805 = vadd.f32 %v1789, %v1792
        %v1806 = vmax.f32 %v1794, 0.0
        %v1807 = vmax.f32 %v1795, 0.0
        %v1808 = vmax.f32 %v1796, 0.0
        %v1809 = vmax.f32 %v1797, 0.0
        %v1810 = vmax.f32 %v1798, 0.0
        %v1811 = vmax.f32 %v1799, 0.0
        %v1812 = vmax.f32 %v1800, 0.0
        %v1813 = vmax.f32 %v1801, 0.0
        %v1814 = vmax.f32 %v1802, 0.0
        %v1815 = vmax.f32 %v1803, 0.0
        %v1816 = vmax.f32 %v1804, 0.0
        %v1817 = vmax.f32 %v1805, 0.0
        %v1818 = vld [vmem:[%s4] sm:$0xff]
        %v1819 = vld [vmem:[%s4 + $0x8] sm:$0xff]
        %v1820 = vld [vmem:[%s4 + $0x10] sm:$0xff]
        %v1821 = vld [vmem:[%s4 + $0x18] sm:$0xff]
        %v1822 = vld [vmem:[%s4 + $0x20] sm:$0xff]
        %v1823 = vld [vmem:[%s4 + $0x28] sm:$0xff]
        %v1824 = vld [vmem:[%s5] sm:$0xff]
        %v1825 = vld [vmem:[%s5 + $0x8] sm:$0xff]
        %v1826 = vld [vmem:[%s5 + $0x10] sm:$0xff]
        %v1827 = vld [vmem:[%s5 + $0x18] sm:$0xff]
        %v1828 = vld [vmem:[%s5 + $0x20] sm:$0xff]
        %v1829 = vld [vmem:[%s5 + $0x28] sm:$0xff]
        %s1830 = scalar_lea.vmem %s4, 48
        %v1831 = vld [vmem:[%s1830] sm:$0xff]
        %v1832 = vld [vmem:[%s1830 + $0x8] sm:$0xff]
        %v1833 = vld [vmem:[%s1830 + $0x10] sm:$0xff]
        %v1834 = vld [vmem:[%s1830 + $0x18] sm:$0xff]
        %v1835 = vld [vmem:[%s1830 + $0x20] sm:$0xff]
        %v1836 = vld [vmem:[%s1830 + $0x28] sm:$0xff]
        %vm1837 = vcmask 392192
        %v1839 = vsel %vm1837, %v1807, 0
        %v1842 = vsel %vm1837, %v1808, 0
        %v1845 = vsel %vm1837, %v1809, 0
        %v1848 = vsel %vm1837, %v1810, 0
        %v1851 = vsel %vm1837, %v1811, 0
        %v1854 = vsel %vm1837, %v1812, 0
        %v1857 = vsel %vm1837, %v1813, 0
        %v1860 = vsel %vm1837, %v1814, 0
        %1862 = vmatpush.msra.mxu0 0.0
        %1863 = vmatpush.msra.mxu0 0.0
        %1864 = vmatpush.msra.mxu0 0.0
        %1865 = vmatpush.msra.mxu0 0.0
        %1866 = vmatpush.msra.mxu0 0.0
        %1867 = vmatpush.msra.mxu0 0.0
        %1868 = vmatpush.msra.mxu0 0.0
        %1869 = vmatpush.msra.mxu0 0.0
        %1870 = vmatpush.msra.mxu0 0.0
        %1871 = vmatpush.msra.mxu0 0.0
        %1872 = vmatpush.msra.mxu0 %v1836
        %1873 = vmatpush.msra.mxu0 %v1835
        %1874 = vmatpush.msra.mxu0 %v1834
        %1875 = vmatpush.msra.mxu0 %v1833
        %1876 = vmatpush.msra.mxu0 %v1832
        %1877 = vmatpush.msra.mxu0 %v1831
        %1878 = vmatmul.f32.gmra.mxu0 %v1839
        %v1879 = vpop.f32.mrf.mxu0
        %v1880 = vadd.f32 0.0, %v1879
        %1881 = vmatmul.f32.gmra.mxu0 %v1842
        %v1882 = vpop.f32.mrf.mxu0
        %v1883 = vadd.f32 0.0, %v1882
        %1884 = vmatmul.f32.gmra.mxu0 %v1845
        %v1885 = vpop.f32.mrf.mxu0
        %v1886 = vadd.f32 0.0, %v1885
        %1887 = vmatmul.f32.gmra.mxu0 %v1848
        %v1888 = vpop.f32.mrf.mxu0
        %v1889 = vadd.f32 0.0, %v1888
        %1890 = vmatmul.f32.gmra.mxu0 %v1851
        %v1891 = vpop.f32.mrf.mxu0
        %v1892 = vadd.f32 0.0, %v1891
        %1893 = vmatmul.f32.gmra.mxu0 %v1854
        %v1894 = vpop.f32.mrf.mxu0
        %v1895 = vadd.f32 0.0, %v1894
        %1896 = vmatmul.f32.gmra.mxu0 %v1857
        %v1897 = vpop.f32.mrf.mxu0
        %v1898 = vadd.f32 0.0, %v1897
        %1899 = vmatmul.f32.gmra.mxu0 %v1860
        %v1900 = vpop.f32.mrf.mxu0
        %v1901 = vadd.f32 0.0, %v1900
        %1902 = vdwg.mxu0
        %s1903 = scalar_lea.vmem %s5, 48
        %v1904 = vld [vmem:[%s1903] sm:$0xff]
        %v1905 = vld [vmem:[%s1903 + $0x8] sm:$0xff]
        %v1906 = vld [vmem:[%s1903 + $0x10] sm:$0xff]
        %v1907 = vld [vmem:[%s1903 + $0x18] sm:$0xff]
        %v1908 = vld [vmem:[%s1903 + $0x20] sm:$0xff]
        %v1909 = vld [vmem:[%s1903 + $0x28] sm:$0xff]
        %1910 = vmatpush.msra.mxu0 0.0
        %1911 = vmatpush.msra.mxu0 0.0
        %1912 = vmatpush.msra.mxu0 0.0
        %1913 = vmatpush.msra.mxu0 0.0
        %1914 = vmatpush.msra.mxu0 0.0
        %1915 = vmatpush.msra.mxu0 0.0
        %1916 = vmatpush.msra.mxu0 0.0
        %1917 = vmatpush.msra.mxu0 0.0
        %1918 = vmatpush.msra.mxu0 0.0
        %1919 = vmatpush.msra.mxu0 0.0
        %1920 = vmatpush.msra.mxu0 %v1909
        %1921 = vmatpush.msra.mxu0 %v1908
        %1922 = vmatpush.msra.mxu0 %v1907
        %1923 = vmatpush.msra.mxu0 %v1906
        %1924 = vmatpush.msra.mxu0 %v1905
        %1925 = vmatpush.msra.mxu0 %v1904
        %1926 = vmatmul.f32.gmra.mxu0 %v1839
        %v1927 = vpop.f32.mrf.mxu0
        %v1928 = vadd.f32 0.0, %v1927
        %1929 = vmatmul.f32.gmra.mxu0 %v1842
        %v1930 = vpop.f32.mrf.mxu0
        %v1931 = vadd.f32 0.0, %v1930
        %1932 = vmatmul.f32.gmra.mxu0 %v1845
        %v1933 = vpop.f32.mrf.mxu0
        %v1934 = vadd.f32 0.0, %v1933
        %1935 = vmatmul.f32.gmra.mxu0 %v1848
        %v1936 = vpop.f32.mrf.mxu0
        %v1937 = vadd.f32 0.0, %v1936
        %1938 = vmatmul.f32.gmra.mxu0 %v1851
        %v1939 = vpop.f32.mrf.mxu0
        %v1940 = vadd.f32 0.0, %v1939
        %1941 = vmatmul.f32.gmra.mxu0 %v1854
        %v1942 = vpop.f32.mrf.mxu0
        %v1943 = vadd.f32 0.0, %v1942
        %1944 = vmatmul.f32.gmra.mxu0 %v1857
        %v1945 = vpop.f32.mrf.mxu0
        %v1946 = vadd.f32 0.0, %v1945
        %1947 = vmatmul.f32.gmra.mxu0 %v1860
        %v1948 = vpop.f32.mrf.mxu0
        %v1949 = vadd.f32 0.0, %v1948
        %1950 = vdwg.mxu0
        %v1952 = vsel %vm1837, %v1806, 0
        %1954 = vmatpush.msra.mxu0 0.0
        %1955 = vmatpush.msra.mxu0 0.0
        %1956 = vmatpush.msra.mxu0 0.0
        %1957 = vmatpush.msra.mxu0 0.0
        %1958 = vmatpush.msra.mxu0 0.0
        %1959 = vmatpush.msra.mxu0 0.0
        %1960 = vmatpush.msra.mxu0 0.0
        %1961 = vmatpush.msra.mxu0 0.0
        %1962 = vmatpush.msra.mxu0 0.0
        %1963 = vmatpush.msra.mxu0 0.0
        %1964 = vmatpush.msra.mxu0 %v1823
        %1965 = vmatpush.msra.mxu0 %v1822
        %1966 = vmatpush.msra.mxu0 %v1821
        %1967 = vmatpush.msra.mxu0 %v1820
        %1968 = vmatpush.msra.mxu0 %v1819
        %1969 = vmatpush.msra.mxu0 %v1818
        %1970 = vmatmul.f32.gmra.mxu0 %v1952
        %v1971 = vpop.f32.mrf.mxu0
        %v1972 = vadd.f32 %v1880, %v1971
        %1973 = vmatmul.f32.gmra.mxu0 %v1839
        %v1974 = vpop.f32.mrf.mxu0
        %v1975 = vadd.f32 %v1883, %v1974
        %1976 = vmatmul.f32.gmra.mxu0 %v1842
        %v1977 = vpop.f32.mrf.mxu0
        %v1978 = vadd.f32 %v1886, %v1977
        %1979 = vmatmul.f32.gmra.mxu0 %v1845
        %v1980 = vpop.f32.mrf.mxu0
        %v1981 = vadd.f32 %v1889, %v1980
        %1982 = vmatmul.f32.gmra.mxu0 %v1848
        %v1983 = vpop.f32.mrf.mxu0
        %v1984 = vadd.f32 %v1892, %v1983
        %1985 = vmatmul.f32.gmra.mxu0 %v1851
        %v1986 = vpop.f32.mrf.mxu0
        %v1987 = vadd.f32 %v1895, %v1986
        %1988 = vmatmul.f32.gmra.mxu0 %v1854
        %v1989 = vpop.f32.mrf.mxu0
        %v1990 = vadd.f32 %v1898, %v1989
        %1991 = vmatmul.f32.gmra.mxu0 %v1857
        %v1992 = vpop.f32.mrf.mxu0
        %v1993 = vadd.f32 %v1901, %v1992
        %1994 = vdwg.mxu0
        %1995 = vmatpush.msra.mxu0 0.0
        %1996 = vmatpush.msra.mxu0 0.0
        %1997 = vmatpush.msra.mxu0 0.0
        %1998 = vmatpush.msra.mxu0 0.0
        %1999 = vmatpush.msra.mxu0 0.0
        %2000 = vmatpush.msra.mxu0 0.0
        %2001 = vmatpush.msra.mxu0 0.0
        %2002 = vmatpush.msra.mxu0 0.0
        %2003 = vmatpush.msra.mxu0 0.0
        %2004 = vmatpush.msra.mxu0 0.0
        %2005 = vmatpush.msra.mxu0 %v1829
        %2006 = vmatpush.msra.mxu0 %v1828
        %2007 = vmatpush.msra.mxu0 %v1827
        %2008 = vmatpush.msra.mxu0 %v1826
        %2009 = vmatpush.msra.mxu0 %v1825
        %2010 = vmatpush.msra.mxu0 %v1824
        %2011 = vmatmul.f32.gmra.mxu0 %v1952
        %v2012 = vpop.f32.mrf.mxu0
        %v2013 = vadd.f32 %v1928, %v2012
        %2014 = vmatmul.f32.gmra.mxu0 %v1839
        %v2015 = vpop.f32.mrf.mxu0
        %v2016 = vadd.f32 %v1931, %v2015
        %2017 = vmatmul.f32.gmra.mxu0 %v1842
        %v2018 = vpop.f32.mrf.mxu0
        %v2019 = vadd.f32 %v1934, %v2018
        %2020 = vmatmul.f32.gmra.mxu0 %v1845
        %v2021 = vpop.f32.mrf.mxu0
        %v2022 = vadd.f32 %v1937, %v2021
        %2023 = vmatmul.f32.gmra.mxu0 %v1848
        %v2024 = vpop.f32.mrf.mxu0
        %v2025 = vadd.f32 %v1940, %v2024
        %2026 = vmatmul.f32.gmra.mxu0 %v1851
        %v2027 = vpop.f32.mrf.mxu0
        %v2028 = vadd.f32 %v1943, %v2027
        %2029 = vmatmul.f32.gmra.mxu0 %v1854
        %v2030 = vpop.f32.mrf.mxu0
        %v2031 = vadd.f32 %v1946, %v2030
        %2032 = vmatmul.f32.gmra.mxu0 %v1857
        %v2033 = vpop.f32.mrf.mxu0
        %v2034 = vadd.f32 %v1949, %v2033
        %2035 = vdwg.mxu0
        %s2036 = scalar_lea.vmem %s4, 96
        %v2037 = vld [vmem:[%s2036] sm:$0xff]
        %v2038 = vld [vmem:[%s2036 + $0x8] sm:$0xff]
        %v2039 = vld [vmem:[%s2036 + $0x10] sm:$0xff]
        %v2040 = vld [vmem:[%s2036 + $0x18] sm:$0xff]
        %v2041 = vld [vmem:[%s2036 + $0x20] sm:$0xff]
        %v2042 = vld [vmem:[%s2036 + $0x28] sm:$0xff]
        %v2044 = vsel %vm1837, %v1815, 0
        %2046 = vmatpush.msra.mxu0 0.0
        %2047 = vmatpush.msra.mxu0 0.0
        %2048 = vmatpush.msra.mxu0 0.0
        %2049 = vmatpush.msra.mxu0 0.0
        %2050 = vmatpush.msra.mxu0 0.0
        %2051 = vmatpush.msra.mxu0 0.0
        %2052 = vmatpush.msra.mxu0 0.0
        %2053 = vmatpush.msra.mxu0 0.0
        %2054 = vmatpush.msra.mxu0 0.0
        %2055 = vmatpush.msra.mxu0 0.0
        %2056 = vmatpush.msra.mxu0 %v2042
        %2057 = vmatpush.msra.mxu0 %v2041
        %2058 = vmatpush.msra.mxu0 %v2040
        %2059 = vmatpush.msra.mxu0 %v2039
        %2060 = vmatpush.msra.mxu0 %v2038
        %2061 = vmatpush.msra.mxu0 %v2037
        %2062 = vmatmul.f32.gmra.mxu0 %v1842
        %v2063 = vpop.f32.mrf.mxu0
        %v2064 = vadd.f32 0.0, %v2063
        %2065 = vmatmul.f32.gmra.mxu0 %v1845
        %v2066 = vpop.f32.mrf.mxu0
        %v2067 = vadd.f32 0.0, %v2066
        %2068 = vmatmul.f32.gmra.mxu0 %v1848
        %v2069 = vpop.f32.mrf.mxu0
        %v2070 = vadd.f32 0.0, %v2069
        %2071 = vmatmul.f32.gmra.mxu0 %v1851
        %v2072 = vpop.f32.mrf.mxu0
        %v2073 = vadd.f32 0.0, %v2072
        %2074 = vmatmul.f32.gmra.mxu0 %v1854
        %v2075 = vpop.f32.mrf.mxu0
        %v2076 = vadd.f32 0.0, %v2075
        %2077 = vmatmul.f32.gmra.mxu0 %v1857
        %v2078 = vpop.f32.mrf.mxu0
        %v2079 = vadd.f32 0.0, %v2078
        %2080 = vmatmul.f32.gmra.mxu0 %v1860
        %v2081 = vpop.f32.mrf.mxu0
        %v2082 = vadd.f32 0.0, %v2081
        %2083 = vmatmul.f32.gmra.mxu0 %v2044
        %v2084 = vpop.f32.mrf.mxu0
        %v2085 = vadd.f32 0.0, %v2084
        %2086 = vdwg.mxu0
        %s2087 = scalar_lea.vmem %s5, 96
        %v2088 = vld [vmem:[%s2087] sm:$0xff]
        %v2089 = vld [vmem:[%s2087 + $0x8] sm:$0xff]
        %v2090 = vld [vmem:[%s2087 + $0x10] sm:$0xff]
        %v2091 = vld [vmem:[%s2087 + $0x18] sm:$0xff]
        %v2092 = vld [vmem:[%s2087 + $0x20] sm:$0xff]
        %v2093 = vld [vmem:[%s2087 + $0x28] sm:$0xff]
        %2094 = vmatpush.msra.mxu0 0.0
        %2095 = vmatpush.msra.mxu0 0.0
        %2096 = vmatpush.msra.mxu0 0.0
        %2097 = vmatpush.msra.mxu0 0.0
        %2098 = vmatpush.msra.mxu0 0.0
        %2099 = vmatpush.msra.mxu0 0.0
        %2100 = vmatpush.msra.mxu0 0.0
        %2101 = vmatpush.msra.mxu0 0.0
        %2102 = vmatpush.msra.mxu0 0.0
        %2103 = vmatpush.msra.mxu0 0.0
        %2104 = vmatpush.msra.mxu0 %v2093
        %2105 = vmatpush.msra.mxu0 %v2092
        %2106 = vmatpush.msra.mxu0 %v2091
        %2107 = vmatpush.msra.mxu0 %v2090
        %2108 = vmatpush.msra.mxu0 %v2089
        %2109 = vmatpush.msra.mxu0 %v2088
        %2110 = vmatmul.f32.gmra.mxu0 %v1842
        %v2111 = vpop.f32.mrf.mxu0
        %v2112 = vadd.f32 0.0, %v2111
        %2113 = vmatmul.f32.gmra.mxu0 %v1845
        %v2114 = vpop.f32.mrf.mxu0
        %v2115 = vadd.f32 0.0, %v2114
        %2116 = vmatmul.f32.gmra.mxu0 %v1848
        %v2117 = vpop.f32.mrf.mxu0
        %v2118 = vadd.f32 0.0, %v2117
        %2119 = vmatmul.f32.gmra.mxu0 %v1851
        %v2120 = vpop.f32.mrf.mxu0
        %v2121 = vadd.f32 0.0, %v2120
        %2122 = vmatmul.f32.gmra.mxu0 %v1854
        %v2123 = vpop.f32.mrf.mxu0
        %v2124 = vadd.f32 0.0, %v2123
        %2125 = vmatmul.f32.gmra.mxu0 %v1857
        %v2126 = vpop.f32.mrf.mxu0
        %v2127 = vadd.f32 0.0, %v2126
        %2128 = vmatmul.f32.gmra.mxu0 %v1860
        %v2129 = vpop.f32.mrf.mxu0
        %v2130 = vadd.f32 0.0, %v2129
        %2131 = vmatmul.f32.gmra.mxu0 %v2044
        %v2132 = vpop.f32.mrf.mxu0
        %v2133 = vadd.f32 0.0, %v2132
        %2134 = vdwg.mxu0
        %v2135 = vadd.f32 %v1972, %v2064
        %v2136 = vadd.f32 %v1975, %v2067
        %v2137 = vadd.f32 %v1978, %v2070
        %v2138 = vadd.f32 %v1981, %v2073
        %v2139 = vadd.f32 %v1984, %v2076
        %v2140 = vadd.f32 %v1987, %v2079
        %v2141 = vadd.f32 %v1990, %v2082
        %v2142 = vadd.f32 %v1993, %v2085
        %v2143 = vadd.f32 %v2013, %v2112
        %v2144 = vadd.f32 %v2016, %v2115
        %v2145 = vadd.f32 %v2019, %v2118
        %v2146 = vadd.f32 %v2022, %v2121
        %v2147 = vadd.f32 %v2025, %v2124
        %v2148 = vadd.f32 %v2028, %v2127
        %v2149 = vadd.f32 %v2031, %v2130
        %v2150 = vadd.f32 %v2034, %v2133
        %s2151 = scalar_lea.vmem %s4, 144
        %v2152 = vld [vmem:[%s2151] sm:$0xff]
        %v2153 = vld [vmem:[%s2151 + $0x8] sm:$0xff]
        %v2154 = vld [vmem:[%s2151 + $0x10] sm:$0xff]
        %v2155 = vld [vmem:[%s2151 + $0x18] sm:$0xff]
        %v2156 = vld [vmem:[%s2151 + $0x20] sm:$0xff]
        %v2157 = vld [vmem:[%s2151 + $0x28] sm:$0xff]
        %v2159 = vsel %vm1837, %v1816, 0
        %2161 = vmatpush.msra.mxu0 0.0
        %2162 = vmatpush.msra.mxu0 0.0
        %2163 = vmatpush.msra.mxu0 0.0
        %2164 = vmatpush.msra.mxu0 0.0
        %2165 = vmatpush.msra.mxu0 0.0
        %2166 = vmatpush.msra.mxu0 0.0
        %2167 = vmatpush.msra.mxu0 0.0
        %2168 = vmatpush.msra.mxu0 0.0
        %2169 = vmatpush.msra.mxu0 0.0
        %2170 = vmatpush.msra.mxu0 0.0
        %2171 = vmatpush.msra.mxu0 %v2157
        %2172 = vmatpush.msra.mxu0 %v2156
        %2173 = vmatpush.msra.mxu0 %v2155
        %2174 = vmatpush.msra.mxu0 %v2154
        %2175 = vmatpush.msra.mxu0 %v2153
        %2176 = vmatpush.msra.mxu0 %v2152
        %2177 = vmatmul.f32.gmra.mxu0 %v1845
        %v2178 = vpop.f32.mrf.mxu0
        %v2179 = vadd.f32 0.0, %v2178
        %2180 = vmatmul.f32.gmra.mxu0 %v1848
        %v2181 = vpop.f32.mrf.mxu0
        %v2182 = vadd.f32 0.0, %v2181
        %2183 = vmatmul.f32.gmra.mxu0 %v1851
        %v2184 = vpop.f32.mrf.mxu0
        %v2185 = vadd.f32 0.0, %v2184
        %2186 = vmatmul.f32.gmra.mxu0 %v1854
        %v2187 = vpop.f32.mrf.mxu0
        %v2188 = vadd.f32 0.0, %v2187
        %2189 = vmatmul.f32.gmra.mxu0 %v1857
        %v2190 = vpop.f32.mrf.mxu0
        %v2191 = vadd.f32 0.0, %v2190
        %2192 = vmatmul.f32.gmra.mxu0 %v1860
        %v2193 = vpop.f32.mrf.mxu0
        %v2194 = vadd.f32 0.0, %v2193
        %2195 = vmatmul.f32.gmra.mxu0 %v2044
        %v2196 = vpop.f32.mrf.mxu0
        %v2197 = vadd.f32 0.0, %v2196
        %2198 = vmatmul.f32.gmra.mxu0 %v2159
        %v2199 = vpop.f32.mrf.mxu0
        %v2200 = vadd.f32 0.0, %v2199
        %2201 = vdwg.mxu0
        %s2202 = scalar_lea.vmem %s5, 144
        %v2203 = vld [vmem:[%s2202] sm:$0xff]
        %v2204 = vld [vmem:[%s2202 + $0x8] sm:$0xff]
        %v2205 = vld [vmem:[%s2202 + $0x10] sm:$0xff]
        %v2206 = vld [vmem:[%s2202 + $0x18] sm:$0xff]
        %v2207 = vld [vmem:[%s2202 + $0x20] sm:$0xff]
        %v2208 = vld [vmem:[%s2202 + $0x28] sm:$0xff]
        %2209 = vmatpush.msra.mxu0 0.0
        %2210 = vmatpush.msra.mxu0 0.0
        %2211 = vmatpush.msra.mxu0 0.0
        %2212 = vmatpush.msra.mxu0 0.0
        %2213 = vmatpush.msra.mxu0 0.0
        %2214 = vmatpush.msra.mxu0 0.0
        %2215 = vmatpush.msra.mxu0 0.0
        %2216 = vmatpush.msra.mxu0 0.0
        %2217 = vmatpush.msra.mxu0 0.0
        %2218 = vmatpush.msra.mxu0 0.0
        %2219 = vmatpush.msra.mxu0 %v2208
        %2220 = vmatpush.msra.mxu0 %v2207
        %2221 = vmatpush.msra.mxu0 %v2206
        %2222 = vmatpush.msra.mxu0 %v2205
        %2223 = vmatpush.msra.mxu0 %v2204
        %2224 = vmatpush.msra.mxu0 %v2203
        %2225 = vmatmul.f32.gmra.mxu0 %v1845
        %v2226 = vpop.f32.mrf.mxu0
        %v2227 = vadd.f32 0.0, %v2226
        %2228 = vmatmul.f32.gmra.mxu0 %v1848
        %v2229 = vpop.f32.mrf.mxu0
        %v2230 = vadd.f32 0.0, %v2229
        %2231 = vmatmul.f32.gmra.mxu0 %v1851
        %v2232 = vpop.f32.mrf.mxu0
        %v2233 = vadd.f32 0.0, %v2232
        %2234 = vmatmul.f32.gmra.mxu0 %v1854
        %v2235 = vpop.f32.mrf.mxu0
        %v2236 = vadd.f32 0.0, %v2235
        %2237 = vmatmul.f32.gmra.mxu0 %v1857
        %v2238 = vpop.f32.mrf.mxu0
        %v2239 = vadd.f32 0.0, %v2238
        %2240 = vmatmul.f32.gmra.mxu0 %v1860
        %v2241 = vpop.f32.mrf.mxu0
        %v2242 = vadd.f32 0.0, %v2241
        %2243 = vmatmul.f32.gmra.mxu0 %v2044
        %v2244 = vpop.f32.mrf.mxu0
        %v2245 = vadd.f32 0.0, %v2244
        %2246 = vmatmul.f32.gmra.mxu0 %v2159
        %v2247 = vpop.f32.mrf.mxu0
        %v2248 = vadd.f32 0.0, %v2247
        %2249 = vdwg.mxu0
        %v2250 = vadd.f32 %v2135, %v2179
        %v2251 = vadd.f32 %v2136, %v2182
        %v2252 = vadd.f32 %v2137, %v2185
        %v2253 = vadd.f32 %v2138, %v2188
        %v2254 = vadd.f32 %v2139, %v2191
        %v2255 = vadd.f32 %v2140, %v2194
        %v2256 = vadd.f32 %v2141, %v2197
        %v2257 = vadd.f32 %v2142, %v2200
        %v2258 = vadd.f32 %v2143, %v2227
        %v2259 = vadd.f32 %v2144, %v2230
        %v2260 = vadd.f32 %v2145, %v2233
        %v2261 = vadd.f32 %v2146, %v2236
        %v2262 = vadd.f32 %v2147, %v2239
        %v2263 = vadd.f32 %v2148, %v2242
        %v2264 = vadd.f32 %v2149, %v2245
        %v2265 = vadd.f32 %v2150, %v2248
        %s2266 = scalar_lea.vmem %s4, 192
        %v2267 = vld [vmem:[%s2266] sm:$0xff]
        %v2268 = vld [vmem:[%s2266 + $0x8] sm:$0xff]
        %v2269 = vld [vmem:[%s2266 + $0x10] sm:$0xff]
        %v2270 = vld [vmem:[%s2266 + $0x18] sm:$0xff]
        %v2271 = vld [vmem:[%s2266 + $0x20] sm:$0xff]
        %v2272 = vld [vmem:[%s2266 + $0x28] sm:$0xff]
        %v2274 = vsel %vm1837, %v1817, 0
        %2276 = vmatpush.msra.mxu0 0.0
        %2277 = vmatpush.msra.mxu0 0.0
        %2278 = vmatpush.msra.mxu0 0.0
        %2279 = vmatpush.msra.mxu0 0.0
        %2280 = vmatpush.msra.mxu0 0.0
        %2281 = vmatpush.msra.mxu0 0.0
        %2282 = vmatpush.msra.mxu0 0.0
        %2283 = vmatpush.msra.mxu0 0.0
        %2284 = vmatpush.msra.mxu0 0.0
        %2285 = vmatpush.msra.mxu0 0.0
        %2286 = vmatpush.msra.mxu0 %v2272
        %2287 = vmatpush.msra.mxu0 %v2271
        %2288 = vmatpush.msra.mxu0 %v2270
        %2289 = vmatpush.msra.mxu0 %v2269
        %2290 = vmatpush.msra.mxu0 %v2268
        %2291 = vmatpush.msra.mxu0 %v2267
        %2292 = vmatmul.f32.gmra.mxu0 %v1848
        %v2293 = vpop.f32.mrf.mxu0
        %v2294 = vadd.f32 0.0, %v2293
        %2295 = vmatmul.f32.gmra.mxu0 %v1851
        %v2296 = vpop.f32.mrf.mxu0
        %v2297 = vadd.f32 0.0, %v2296
        %2298 = vmatmul.f32.gmra.mxu0 %v1854
        %v2299 = vpop.f32.mrf.mxu0
        %v2300 = vadd.f32 0.0, %v2299
        %2301 = vmatmul.f32.gmra.mxu0 %v1857
        %v2302 = vpop.f32.mrf.mxu0
        %v2303 = vadd.f32 0.0, %v2302
        %2304 = vmatmul.f32.gmra.mxu0 %v1860
        %v2305 = vpop.f32.mrf.mxu0
        %v2306 = vadd.f32 0.0, %v2305
        %2307 = vmatmul.f32.gmra.mxu0 %v2044
        %v2308 = vpop.f32.mrf.mxu0
        %v2309 = vadd.f32 0.0, %v2308
        %2310 = vmatmul.f32.gmra.mxu0 %v2159
        %v2311 = vpop.f32.mrf.mxu0
        %v2312 = vadd.f32 0.0, %v2311
        %2313 = vmatmul.f32.gmra.mxu0 %v2274
        %v2314 = vpop.f32.mrf.mxu0
        %v2315 = vadd.f32 0.0, %v2314
        %2316 = vdwg.mxu0
        %s2317 = scalar_lea.vmem %s5, 192
        %v2318 = vld [vmem:[%s2317] sm:$0xff]
        %v2319 = vld [vmem:[%s2317 + $0x8] sm:$0xff]
        %v2320 = vld [vmem:[%s2317 + $0x10] sm:$0xff]
        %v2321 = vld [vmem:[%s2317 + $0x18] sm:$0xff]
        %v2322 = vld [vmem:[%s2317 + $0x20] sm:$0xff]
        %v2323 = vld [vmem:[%s2317 + $0x28] sm:$0xff]
        %2324 = vmatpush.msra.mxu0 0.0
        %2325 = vmatpush.msra.mxu0 0.0
        %2326 = vmatpush.msra.mxu0 0.0
        %2327 = vmatpush.msra.mxu0 0.0
        %2328 = vmatpush.msra.mxu0 0.0
        %2329 = vmatpush.msra.mxu0 0.0
        %2330 = vmatpush.msra.mxu0 0.0
        %2331 = vmatpush.msra.mxu0 0.0
        %2332 = vmatpush.msra.mxu0 0.0
        %2333 = vmatpush.msra.mxu0 0.0
        %2334 = vmatpush.msra.mxu0 %v2323
        %2335 = vmatpush.msra.mxu0 %v2322
        %2336 = vmatpush.msra.mxu0 %v2321
        %2337 = vmatpush.msra.mxu0 %v2320
        %2338 = vmatpush.msra.mxu0 %v2319
        %2339 = vmatpush.msra.mxu0 %v2318
        %2340 = vmatmul.f32.gmra.mxu0 %v1848
        %v2341 = vpop.f32.mrf.mxu0
        %v2342 = vadd.f32 0.0, %v2341
        %2343 = vmatmul.f32.gmra.mxu0 %v1851
        %v2344 = vpop.f32.mrf.mxu0
        %v2345 = vadd.f32 0.0, %v2344
        %2346 = vmatmul.f32.gmra.mxu0 %v1854
        %v2347 = vpop.f32.mrf.mxu0
        %v2348 = vadd.f32 0.0, %v2347
        %2349 = vmatmul.f32.gmra.mxu0 %v1857
        %v2350 = vpop.f32.mrf.mxu0
        %v2351 = vadd.f32 0.0, %v2350
        %2352 = vmatmul.f32.gmra.mxu0 %v1860
        %v2353 = vpop.f32.mrf.mxu0
        %v2354 = vadd.f32 0.0, %v2353
        %2355 = vmatmul.f32.gmra.mxu0 %v2044
        %v2356 = vpop.f32.mrf.mxu0
        %v2357 = vadd.f32 0.0, %v2356
        %2358 = vmatmul.f32.gmra.mxu0 %v2159
        %v2359 = vpop.f32.mrf.mxu0
        %v2360 = vadd.f32 0.0, %v2359
        %2361 = vmatmul.f32.gmra.mxu0 %v2274
        %v2362 = vpop.f32.mrf.mxu0
        %v2363 = vadd.f32 0.0, %v2362
        %2364 = vdwg.mxu0
        %v2365 = vadd.f32 %v2250, %v2294
        %v2366 = vadd.f32 %v2251, %v2297
        %v2367 = vadd.f32 %v2252, %v2300
        %v2368 = vadd.f32 %v2253, %v2303
        %v2369 = vadd.f32 %v2254, %v2306
        %v2370 = vadd.f32 %v2255, %v2309
        %v2371 = vadd.f32 %v2256, %v2312
        %v2372 = vadd.f32 %v2257, %v2315
        %v2373 = vadd.f32 %v2258, %v2342
        %v2374 = vadd.f32 %v2259, %v2345
        %v2375 = vadd.f32 %v2260, %v2348
        %v2376 = vadd.f32 %v2261, %v2351
        %v2377 = vadd.f32 %v2262, %v2354
        %v2378 = vadd.f32 %v2263, %v2357
        %v2379 = vadd.f32 %v2264, %v2360
        %v2380 = vadd.f32 %v2265, %v2363
        %v2381 = vmax.f32 %v2365, %v2373
        %v2382 = vmax.f32 %v2366, %v2374
        %v2383 = vmax.f32 %v2367, %v2375
        %v2384 = vmax.f32 %v2368, %v2376
        %v2385 = vmax.f32 %v2369, %v2377
        %v2386 = vmax.f32 %v2370, %v2378
        %v2387 = vmax.f32 %v2371, %v2379
        %v2388 = vmax.f32 %v2372, %v2380
        %v2389 = vmax.f32 %v2381, %v2382
        %v2390 = vmax.f32 %v2383, %v2384
        %v2391 = vmax.f32 %v2385, %v2386
        %v2392 = vmax.f32 %v2387, %v2388
        %v2393 = vld [vmem:[%s6] sm:$0x1]
        %v2395 = vperm.slane %v2393, 0
        %v2397 = vadd.f32 %v2389, %v2395
        %v2398 = vadd.f32 %v2390, %v2395
        %v2399 = vadd.f32 %v2391, %v2395
        %v2400 = vadd.f32 %v2392, %v2395
        %v2401 = vmax.f32 %v2397, 0.0
        %v2402 = vmax.f32 %v2398, 0.0
        %v2403 = vmax.f32 %v2399, 0.0
        %v2404 = vmax.f32 %v2400, 0.0
        %v2405 = vld [vmem:[%s7] sm:$0xff]
        %v2406 = vld [vmem:[%s7 + $0x8] sm:$0xff]
        %v2407 = vld [vmem:[%s7 + $0x10] sm:$0xff]
        %v2408 = vld [vmem:[%s7 + $0x18] sm:$0xff]
        %s2409 = scalar_lea.vmem %s7, 32
        %v2410 = vld [vmem:[%s2409] sm:$0xff]
        %v2411 = vld [vmem:[%s2409 + $0x8] sm:$0xff]
        %v2412 = vld [vmem:[%s2409 + $0x10] sm:$0xff]
        %v2413 = vld [vmem:[%s2409 + $0x18] sm:$0xff]
        %vm2414 = vcmask 261120
        %v2416 = vsel %vm2414, %v2402, 0
        %2418 = vmatpush.msra.mxu0 0.0
        %2419 = vmatpush.msra.mxu0 0.0
        %2420 = vmatpush.msra.mxu0 0.0
        %2421 = vmatpush.msra.mxu0 0.0
        %2422 = vmatpush.msra.mxu0 0.0
        %2423 = vmatpush.msra.mxu0 0.0
        %2424 = vmatpush.msra.mxu0 0.0
        %2425 = vmatpush.msra.mxu0 0.0
        %2426 = vmatpush.msra.mxu0 0.0
        %2427 = vmatpush.msra.mxu0 0.0
        %2428 = vmatpush.msra.mxu0 0.0
        %2429 = vmatpush.msra.mxu0 0.0
        %2430 = vmatpush.msra.mxu0 %v2413
        %2431 = vmatpush.msra.mxu0 %v2412
        %2432 = vmatpush.msra.mxu0 %v2411
        %2433 = vmatpush.msra.mxu0 %v2410
        %2434 = vmatmul.f32.gmra.mxu0 %v2416
        %v2435 = vpop.f32.mrf.mxu0
        %v2436 = vadd.f32 0.0, %v2435
        %2437 = vdwg.mxu0
        %v2439 = vsel %vm2414, %v2401, 0
        %2441 = vmatpush.msra.mxu0 0.0
        %2442 = vmatpush.msra.mxu0 0.0
        %2443 = vmatpush.msra.mxu0 0.0
        %2444 = vmatpush.msra.mxu0 0.0
        %2445 = vmatpush.msra.mxu0 0.0
        %2446 = vmatpush.msra.mxu0 0.0
        %2447 = vmatpush.msra.mxu0 0.0
        %2448 = vmatpush.msra.mxu0 0.0
        %2449 = vmatpush.msra.mxu0 0.0
        %2450 = vmatpush.msra.mxu0 0.0
        %2451 = vmatpush.msra.mxu0 0.0
        %2452 = vmatpush.msra.mxu0 0.0
        %2453 = vmatpush.msra.mxu0 %v2408
        %2454 = vmatpush.msra.mxu0 %v2407
        %2455 = vmatpush.msra.mxu0 %v2406
        %2456 = vmatpush.msra.mxu0 %v2405
        %2457 = vmatmul.f32.gmra.mxu0 %v2439
        %v2458 = vpop.f32.mrf.mxu0
        %v2459 = vadd.f32 %v2436, %v2458
        %2460 = vdwg.mxu0
        %s2461 = scalar_lea.vmem %s7, 64
        %v2462 = vld [vmem:[%s2461] sm:$0xff]
        %v2463 = vld [vmem:[%s2461 + $0x8] sm:$0xff]
        %v2464 = vld [vmem:[%s2461 + $0x10] sm:$0xff]
        %v2465 = vld [vmem:[%s2461 + $0x18] sm:$0xff]
        %v2467 = vsel %vm2414, %v2403, 0
        %2469 = vmatpush.msra.mxu0 0.0
        %2470 = vmatpush.msra.mxu0 0.0
        %2471 = vmatpush.msra.mxu0 0.0
        %2472 = vmatpush.msra.mxu0 0.0
        %2473 = vmatpush.msra.mxu0 0.0
        %2474 = vmatpush.msra.mxu0 0.0
        %2475 = vmatpush.msra.mxu0 0.0
        %2476 = vmatpush.msra.mxu0 0.0
        %2477 = vmatpush.msra.mxu0 0.0
        %2478 = vmatpush.msra.mxu0 0.0
        %2479 = vmatpush.msra.mxu0 0.0
        %2480 = vmatpush.msra.mxu0 0.0
        %2481 = vmatpush.msra.mxu0 %v2465
        %2482 = vmatpush.msra.mxu0 %v2464
        %2483 = vmatpush.msra.mxu0 %v2463
        %2484 = vmatpush.msra.mxu0 %v2462
        %2485 = vmatmul.f32.gmra.mxu0 %v2467
        %v2486 = vpop.f32.mrf.mxu0
        %v2487 = vadd.f32 0.0, %v2486
        %2488 = vdwg.mxu0
        %v2489 = vadd.f32 %v2459, %v2487
        %s2490 = scalar_lea.vmem %s7, 96
        %v2491 = vld [vmem:[%s2490] sm:$0xff]
        %v2492 = vld [vmem:[%s2490 + $0x8] sm:$0xff]
        %v2493 = vld [vmem:[%s2490 + $0x10] sm:$0xff]
        %v2494 = vld [vmem:[%s2490 + $0x18] sm:$0xff]
        %v2496 = vsel %vm2414, %v2404, 0
        %2498 = vmatpush.msra.mxu0 0.0
        %2499 = vmatpush.msra.mxu0 0.0
        %2500 = vmatpush.msra.mxu0 0.0
        %2501 = vmatpush.msra.mxu0 0.0
        %2502 = vmatpush.msra.mxu0 0.0
        %2503 = vmatpush.msra.mxu0 0.0
        %2504 = vmatpush.msra.mxu0 0.0
        %2505 = vmatpush.msra.mxu0 0.0
        %2506 = vmatpush.msra.mxu0 0.0
        %2507 = vmatpush.msra.mxu0 0.0
        %2508 = vmatpush.msra.mxu0 0.0
        %2509 = vmatpush.msra.mxu0 0.0
        %2510 = vmatpush.msra.mxu0 %v2494
        %2511 = vmatpush.msra.mxu0 %v2493
        %2512 = vmatpush.msra.mxu0 %v2492
        %2513 = vmatpush.msra.mxu0 %v2491
        %2514 = vmatmul.f32.gmra.mxu0 %v2496
        %v2515 = vpop.f32.mrf.mxu0
        %v2516 = vadd.f32 0.0, %v2515
        %2517 = vdwg.mxu0
        %v2518 = vadd.f32 %v2489, %v2516
        %v2519 = vld [vmem:[%s8] sm:$0x1]
        %v2521 = vperm.slane %v2519, 0
        %v2523 = vadd.f32 %v2518, %v2521
        %v2524 = vmax.f32 %v2523, 0.0
        %v2525 = vld [vmem:[%s9] sm:$0xff]
        %v2526 = vld [vmem:[%s9 + $0x8] sm:$0xff]
        %v2527 = vld [vmem:[%s9 + $0x10] sm:$0xff]
        %v2528 = vld [vmem:[%s9 + $0x18] sm:$0xff]
        %v2529 = vld [vmem:[%s10] sm:$0x1]
        %v2531 = vperm.slane %v2529, 0
        %v2534 = vsel %vm2414, %v2524, 0
        %2536 = vmatpush.msra.mxu0 0.0
        %2537 = vmatpush.msra.mxu0 0.0
        %2538 = vmatpush.msra.mxu0 0.0
        %2539 = vmatpush.msra.mxu0 0.0
        %2540 = vmatpush.msra.mxu0 0.0
        %2541 = vmatpush.msra.mxu0 0.0
        %2542 = vmatpush.msra.mxu0 0.0
        %2543 = vmatpush.msra.mxu0 0.0
        %2544 = vmatpush.msra.mxu0 0.0
        %2545 = vmatpush.msra.mxu0 0.0
        %2546 = vmatpush.msra.mxu0 0.0
        %2547 = vmatpush.msra.mxu0 0.0
        %2548 = vmatpush.msra.mxu0 %v2528
        %2549 = vmatpush.msra.mxu0 %v2527
        %2550 = vmatpush.msra.mxu0 %v2526
        %2551 = vmatpush.msra.mxu0 %v2525
        %2552 = vmatmul.f32.gmra.mxu0 %v2534
        %v2553 = vpop.f32.mrf.mxu0
        %v2554 = vadd.f32 %v2531, %v2553
        %2555 = vdwg.mxu0
        %vm2556 = vcmask 80896
        %2557 = vst.msk [vmem:[%s527] sm:$0xff] %vm2556, %v2554
        %s2558 = sand.u32 %s269, 1
        %s2559 = scalar_lea.sflag [#allocation4], %s2558
        %s2560 = sand.u32 %s269, 1
        %s2561 = smul.addr %s2560, 8
        %s2562 = scalar_lea.vmem [#allocation3], %s2561
        // Predicated region
        $region103: #{l0_lenet5_forward.1} parent=97 // pred_check
          %p2563 = pneg %p279
        $region104: #{l0_lenet5_forward.1} parent=97 // pred_check_branch
          %2565 = sbr.rel (%p2563) target = $region106
        $region105: #{l0_lenet5_forward.1} parent=97 // pred_region
          %2567 = vsyncadd %s2559, 0
          %s2568 = smul.addr %s25, 8
          %s2569 = scalar_lea.hbm %s11, %s2568
          %s2571 = sshll.u32 %s2562, 4
          %s2572 = int_to_ptr.vmem [resolvable:$true] %s2571
          %s2573 = sshll.u32 %s2569, 4
          %s2574 = int_to_ptr.hbm [resolvable:$true] %s2573
          %2576 = dma.vmem_to_hbm [thread:$0]  %s2572, 128, %s2574, %s2559
        $region106: #{l0_lenet5_forward.1} parent=97 // pred_fallthru
          _
      $region98: #{l0_lenet5_forward.1} parent=5 // pred_fallthru
        _
      %p2577 = scmp.le.s32.totalorder 2, %s20
      // Predicated region
      $region107: #{l0_lenet5_forward.1} parent=5 // pred_check
        %p2578 = pneg %p2577
      $region108: #{l0_lenet5_forward.1} parent=5 // pred_check_branch
        %2580 = sbr.rel (%p2578) target = $region110
      $region109: #{l0_lenet5_forward.1} parent=5 // pred_region
        %s2581 = ssub.s32 %s20, 2
        // Predicated region
        $region111: #{l0_lenet5_forward.1} parent=109 // pred_check
          %p2582 = pneg %p285
        $region112: #{l0_lenet5_forward.1} parent=109 // pred_check_branch
          %2584 = sbr.rel (%p2582) target = $region114
        $region113: #{l0_lenet5_forward.1} parent=109 // pred_region
          %s2585 = sand.u32 %s270, 1
          %s2586 = scalar_lea.sflag [#allocation4], %s2585
          %s2587 = sand.u32 %s270, 1
          %s2588 = smul.addr %s2587, 8
          %s2589 = scalar_lea.vmem [#allocation3], %s2588
          %2591 = dma.done %s2586, 128
        $region114: #{l0_lenet5_forward.1} parent=109 // pred_fallthru
          _
      $region110: #{l0_lenet5_forward.1} parent=5 // pred_fallthru
        _
    $region6: #{l0_lenet5_forward.1} parent=1 // loop_footer
      %s24 = sadd.s32 1, %s20
    $region7: #{l0_lenet5_forward.1} parent=1 // loop_footer_branch
      %19 = sbr.rel target = $region3
    $region8: #{l0_lenet5_forward.1} parent=1 // loop_exit
      _
    %2592 = vsyncpa [#allocation4], 1
    %s2593 = scalar_lea.sflag [#allocation4], 1
    %2594 = vsyncpa %s2593, 1

</llo_original>
